<compile_context>
chip_gen: v6e
topology: v6e:2x2x1
jax: 0.10.0
libtpu: 0.0.40
codegen_flags: <defaults>
</compile_context>

<pallas_src>
import functools

import jax
import jax.numpy as jnp
from jax.experimental import pallas as pl
from jax.experimental.pallas import tpu as pltpu

_BN_EPS = 1e-5


def _round_up(x, m):
    return (x + m - 1) // m * m


# ---------------------------------------------------------------------------
# Fused conv(KHxKW, stride=1, no bias) + BatchNorm(eval) + ReLU kernel.
#
# Grid: (B * n_row_tiles, Cout_pad // TN, Cin_pad // TCin)
#   axis 0: (batch, output-row tile)  -> "parallel"
#   axis 1: TN-wide Cout tile         -> "parallel"
#   axis 2: Cin tile                  -> "arbitrary" reduction (f32 scratch)
#
# Per step the activation block is (rows_in, wp8, TCin) with
# rows_in = th + dil*(kh-1) + 1 halo rows.  The conv is accumulated at the
# padded width wp8 (garbage columns/rows are sliced off in the wrapper), so
# every dy window is an 8-aligned row slice of the flattened slab; only the
# dx shift (kw-1 small sublane shifts per step) needs a relayout.
# ---------------------------------------------------------------------------
def _conv_bn_relu_kernel(x_ref, w_ref, scale_ref, shift_ref, o_ref, acc_ref,
                         *, kh, kw, dil, th, wp8):
    k_step = pl.program_id(2)
    m_tile = th * wp8
    span = (th + (kh - 1) * dil) * wp8          # rows covering all dy windows

    @pl.when(k_step == 0)
    def _init():
        acc_ref[...] = jnp.zeros_like(acc_ref)

    xb = x_ref[0]                               # (rows_in, wp8, TCin), bf16
    x2d = xb.reshape(-1, xb.shape[-1])          # free: wp8 % 8 == 0

    acc = acc_ref[...]
    for dx in range(kw):
        # One (possibly sublane-unaligned) shift per dx, not per (dy, dx) tap.
        col = x2d[dx * dil:dx * dil + span, :]
        for dy in range(kh):
            start = dy * dil * wp8              # multiple of 8 -> free slice
            win = col[start:start + m_tile, :]  # (m_tile, TCin)
            acc = acc + jnp.dot(win, w_ref[dy, dx],
                                preferred_element_type=jnp.float32)
    acc_ref[...] = acc

    @pl.when(k_step == pl.num_programs(2) - 1)
    def _epilogue():
        y = acc * scale_ref[...] + shift_ref[...]          # BN affine, f32
        o_ref[0] = jnp.maximum(y, 0.0).astype(o_ref.dtype)  # ReLU, bf16 store


def basic_conv2d(x_nchw, params, *, stride=1, padding=1, dilation=1,
                 m_tile_target=2048):
    """BasicConv2d.forward: Conv2d(bias=False) -> BatchNorm2d(eval) -> ReLU.
    NCHW f32 input, NCHW f32 output (matches the PyTorch module)."""
    if stride != 1:
        # TODO(synk): strided conv needs a strided window gather; not emitted.
        raise NotImplementedError("only stride=1 is implemented")

    w_oihw = params["w"]                        # (Cout, Cin, KH, KW)
    cout, cin, kh, kw = w_oihw.shape
    b, cin_x, h, w = x_nchw.shape
    assert cin_x == cin

    wp = w + 2 * padding
    h_out = h + 2 * padding - dilation * (kh - 1)
    w_out = wp - dilation * (kw - 1)
    assert h_out > 0 and w_out > 0
    wp8 = _round_up(wp, 8)                      # accumulate at padded width

    # --- spatial (M) tiling with H halo -----------------------------------
    th = max(1, min(h_out, m_tile_target // wp8))   # output rows per tile
    h_out_pad = _round_up(h_out, th)
    n_tiles = h_out_pad // th
    rows_in = th + dilation * (kh - 1) + 1      # +1 so the dx shift stays in-slab
    m_tile = th * wp8

    # --- channel tiling -----------------------------------------------------
    tn = 256 if (cout % 256 == 0) else 128      # wider N tile for v6e/v7x MXU
    if cin % 256 == 0:
        tcin = 256
    elif cin > 128:
        tcin = 128
    else:
        tcin = cin                              # TODO(synk): fold taps for Cin=3
    cout_pad = _round_up(cout, tn)
    cin_pad = _round_up(cin, tcin)

    # --- activations: NCHW -> NHWC, bf16, pad once, overlapped row tiles ----
    x = jnp.transpose(x_nchw, (0, 2, 3, 1)).astype(jnp.bfloat16)
    extra_rows = (h_out_pad - h_out) + 1
    xpad = jnp.pad(x, ((0, 0),
                       (padding, padding + extra_rows),
                       (padding, padding + (wp8 - wp)),
                       (0, cin_pad - cin)))
    row_idx = (jnp.arange(n_tiles)[:, None] * th
               + jnp.arange(rows_in)[None, :])            # (n_tiles, rows_in)
    x_tiles = xpad[:, row_idx]                  # (B, n_tiles, rows_in, wp8, Cin_pad)
    x_tiles = x_tiles.reshape(b * n_tiles, rows_in, wp8, cin_pad)

    # --- weights OIHW -> HWIO, bf16, padded ---------------------------------
    w_hwio = jnp.transpose(w_oihw, (2, 3, 1, 0)).astype(jnp.bfloat16)
    w_hwio = jnp.pad(w_hwio, ((0, 0), (0, 0),
                              (0, cin_pad - cin), (0, cout_pad - cout)))

    # --- eval-mode BatchNorm folded into per-channel affine (f32) -----------
    scale = (params["bn_gamma"] /
             jnp.sqrt(params["bn_var"] + _BN_EPS)).astype(jnp.float32)
    shift = (params["bn_beta"] - params["bn_mean"] * scale).astype(jnp.float32)
    scale = jnp.pad(scale, (0, cout_pad - cout))[None, :]
    shift = jnp.pad(shift, (0, cout_pad - cout))[None, :]

    grid = (b * n_tiles, cout_pad // tn, cin_pad // tcin)

    kernel = functools.partial(_conv_bn_relu_kernel, kh=kh, kw=kw,
                               dil=dilation, th=th, wp8=wp8)
    out = pl.pallas_call(
        kernel,
        out_shape=jax.ShapeDtypeStruct((b * n_tiles, m_tile, cout_pad),
                                       jnp.bfloat16),
        grid_spec=pltpu.PrefetchScalarGridSpec(
            num_scalar_prefetch=0,
            grid=grid,
            in_specs=[
                pl.BlockSpec((1, rows_in, wp8, tcin),
                             lambda bi, j, k: (bi, 0, 0, k)),
                pl.BlockSpec((kh, kw, tcin, tn),
                             lambda bi, j, k: (0, 0, k, j)),
                pl.BlockSpec((1, tn), lambda bi, j, k: (0, j)),
                pl.BlockSpec((1, tn), lambda bi, j, k: (0, j)),
            ],
            out_specs=pl.BlockSpec((1, m_tile, tn),
                                   lambda bi, j, k: (bi, 0, j)),
            scratch_shapes=[pltpu.VMEM((m_tile, tn), jnp.float32)],
        ),
        compiler_params=pltpu.CompilerParams(
            dimension_semantics=("parallel", "parallel", "arbitrary"),
            vmem_limit_bytes=32 * 1024 * 1024,
        ),
    )(x_tiles, w_hwio, scale, shift)

    out = out.reshape(b, n_tiles * th, wp8, cout_pad)
    out = out[:, :h_out, :w_out, :cout]
    return jnp.transpose(out.astype(jnp.float32), (0, 3, 1, 2))   # NHWC -> NCHW


# ---------------------------------------------------------------------------
# Pure-JAX reference (same bf16 operand rounding, f32 accumulation).
# ---------------------------------------------------------------------------
def _reference_basic_conv2d(x_nchw, params, *, padding=1, dilation=1):
    x = jnp.transpose(x_nchw, (0, 2, 3, 1)).astype(jnp.bfloat16).astype(jnp.float32)
    wt = jnp.transpose(params["w"], (2, 3, 1, 0)).astype(jnp.bfloat16).astype(jnp.float32)
    kh, kw = wt.shape[0], wt.shape[1]
    xp = jnp.pad(x, ((0, 0), (padding, padding), (padding, padding), (0, 0)))
    h_out = xp.shape[1] - dilation * (kh - 1)
    w_out = xp.shape[2] - dilation * (kw - 1)
    acc = jnp.zeros((x.shape[0], h_out, w_out, wt.shape[-1]), jnp.float32)
    for dy in range(kh):
        for dx in range(kw):
            win = xp[:, dy * dilation:dy * dilation + h_out,
                     dx * dilation:dx * dilation + w_out, :]
            acc = acc + jnp.einsum("bhwc,co->bhwo", win, wt[dy, dx])
    scale = params["bn_gamma"] / jnp.sqrt(params["bn_var"] + _BN_EPS)
    shift = params["bn_beta"] - params["bn_mean"] * scale
    y = jnp.maximum(acc * scale + shift, 0.0)
    return jnp.transpose(y, (0, 3, 1, 2))


if __name__ == "__main__":
    B, CIN, COUT, H, W = 2, 16, 32, 16, 16
    key = jax.random.PRNGKey(0)
    kx, kw_, kg, kb, km, kv = jax.random.split(key, 6)

    x = jax.random.normal(kx, (B, CIN, H, W), jnp.float32)
    params = dict(
        w=0.1 * jax.random.normal(kw_, (COUT, CIN, 3, 3), jnp.float32),
        bn_gamma=1.0 + 0.1 * jax.random.normal(kg, (COUT,), jnp.float32),
        bn_beta=0.1 * jax.random.normal(kb, (COUT,), jnp.float32),
        # eval-mode BatchNorm running statistics
        bn_mean=0.05 * jax.random.normal(km, (COUT,), jnp.float32),
        bn_var=0.5 + jax.random.uniform(kv, (COUT,), jnp.float32),
    )

    fwd = jax.jit(functools.partial(basic_conv2d, padding=1, dilation=1))
    y = fwd(x, params)
    jax.block_until_ready(y)
    assert y.shape == (B, COUT, H, W), y.shape

    y_ref = _reference_basic_conv2d(x, params, padding=1, dilation=1)
    err = float(jnp.max(jnp.abs(y - y_ref)))
    assert err < 5e-2, f"max abs err vs reference: {err}"
    print("KERNEL_OK")
</pallas_src>

<mosaic_0001>
module attributes {stable_mosaic.version = 11 : i64} {
  func.func @_conv_bn_relu_kernel(%arg0: i32, %arg1: i32, %arg2: i32, %arg3: memref<1x19x24x16xbf16, #tpu.memory_space<vmem>>, %arg4: memref<3x3x16x128xbf16, #tpu.memory_space<vmem>>, %arg5: memref<1x128xf32, #tpu.memory_space<vmem>>, %arg6: memref<1x128xf32, #tpu.memory_space<vmem>>, %arg7: memref<1x384x128xbf16, #tpu.memory_space<vmem>>, %arg8: memref<384x128xf32, #tpu.memory_space<vmem>>) attributes {dimension_semantics = [#tpu.dimension_semantics<parallel>, #tpu.dimension_semantics<parallel>, #tpu.dimension_semantics<arbitrary>], iteration_bounds = array<i64: 2, 1, 1>, scalar_prefetch = 0 : i64, scratch_operands = 1 : i64, tpu.core_type = #tpu.core_type<tc>, window_params = [{transform_indices = @transform_0, window_bounds = array<i64: 1, 19, 24, 16>}, {transform_indices = @transform_1, window_bounds = array<i64: 3, 3, 16, 128>}, {transform_indices = @transform_2, window_bounds = array<i64: 1, 128>}, {transform_indices = @transform_3, window_bounds = array<i64: 1, 128>}, {transform_indices = @transform_4, window_bounds = array<i64: 1, 384, 128>}]} {
    %c0_i32 = arith.constant 0 : i32
    %0 = arith.cmpi eq, %arg2, %c0_i32 : i32
    %1 = arith.extui %0 : i1 to i32
    %c0_i32_0 = arith.constant 0 : i32
    %2 = arith.cmpi ne, %1, %c0_i32_0 : i32
    scf.if %2 {
      %cst_52 = arith.constant 0.000000e+00 : f32
      %59 = vector.broadcast %cst_52 : f32 to vector<384x128xf32>
      %c0_53 = arith.constant 0 : index
      %c0_54 = arith.constant 0 : index
      %60 = vector.load %arg8[%c0_53, %c0_54] : memref<384x128xf32, #tpu.memory_space<vmem>>, vector<384x128xf32>
      tpu.vector_store %arg8[%c0_53, %c0_54], %59 {strides = array<i32>} : memref<384x128xf32, #tpu.memory_space<vmem>>, vector<384x128xf32>,
    } else {
    }
    %c0 = arith.constant 0 : index
    %c0_1 = arith.constant 0 : index
    %c0_2 = arith.constant 0 : index
    %c0_3 = arith.constant 0 : index
    %3 = vector.load %arg3[%c0, %c0_1, %c0_2, %c0_3] : memref<1x19x24x16xbf16, #tpu.memory_space<vmem>>, vector<1x19x24x16xbf16>
    %4 = vector.shape_cast %3 : vector<1x19x24x16xbf16> to vector<19x24x16xbf16>
    %5 = vector.shape_cast %4 : vector<19x24x16xbf16> to vector<456x16xbf16>
    %c0_4 = arith.constant 0 : index
    %c0_5 = arith.constant 0 : index
    %6 = vector.load %arg8[%c0_4, %c0_5] : memref<384x128xf32, #tpu.memory_space<vmem>>, vector<384x128xf32>
    %7 = vector.extract_strided_slice %5 {offsets = [0, 0], sizes = [432, 16], strides = [1, 1]} : vector<456x16xbf16> to vector<432x16xbf16>
    %8 = vector.extract_strided_slice %7 {offsets = [0, 0], sizes = [384, 16], strides = [1, 1]} : vector<432x16xbf16> to vector<384x16xbf16>
    %c0_6 = arith.constant 0 : index
    %c0_7 = arith.constant 0 : index
    %c0_8 = arith.constant 0 : index
    %c0_9 = arith.constant 0 : index
    %9 = vector.load %arg4[%c0_6, %c0_7, %c0_8, %c0_9] : memref<3x3x16x128xbf16, #tpu.memory_space<vmem>>, vector<1x1x16x128xbf16>
    %10 = vector.shape_cast %9 : vector<1x1x16x128xbf16> to vector<16x128xbf16>
    %cst = arith.constant dense<0.000000e+00> : vector<384x128xf32>
    %11 = tpu.matmul %8, %10, %cst {dimension_numbers = #tpu.dot_dimension_numbers<[1], [0], [0], [1], [0, 0, 1, 1], [], []>} : vector<384x16xbf16>, vector<16x128xbf16>, vector<384x128xf32> -> vector<384x128xf32>
    %12 = arith.addf %6, %11 : vector<384x128xf32>
    %13 = vector.extract_strided_slice %7 {offsets = [24, 0], sizes = [384, 16], strides = [1, 1]} : vector<432x16xbf16> to vector<384x16xbf16>
    %c1 = arith.constant 1 : index
    %c0_10 = arith.constant 0 : index
    %c0_11 = arith.constant 0 : index
    %c0_12 = arith.constant 0 : index
    %14 = vector.load %arg4[%c1, %c0_10, %c0_11, %c0_12] : memref<3x3x16x128xbf16, #tpu.memory_space<vmem>>, vector<1x1x16x128xbf16>
    %15 = vector.shape_cast %14 : vector<1x1x16x128xbf16> to vector<16x128xbf16>
    %cst_13 = arith.constant dense<0.000000e+00> : vector<384x128xf32>
    %16 = tpu.matmul %13, %15, %cst_13 {dimension_numbers = #tpu.dot_dimension_numbers<[1], [0], [0], [1], [0, 0, 1, 1], [], []>} : vector<384x16xbf16>, vector<16x128xbf16>, vector<384x128xf32> -> vector<384x128xf32>
    %17 = arith.addf %12, %16 : vector<384x128xf32>
    %18 = vector.extract_strided_slice %7 {offsets = [48, 0], sizes = [384, 16], strides = [1, 1]} : vector<432x16xbf16> to vector<384x16xbf16>
    %c2 = arith.constant 2 : index
    %c0_14 = arith.constant 0 : index
    %c0_15 = arith.constant 0 : index
    %c0_16 = arith.constant 0 : index
    %19 = vector.load %arg4[%c2, %c0_14, %c0_15, %c0_16] : memref<3x3x16x128xbf16, #tpu.memory_space<vmem>>, vector<1x1x16x128xbf16>
    %20 = vector.shape_cast %19 : vector<1x1x16x128xbf16> to vector<16x128xbf16>
    %cst_17 = arith.constant dense<0.000000e+00> : vector<384x128xf32>
    %21 = tpu.matmul %18, %20, %cst_17 {dimension_numbers = #tpu.dot_dimension_numbers<[1], [0], [0], [1], [0, 0, 1, 1], [], []>} : vector<384x16xbf16>, vector<16x128xbf16>, vector<384x128xf32> -> vector<384x128xf32>
    %22 = arith.addf %17, %21 : vector<384x128xf32>
    %23 = vector.extract_strided_slice %5 {offsets = [1, 0], sizes = [432, 16], strides = [1, 1]} : vector<456x16xbf16> to vector<432x16xbf16>
    %24 = vector.extract_strided_slice %23 {offsets = [0, 0], sizes = [384, 16], strides = [1, 1]} : vector<432x16xbf16> to vector<384x16xbf16>
    %c0_18 = arith.constant 0 : index
    %c1_19 = arith.constant 1 : index
    %c0_20 = arith.constant 0 : index
    %c0_21 = arith.constant 0 : index
    %25 = vector.load %arg4[%c0_18, %c1_19, %c0_20, %c0_21] : memref<3x3x16x128xbf16, #tpu.memory_space<vmem>>, vector<1x1x16x128xbf16>
    %26 = vector.shape_cast %25 : vector<1x1x16x128xbf16> to vector<16x128xbf16>
    %cst_22 = arith.constant dense<0.000000e+00> : vector<384x128xf32>
    %27 = tpu.matmul %24, %26, %cst_22 {dimension_numbers = #tpu.dot_dimension_numbers<[1], [0], [0], [1], [0, 0, 1, 1], [], []>} : vector<384x16xbf16>, vector<16x128xbf16>, vector<384x128xf32> -> vector<384x128xf32>
    %28 = arith.addf %22, %27 : vector<384x128xf32>
    %29 = vector.extract_strided_slice %23 {offsets = [24, 0], sizes = [384, 16], strides = [1, 1]} : vector<432x16xbf16> to vector<384x16xbf16>
    %c1_23 = arith.constant 1 : index
    %c1_24 = arith.constant 1 : index
    %c0_25 = arith.constant 0 : index
    %c0_26 = arith.constant 0 : index
    %30 = vector.load %arg4[%c1_23, %c1_24, %c0_25, %c0_26] : memref<3x3x16x128xbf16, #tpu.memory_space<vmem>>, vector<1x1x16x128xbf16>
    %31 = vector.shape_cast %30 : vector<1x1x16x128xbf16> to vector<16x128xbf16>
    %cst_27 = arith.constant dense<0.000000e+00> : vector<384x128xf32>
    %32 = tpu.matmul %29, %31, %cst_27 {dimension_numbers = #tpu.dot_dimension_numbers<[1], [0], [0], [1], [0, 0, 1, 1], [], []>} : vector<384x16xbf16>, vector<16x128xbf16>, vector<384x128xf32> -> vector<384x128xf32>
    %33 = arith.addf %28, %32 : vector<384x128xf32>
    %34 = vector.extract_strided_slice %23 {offsets = [48, 0], sizes = [384, 16], strides = [1, 1]} : vector<432x16xbf16> to vector<384x16xbf16>
    %c2_28 = arith.constant 2 : index
    %c1_29 = arith.constant 1 : index
    %c0_30 = arith.constant 0 : index
    %c0_31 = arith.constant 0 : index
    %35 = vector.load %arg4[%c2_28, %c1_29, %c0_30, %c0_31] : memref<3x3x16x128xbf16, #tpu.memory_space<vmem>>, vector<1x1x16x128xbf16>
    %36 = vector.shape_cast %35 : vector<1x1x16x128xbf16> to vector<16x128xbf16>
    %cst_32 = arith.constant dense<0.000000e+00> : vector<384x128xf32>
    %37 = tpu.matmul %34, %36, %cst_32 {dimension_numbers = #tpu.dot_dimension_numbers<[1], [0], [0], [1], [0, 0, 1, 1], [], []>} : vector<384x16xbf16>, vector<16x128xbf16>, vector<384x128xf32> -> vector<384x128xf32>
    %38 = arith.addf %33, %37 : vector<384x128xf32>
    %39 = vector.extract_strided_slice %5 {offsets = [2, 0], sizes = [432, 16], strides = [1, 1]} : vector<456x16xbf16> to vector<432x16xbf16>
    %40 = vector.extract_strided_slice %39 {offsets = [0, 0], sizes = [384, 16], strides = [1, 1]} : vector<432x16xbf16> to vector<384x16xbf16>
    %c0_33 = arith.constant 0 : index
    %c2_34 = arith.constant 2 : index
    %c0_35 = arith.constant 0 : index
    %c0_36 = arith.constant 0 : index
    %41 = vector.load %arg4[%c0_33, %c2_34, %c0_35, %c0_36] : memref<3x3x16x128xbf16, #tpu.memory_space<vmem>>, vector<1x1x16x128xbf16>
    %42 = vector.shape_cast %41 : vector<1x1x16x128xbf16> to vector<16x128xbf16>
    %cst_37 = arith.constant dense<0.000000e+00> : vector<384x128xf32>
    %43 = tpu.matmul %40, %42, %cst_37 {dimension_numbers = #tpu.dot_dimension_numbers<[1], [0], [0], [1], [0, 0, 1, 1], [], []>} : vector<384x16xbf16>, vector<16x128xbf16>, vector<384x128xf32> -> vector<384x128xf32>
    %44 = arith.addf %38, %43 : vector<384x128xf32>
    %45 = vector.extract_strided_slice %39 {offsets = [24, 0], sizes = [384, 16], strides = [1, 1]} : vector<432x16xbf16> to vector<384x16xbf16>
    %c1_38 = arith.constant 1 : index
    %c2_39 = arith.constant 2 : index
    %c0_40 = arith.constant 0 : index
    %c0_41 = arith.constant 0 : index
    %46 = vector.load %arg4[%c1_38, %c2_39, %c0_40, %c0_41] : memref<3x3x16x128xbf16, #tpu.memory_space<vmem>>, vector<1x1x16x128xbf16>
    %47 = vector.shape_cast %46 : vector<1x1x16x128xbf16> to vector<16x128xbf16>
    %cst_42 = arith.constant dense<0.000000e+00> : vector<384x128xf32>
    %48 = tpu.matmul %45, %47, %cst_42 {dimension_numbers = #tpu.dot_dimension_numbers<[1], [0], [0], [1], [0, 0, 1, 1], [], []>} : vector<384x16xbf16>, vector<16x128xbf16>, vector<384x128xf32> -> vector<384x128xf32>
    %49 = arith.addf %44, %48 : vector<384x128xf32>
    %50 = vector.extract_strided_slice %39 {offsets = [48, 0], sizes = [384, 16], strides = [1, 1]} : vector<432x16xbf16> to vector<384x16xbf16>
    %c2_43 = arith.constant 2 : index
    %c2_44 = arith.constant 2 : index
    %c0_45 = arith.constant 0 : index
    %c0_46 = arith.constant 0 : index
    %51 = vector.load %arg4[%c2_43, %c2_44, %c0_45, %c0_46] : memref<3x3x16x128xbf16, #tpu.memory_space<vmem>>, vector<1x1x16x128xbf16>
    %52 = vector.shape_cast %51 : vector<1x1x16x128xbf16> to vector<16x128xbf16>
    %cst_47 = arith.constant dense<0.000000e+00> : vector<384x128xf32>
    %53 = tpu.matmul %50, %52, %cst_47 {dimension_numbers = #tpu.dot_dimension_numbers<[1], [0], [0], [1], [0, 0, 1, 1], [], []>} : vector<384x16xbf16>, vector<16x128xbf16>, vector<384x128xf32> -> vector<384x128xf32>
    %54 = arith.addf %49, %53 : vector<384x128xf32>
    %c0_48 = arith.constant 0 : index
    %c0_49 = arith.constant 0 : index
    %55 = vector.load %arg8[%c0_48, %c0_49] : memref<384x128xf32, #tpu.memory_space<vmem>>, vector<384x128xf32>
    tpu.vector_store %arg8[%c0_48, %c0_49], %54 {strides = array<i32>} : memref<384x128xf32, #tpu.memory_space<vmem>>, vector<384x128xf32>,
    %c0_i32_50 = arith.constant 0 : i32
    %56 = arith.cmpi eq, %arg2, %c0_i32_50 : i32
    %57 = arith.extui %56 : i1 to i32
    %c0_i32_51 = arith.constant 0 : i32
    %58 = arith.cmpi ne, %57, %c0_i32_51 : i32
    scf.if %58 {
      %c0_52 = arith.constant 0 : index
      %c0_53 = arith.constant 0 : index
      %59 = vector.load %arg5[%c0_52, %c0_53] : memref<1x128xf32, #tpu.memory_space<vmem>>, vector<1x128xf32>
      %60 = vector.broadcast %59 : vector<1x128xf32> to vector<384x128xf32>
      %61 = arith.mulf %54, %60 : vector<384x128xf32>
      %c0_54 = arith.constant 0 : index
      %c0_55 = arith.constant 0 : index
      %62 = vector.load %arg6[%c0_54, %c0_55] : memref<1x128xf32, #tpu.memory_space<vmem>>, vector<1x128xf32>
      %63 = vector.broadcast %62 : vector<1x128xf32> to vector<384x128xf32>
      %64 = arith.addf %61, %63 : vector<384x128xf32>
      %cst_56 = arith.constant 0.000000e+00 : f32
      %65 = vector.broadcast %cst_56 : f32 to vector<384x128xf32>
      %66 = arith.maximumf %64, %65 : vector<384x128xf32>
      %67 = arith.truncf %66 : vector<384x128xf32> to vector<384x128xbf16>
      %c0_57 = arith.constant 0 : index
      %c0_58 = arith.constant 0 : index
      %c0_59 = arith.constant 0 : index
      %68 = vector.load %arg7[%c0_57, %c0_58, %c0_59] : memref<1x384x128xbf16, #tpu.memory_space<vmem>>, vector<1x384x128xbf16>
      %69 = vector.shape_cast %68 : vector<1x384x128xbf16> to vector<384x128xbf16>
      %70 = vector.shape_cast %67 : vector<384x128xbf16> to vector<1x384x128xbf16>
      tpu.vector_store %arg7[%c0_57, %c0_58, %c0_59], %70 {strides = array<i32>} : memref<1x384x128xbf16, #tpu.memory_space<vmem>>, vector<1x384x128xbf16>,
    } else {
    }
    return
  }
  func.func @transform_0(%arg0: i32, %arg1: i32, %arg2: i32) -> (i32, i32, i32, i32) {
    %c0_i32 = arith.constant 0 : i32
    %c0_i32_0 = arith.constant 0 : i32
    %c0_i32_1 = arith.constant 0 : i32
    return %arg0, %c0_i32, %c0_i32_0, %arg2 : i32, i32, i32, i32
  }
  func.func @transform_1(%arg0: i32, %arg1: i32, %arg2: i32) -> (i32, i32, i32, i32) {
    %c0_i32 = arith.constant 0 : i32
    %c0_i32_0 = arith.constant 0 : i32
    %c0_i32_1 = arith.constant 0 : i32
    return %c0_i32, %c0_i32_0, %arg2, %arg1 : i32, i32, i32, i32
  }
  func.func @transform_2(%arg0: i32, %arg1: i32, %arg2: i32) -> (i32, i32) {
    %c0_i32 = arith.constant 0 : i32
    %c0_i32_0 = arith.constant 0 : i32
    return %c0_i32, %arg1 : i32, i32
  }
  func.func @transform_3(%arg0: i32, %arg1: i32, %arg2: i32) -> (i32, i32) {
    %c0_i32 = arith.constant 0 : i32
    %c0_i32_0 = arith.constant 0 : i32
    return %c0_i32, %arg1 : i32, i32
  }
  func.func @transform_4(%arg0: i32, %arg1: i32, %arg2: i32) -> (i32, i32, i32) {
    %c0_i32 = arith.constant 0 : i32
    %c0_i32_0 = arith.constant 0 : i32
    return %arg0, %c0_i32, %arg1 : i32, i32, i32
  }
}

</mosaic_0001>

<llo_original>
// kernel: basic_conv2d.1
$region0: #{basic_conv2d.1}
  #allocation0 [shape = 'u32[]', space=smem, size = 0x4, offset = 0x4, fixed_abs, tag = 'smem constant byte address 0x4 - core index']
  #allocation1 [shape = 'u32[144,128]{1,0:T(1,128)}', space=vmem, size = 0x12000, scoped, tag = 'internal scratch']
  #allocation2 [shape = 'f32[384,128]{1,0:T(8,128)}', space=vmem, size = 0x30000, scoped, tag = 'scratch operand']
  %s0 = inlined_call_operand.vmem [shape: bf16[2,19,24,16], index: 0, kind: input, shape index: {}]
  %s1 = inlined_call_operand.vmem [shape: bf16[3,3,16,128], index: 1, kind: input, shape index: {}]
  %s2 = inlined_call_operand.vmem [shape: f32[1,128], index: 2, kind: input, shape index: {}]
  %s3 = inlined_call_operand.vmem [shape: f32[1,128], index: 3, kind: input, shape index: {}]
  %s4 = inlined_call_operand.vmem [shape: bf16[2,384,128], index: 4, kind: output, shape index: {}]
  %s5 = sld [smem:[#allocation0]]
  $region57: #{basic_conv2d.1} parent=0
    _
  %s7 = ssub.s32 1, %s5
  %s8 = scalar_select 0, %s7, %s5
  loop: start=0, step=1, limit=4
  $region2: #{basic_conv2d.1} parent=0 // loop_pre_header
    _
  $region3: #{basic_conv2d.1} parent=0 // loop_header
    %s10 = sphi 0, %s14
    %p11 = scmp.ge.s32.totalorder %s10, 4
    %s17 = sphi 0, %s36
    %s18 = sphi 0, %s32
    %s19 = sphi 0, %s28
    %s20 = sphi 0, %s17
    %s21 = sphi 0, %s18
    %s22 = sphi 0, %s19
    %s23 = sphi 0, %s20
    %s24 = sphi 0, %s21
    %s25 = sphi 0, %s22
    %s41 = sphi 0, %s43
    %s44 = sphi 0, %s41
    %s45 = sphi 0, %s44
    %s61 = sphi 0, %s45
    %s69 = sphi 0, %s71
    %s72 = sphi 0, %s69
    %s73 = sphi 0, %s72
    %s89 = sphi 0, %s73
    %s95 = sphi 0, %s97
    %s98 = sphi 0, %s95
    %s99 = sphi 0, %s98
    %s115 = sphi 0, %s99
    %s121 = sphi 0, %s123
    %s124 = sphi 0, %s121
    %s125 = sphi 0, %s124
    %s141 = sphi 0, %s125
    %s149 = sphi 0, %s151
    %s152 = sphi 0, %s149
    %s153 = sphi 0, %s152
    %s169 = sphi 0, %s153
  $region4: #{basic_conv2d.1} parent=0 // loop_header_branch
    %13 = sbr.rel (%p11) target = $region8
  $region5: #{basic_conv2d.1} parent=0 // loop_body
    %s15 = ssub.s32 %s10, 1
    %s16 = ssub.s32 %s10, 2
    %s26 = sadd.s32 1, %s19
    %p27 = scmp.ge.s32.totalorder %s26, 1
    %s28 = scalar_select %p27, 0, %s26
    %s29 = sadd.s32 1, %s18
    %s30 = scalar_select %p27, %s29, %s18
    %p31 = scmp.ge.s32.totalorder %s30, 1
    %s32 = scalar_select %p31, 0, %s30
    %s33 = sadd.s32 1, %s17
    %s34 = scalar_select %p31, %s33, %s17
    %p35 = scmp.ge.s32.totalorder %s34, 2
    %s36 = scalar_select %p35, 0, %s34
    %s37 = ssub.s32 %s17, %s36
    %s38 = ssub.s32 %s19, %s28
    %s39 = sor.u32 %s37, %s38
    %p40 = scmp.eq.s32.totalorder %s39, 0
    %s42 = sadd.s32 %s41, 1
    %s43 = scalar_select %p40, %s41, %s42
    %p46 = pneg %p40
    %p47 = scmp.eq.s32.totalorder %s10, 1
    %p48 = por %p46, %p47
    %p49 = scmp.ne.s32.totalorder %s41, %s44
    %p50 = scmp.eq.s32.totalorder %s10, 0
    %p51 = por %p49, %p50
    %p52 = scmp.ne.s32.totalorder %s41, %s44
    %p53 = scmp.eq.s32.totalorder %s15, 1
    %p54 = por %p52, %p53
    %p55 = scmp.ne.s32.totalorder %s44, %s45
    %p56 = scmp.eq.s32.totalorder %s15, 0
    %p57 = por %p55, %p56
    %p58 = scmp.ne.s32.totalorder %s44, %s45
    %p59 = scmp.eq.s32.totalorder %s16, 1
    %p60 = por %p58, %p59
    %p62 = scmp.ne.s32.totalorder %s45, %s61
    %p63 = scmp.eq.s32.totalorder %s16, 0
    %p64 = por %p62, %p63
    %s65 = ssub.s32 %s19, %s28
    %s66 = ssub.s32 %s18, %s32
    %s67 = sor.u32 %s65, %s66
    %p68 = scmp.eq.s32.totalorder %s67, 0
    %s70 = sadd.s32 %s69, 1
    %s71 = scalar_select %p68, %s69, %s70
    %p74 = pneg %p68
    %p75 = scmp.eq.s32.totalorder %s10, 1
    %p76 = por %p74, %p75
    %p77 = scmp.ne.s32.totalorder %s69, %s72
    %p78 = scmp.eq.s32.totalorder %s10, 0
    %p79 = por %p77, %p78
    %p80 = scmp.ne.s32.totalorder %s69, %s72
    %p81 = scmp.eq.s32.totalorder %s15, 1
    %p82 = por %p80, %p81
    %p83 = scmp.ne.s32.totalorder %s72, %s73
    %p84 = scmp.eq.s32.totalorder %s15, 0
    %p85 = por %p83, %p84
    %p86 = scmp.ne.s32.totalorder %s72, %s73
    %p87 = scmp.eq.s32.totalorder %s16, 1
    %p88 = por %p86, %p87
    %p90 = scmp.ne.s32.totalorder %s73, %s89
    %p91 = scmp.eq.s32.totalorder %s16, 0
    %p92 = por %p90, %p91
    %s93 = ssub.s32 %s18, %s32
    %p94 = scmp.eq.s32.totalorder %s93, 0
    %s96 = sadd.s32 %s95, 1
    %s97 = scalar_select %p94, %s95, %s96
    %p100 = pneg %p94
    %p101 = scmp.eq.s32.totalorder %s10, 1
    %p102 = por %p100, %p101
    %p103 = scmp.ne.s32.totalorder %s95, %s98
    %p104 = scmp.eq.s32.totalorder %s10, 0
    %p105 = por %p103, %p104
    %p106 = scmp.ne.s32.totalorder %s95, %s98
    %p107 = scmp.eq.s32.totalorder %s15, 1
    %p108 = por %p106, %p107
    %p109 = scmp.ne.s32.totalorder %s98, %s99
    %p110 = scmp.eq.s32.totalorder %s15, 0
    %p111 = por %p109, %p110
    %p112 = scmp.ne.s32.totalorder %s98, %s99
    %p113 = scmp.eq.s32.totalorder %s16, 1
    %p114 = por %p112, %p113
    %p116 = scmp.ne.s32.totalorder %s99, %s115
    %p117 = scmp.eq.s32.totalorder %s16, 0
    %p118 = por %p116, %p117
    %s119 = ssub.s32 %s18, %s32
    %p120 = scmp.eq.s32.totalorder %s119, 0
    %s122 = sadd.s32 %s121, 1
    %s123 = scalar_select %p120, %s121, %s122
    %p126 = pneg %p120
    %p127 = scmp.eq.s32.totalorder %s10, 1
    %p128 = por %p126, %p127
    %p129 = scmp.ne.s32.totalorder %s121, %s124
    %p130 = scmp.eq.s32.totalorder %s10, 0
    %p131 = por %p129, %p130
    %p132 = scmp.ne.s32.totalorder %s121, %s124
    %p133 = scmp.eq.s32.totalorder %s15, 1
    %p134 = por %p132, %p133
    %p135 = scmp.ne.s32.totalorder %s124, %s125
    %p136 = scmp.eq.s32.totalorder %s15, 0
    %p137 = por %p135, %p136
    %p138 = scmp.ne.s32.totalorder %s124, %s125
    %p139 = scmp.eq.s32.totalorder %s16, 1
    %p140 = por %p138, %p139
    %p142 = scmp.ne.s32.totalorder %s125, %s141
    %p143 = scmp.eq.s32.totalorder %s16, 0
    %p144 = por %p142, %p143
    %s145 = ssub.s32 %s17, %s36
    %s146 = ssub.s32 %s18, %s32
    %s147 = sor.u32 %s145, %s146
    %p148 = scmp.eq.s32.totalorder %s147, 0
    %s150 = sadd.s32 %s149, 1
    %s151 = scalar_select %p148, %s149, %s150
    %p154 = pneg %p148
    %p155 = scmp.eq.s32.totalorder %s10, 1
    %p156 = por %p154, %p155
    %p157 = scmp.ne.s32.totalorder %s149, %s152
    %p158 = scmp.eq.s32.totalorder %s10, 0
    %p159 = por %p157, %p158
    %p160 = scmp.ne.s32.totalorder %s149, %s152
    %p161 = scmp.eq.s32.totalorder %s15, 1
    %p162 = por %p160, %p161
    %p163 = scmp.ne.s32.totalorder %s152, %s153
    %p164 = scmp.eq.s32.totalorder %s15, 0
    %p165 = por %p163, %p164
    %p166 = scmp.ne.s32.totalorder %s152, %s153
    %p167 = scmp.eq.s32.totalorder %s16, 1
    %p168 = por %p166, %p167
    %p170 = scmp.ne.s32.totalorder %s153, %s169
    %p171 = scmp.eq.s32.totalorder %s16, 0
    %p172 = por %p170, %p171
    %p173 = scmp.le.s32.totalorder 1, %s10
    %p174 = scmp.lt.s32.totalorder %s10, 3
    %p175 = pnand %p173, %p174
    %p176 = pneg %p175
    // Predicated region
    $region9: #{basic_conv2d.1} parent=5 // pred_check
      _
    $region10: #{basic_conv2d.1} parent=5 // pred_check_branch
      %178 = sbr.rel (%p175) target = $region12
    $region11: #{basic_conv2d.1} parent=5 // pred_region
      %s179 = ssub.s32 %s10, 1
      // Predicated region
      $region13: #{basic_conv2d.1} parent=11 // pred_check
        %p180 = pneg %p85
      $region14: #{basic_conv2d.1} parent=11 // pred_check_branch
        %182 = sbr.rel (%p180) target = $region16
      $region15: #{basic_conv2d.1} parent=11 // pred_region
        %s183 = smul.u32 2, %s22
        %p184 = scmp.lt.s32.totalorder %s183, 1
        %s185 = scalar_select %p184, %s183, 1
        %p186 = scmp.lt.s32.totalorder %s21, 0
        %s187 = scalar_select %p186, %s21, 0
        %s188 = sadd.s32 %s187, %s185
        %s189 = smul.addr %s188, 4
        %s190 = scalar_lea.vmem %s1, %s189
        %s191 = smul.u32 2, %s22
      $region16: #{basic_conv2d.1} parent=11 // pred_fallthru
        _
      // Predicated region
      $region17: #{basic_conv2d.1} parent=11 // pred_check
        %p192 = pneg %p111
      $region18: #{basic_conv2d.1} parent=11 // pred_check_branch
        %194 = sbr.rel (%p192) target = $region20
      $region19: #{basic_conv2d.1} parent=11 // pred_region
        %p195 = scmp.lt.s32.totalorder %s21, 0
        %s196 = scalar_select %p195, %s21, 0
        %s197 = scalar_lea.vmem %s2, %s196
      $region20: #{basic_conv2d.1} parent=11 // pred_fallthru
        _
      // Predicated region
      $region21: #{basic_conv2d.1} parent=11 // pred_check
        %p198 = pneg %p137
      $region22: #{basic_conv2d.1} parent=11 // pred_check_branch
        %200 = sbr.rel (%p198) target = $region24
      $region23: #{basic_conv2d.1} parent=11 // pred_region
        %p201 = scmp.lt.s32.totalorder %s21, 0
        %s202 = scalar_select %p201, %s21, 0
        %s203 = scalar_lea.vmem %s3, %s202
      $region24: #{basic_conv2d.1} parent=11 // pred_fallthru
        _
    $region12: #{basic_conv2d.1} parent=5 // pred_fallthru
      _
    %p204 = scmp.lt.s32.totalorder %s10, 2
    // Predicated region
    $region25: #{basic_conv2d.1} parent=5 // pred_check
      %p205 = pneg %p204
    $region26: #{basic_conv2d.1} parent=5 // pred_check_branch
      %207 = sbr.rel (%p205) target = $region28
    $region27: #{basic_conv2d.1} parent=5 // pred_region
      // Predicated region
      $region29: #{basic_conv2d.1} parent=27 // pred_check
        %p208 = pneg %p51
      $region30: #{basic_conv2d.1} parent=27 // pred_check_branch
        %210 = sbr.rel (%p208) target = $region32
      $region31: #{basic_conv2d.1} parent=27 // pred_region
        %p211 = scmp.lt.s32.totalorder %s17, 1
        %s212 = scalar_select %p211, %s17, 1
        %p213 = scmp.lt.s32.totalorder %s19, 0
        %s214 = scalar_select %p213, %s19, 0
        %s215 = smul.addr %s212, 57
        %s216 = sadd.s32 %s214, %s215
        %s217 = smul.addr %s216, 4
        %s218 = scalar_lea.vmem %s0, %s217
      $region32: #{basic_conv2d.1} parent=27 // pred_fallthru
        _
    $region28: #{basic_conv2d.1} parent=5 // pred_fallthru
      _
    %p219 = scmp.le.s32.totalorder 1, %s10
    %p220 = scmp.lt.s32.totalorder %s10, 3
    %p221 = pnand %p219, %p220
    %p222 = pneg %p221
    // Predicated region
    $region33: #{basic_conv2d.1} parent=5 // pred_check
      _
    $region34: #{basic_conv2d.1} parent=5 // pred_check_branch
      %224 = sbr.rel (%p221) target = $region36
    $region35: #{basic_conv2d.1} parent=5 // pred_region
      %s225 = ssub.s32 %s10, 1
      %p226 = scmp.lt.s32.totalorder %s20, 1
      %s227 = scalar_select %p226, %s20, 1
      %p228 = scmp.lt.s32.totalorder %s22, 0
      %s229 = scalar_select %p228, %s22, 0
      %s230 = smul.addr %s227, 57
      %s231 = sadd.s32 %s229, %s230
      %s232 = smul.addr %s231, 4
      %s233 = scalar_lea.vmem %s0, %s232
      %p234 = pneg %p57
      %p235 = pneg %p54
      %s236 = smul.u32 2, %s22
      %p237 = scmp.lt.s32.totalorder %s236, 1
      %s238 = scalar_select %p237, %s236, 1
      %p239 = scmp.lt.s32.totalorder %s21, 0
      %s240 = scalar_select %p239, %s21, 0
      %s241 = sadd.s32 %s240, %s238
      %s242 = smul.addr %s241, 4
      %s243 = scalar_lea.vmem %s1, %s242
      %p244 = pneg %p85
      %p245 = pneg %p82
      %p246 = scmp.lt.s32.totalorder %s21, 0
      %s247 = scalar_select %p246, %s21, 0
      %s248 = scalar_lea.vmem %s2, %s247
      %p249 = pneg %p111
      %p250 = pneg %p108
      %p251 = scmp.lt.s32.totalorder %s21, 0
      %s252 = scalar_select %p251, %s21, 0
      %s253 = scalar_lea.vmem %s3, %s252
      %p254 = pneg %p137
      %p255 = pneg %p134
      %p256 = pneg %p165
      %p257 = pneg %p162
      %p258 = scmp.lt.s32.totalorder %s20, 1
      %s259 = scalar_select %p258, %s20, 1
      %p260 = scmp.lt.s32.totalorder %s21, 0
      %s261 = scalar_select %p260, %s21, 0
      %s262 = smul.addr %s259, 48
      %s263 = sadd.s32 %s261, %s262
      %s264 = smul.addr %s263, 4
      %s265 = scalar_lea.vmem %s4, %s264
      %p266 = scmp.lt.s32.totalorder %s20, 1
      %s267 = scalar_select %p266, %s20, 1
      %p268 = scmp.lt.s32.totalorder %s22, 0
      %s269 = scalar_select %p268, %s22, 0
      %s270 = smul.addr %s267, 57
      %s271 = sadd.s32 %s269, %s270
      %s272 = smul.addr %s271, 4
      %s273 = scalar_lea.vmem %s0, %s272
      %s274 = smul.u32 2, %s22
      %p275 = scmp.lt.s32.totalorder %s274, 1
      %s276 = scalar_select %p275, %s274, 1
      %p277 = scmp.lt.s32.totalorder %s21, 0
      %s278 = scalar_select %p277, %s21, 0
      %s279 = sadd.s32 %s278, %s276
      %s280 = smul.addr %s279, 4
      %s281 = scalar_lea.vmem %s1, %s280
      %s282 = smul.u32 2, %s22
      %p283 = scmp.lt.s32.totalorder %s21, 0
      %s284 = scalar_select %p283, %s21, 0
      %s285 = scalar_lea.vmem %s2, %s284
      %p286 = scmp.lt.s32.totalorder %s21, 0
      %s287 = scalar_select %p286, %s21, 0
      %s288 = scalar_lea.vmem %s3, %s287
      %p289 = scmp.lt.s32.totalorder %s20, 1
      %s290 = scalar_select %p289, %s20, 1
      %p291 = scmp.lt.s32.totalorder %s21, 0
      %s292 = scalar_select %p291, %s21, 0
      %s293 = smul.addr %s290, 48
      %s294 = sadd.s32 %s292, %s293
      %s295 = smul.addr %s294, 4
      %s296 = scalar_lea.vmem %s4, %s295
      %p298 = scmp.eq.s32.totalorder %s22, 0
      // Predicated region
      $region37: #{basic_conv2d.1} parent=35 // pred_check
        %p299 = pneg %p298
      $region38: #{basic_conv2d.1} parent=35 // pred_check_branch
        %301 = sbr.rel (%p299) target = $region40
      $region39: #{basic_conv2d.1} parent=35 // pred_region
        %302 = vst [vmem:[#allocation2] sm:$0xff] 0.0
        %303 = vst [vmem:[#allocation2 + $0x8] sm:$0xff] 0.0
        %304 = vst [vmem:[#allocation2 + $0x10] sm:$0xff] 0.0
        %305 = vst [vmem:[#allocation2 + $0x18] sm:$0xff] 0.0
        %306 = vst [vmem:[#allocation2 + $0x20] sm:$0xff] 0.0
        %307 = vst [vmem:[#allocation2 + $0x28] sm:$0xff] 0.0
        %308 = vst [vmem:[#allocation2 + $0x30] sm:$0xff] 0.0
        %309 = vst [vmem:[#allocation2 + $0x38] sm:$0xff] 0.0
        %310 = vst [vmem:[#allocation2 + $0x40] sm:$0xff] 0.0
        %311 = vst [vmem:[#allocation2 + $0x48] sm:$0xff] 0.0
        %312 = vst [vmem:[#allocation2 + $0x50] sm:$0xff] 0.0
        %313 = vst [vmem:[#allocation2 + $0x58] sm:$0xff] 0.0
        %314 = vst [vmem:[#allocation2 + $0x60] sm:$0xff] 0.0
        %315 = vst [vmem:[#allocation2 + $0x68] sm:$0xff] 0.0
        %316 = vst [vmem:[#allocation2 + $0x70] sm:$0xff] 0.0
        %317 = vst [vmem:[#allocation2 + $0x78] sm:$0xff] 0.0
        %318 = vst [vmem:[#allocation2 + $0x80] sm:$0xff] 0.0
        %319 = vst [vmem:[#allocation2 + $0x88] sm:$0xff] 0.0
        %320 = vst [vmem:[#allocation2 + $0x90] sm:$0xff] 0.0
        %321 = vst [vmem:[#allocation2 + $0x98] sm:$0xff] 0.0
        %322 = vst [vmem:[#allocation2 + $0xa0] sm:$0xff] 0.0
        %323 = vst [vmem:[#allocation2 + $0xa8] sm:$0xff] 0.0
        %324 = vst [vmem:[#allocation2 + $0xb0] sm:$0xff] 0.0
        %325 = vst [vmem:[#allocation2 + $0xb8] sm:$0xff] 0.0
        %326 = vst [vmem:[#allocation2 + $0xc0] sm:$0xff] 0.0
        %327 = vst [vmem:[#allocation2 + $0xc8] sm:$0xff] 0.0
        %328 = vst [vmem:[#allocation2 + $0xd0] sm:$0xff] 0.0
        %329 = vst [vmem:[#allocation2 + $0xd8] sm:$0xff] 0.0
        %330 = vst [vmem:[#allocation2 + $0xe0] sm:$0xff] 0.0
        %331 = vst [vmem:[#allocation2 + $0xe8] sm:$0xff] 0.0
        %332 = vst [vmem:[#allocation2 + $0xf0] sm:$0xff] 0.0
        %333 = vst [vmem:[#allocation2 + $0xf8] sm:$0xff] 0.0
        %334 = vst [vmem:[#allocation2 + $0x100] sm:$0xff] 0.0
        %335 = vst [vmem:[#allocation2 + $0x108] sm:$0xff] 0.0
        %336 = vst [vmem:[#allocation2 + $0x110] sm:$0xff] 0.0
        %337 = vst [vmem:[#allocation2 + $0x118] sm:$0xff] 0.0
        %338 = vst [vmem:[#allocation2 + $0x120] sm:$0xff] 0.0
        %339 = vst [vmem:[#allocation2 + $0x128] sm:$0xff] 0.0
        %340 = vst [vmem:[#allocation2 + $0x130] sm:$0xff] 0.0
        %341 = vst [vmem:[#allocation2 + $0x138] sm:$0xff] 0.0
        %342 = vst [vmem:[#allocation2 + $0x140] sm:$0xff] 0.0
        %343 = vst [vmem:[#allocation2 + $0x148] sm:$0xff] 0.0
        %344 = vst [vmem:[#allocation2 + $0x150] sm:$0xff] 0.0
        %345 = vst [vmem:[#allocation2 + $0x158] sm:$0xff] 0.0
        %346 = vst [vmem:[#allocation2 + $0x160] sm:$0xff] 0.0
        %347 = vst [vmem:[#allocation2 + $0x168] sm:$0xff] 0.0
        %348 = vst [vmem:[#allocation2 + $0x170] sm:$0xff] 0.0
        %349 = vst [vmem:[#allocation2 + $0x178] sm:$0xff] 0.0
      $region40: #{basic_conv2d.1} parent=35 // pred_fallthru
        _
      %v350 = vld [vmem:[%s273] sm:$0xf]
      %v351 = vld [vmem:[%s273 + $0x4] sm:$0xf]
      %v352 = vld [vmem:[%s273 + $0x8] sm:$0xf]
      %v353 = vld [vmem:[%s273 + $0xc] sm:$0xf]
      %v354 = vld [vmem:[%s273 + $0x10] sm:$0xf]
      %v355 = vld [vmem:[%s273 + $0x14] sm:$0xf]
      %v356 = vld [vmem:[%s273 + $0x18] sm:$0xf]
      %v357 = vld [vmem:[%s273 + $0x1c] sm:$0xf]
      %v358 = vld [vmem:[%s273 + $0x20] sm:$0xf]
      %v359 = vld [vmem:[%s273 + $0x24] sm:$0xf]
      %v360 = vld [vmem:[%s273 + $0x28] sm:$0xf]
      %v361 = vld [vmem:[%s273 + $0x2c] sm:$0xf]
      %v362 = vld [vmem:[%s273 + $0x30] sm:$0xf]
      %v363 = vld [vmem:[%s273 + $0x34] sm:$0xf]
      %v364 = vld [vmem:[%s273 + $0x38] sm:$0xf]
      %v365 = vld [vmem:[%s273 + $0x3c] sm:$0xf]
      %v366 = vld [vmem:[%s273 + $0x40] sm:$0xf]
      %v367 = vld [vmem:[%s273 + $0x44] sm:$0xf]
      %v368 = vld [vmem:[%s273 + $0x48] sm:$0xf]
      %v369 = vld [vmem:[%s273 + $0x4c] sm:$0xf]
      %v370 = vld [vmem:[%s273 + $0x50] sm:$0xf]
      %v371 = vld [vmem:[%s273 + $0x54] sm:$0xf]
      %v372 = vld [vmem:[%s273 + $0x58] sm:$0xf]
      %v373 = vld [vmem:[%s273 + $0x5c] sm:$0xf]
      %v374 = vld [vmem:[%s273 + $0x60] sm:$0xf]
      %v375 = vld [vmem:[%s273 + $0x64] sm:$0xf]
      %v376 = vld [vmem:[%s273 + $0x68] sm:$0xf]
      %v377 = vld [vmem:[%s273 + $0x6c] sm:$0xf]
      %v378 = vld [vmem:[%s273 + $0x70] sm:$0xf]
      %v379 = vld [vmem:[%s273 + $0x74] sm:$0xf]
      %v380 = vld [vmem:[%s273 + $0x78] sm:$0xf]
      %v381 = vld [vmem:[%s273 + $0x7c] sm:$0xf]
      %v382 = vld [vmem:[%s273 + $0x80] sm:$0xf]
      %v383 = vld [vmem:[%s273 + $0x84] sm:$0xf]
      %v384 = vld [vmem:[%s273 + $0x88] sm:$0xf]
      %v385 = vld [vmem:[%s273 + $0x8c] sm:$0xf]
      %v386 = vld [vmem:[%s273 + $0x90] sm:$0xf]
      %v387 = vld [vmem:[%s273 + $0x94] sm:$0xf]
      %v388 = vld [vmem:[%s273 + $0x98] sm:$0xf]
      %v389 = vld [vmem:[%s273 + $0x9c] sm:$0xf]
      %v390 = vld [vmem:[%s273 + $0xa0] sm:$0xf]
      %v391 = vld [vmem:[%s273 + $0xa4] sm:$0xf]
      %v392 = vld [vmem:[%s273 + $0xa8] sm:$0xf]
      %v393 = vld [vmem:[%s273 + $0xac] sm:$0xf]
      %v394 = vld [vmem:[%s273 + $0xb0] sm:$0xf]
      %v395 = vld [vmem:[%s273 + $0xb4] sm:$0xf]
      %v396 = vld [vmem:[%s273 + $0xb8] sm:$0xf]
      %v397 = vld [vmem:[%s273 + $0xbc] sm:$0xf]
      %v398 = vld [vmem:[%s273 + $0xc0] sm:$0xf]
      %v399 = vld [vmem:[%s273 + $0xc4] sm:$0xf]
      %v400 = vld [vmem:[%s273 + $0xc8] sm:$0xf]
      %v401 = vld [vmem:[%s273 + $0xcc] sm:$0xf]
      %v402 = vld [vmem:[%s273 + $0xd0] sm:$0xf]
      %v403 = vld [vmem:[%s273 + $0xd4] sm:$0xf]
      %v404 = vld [vmem:[%s273 + $0xd8] sm:$0xf]
      %v405 = vld [vmem:[#allocation2] sm:$0xff]
      %v406 = vld [vmem:[#allocation2 + $0x8] sm:$0xff]
      %v407 = vld [vmem:[#allocation2 + $0x10] sm:$0xff]
      %v408 = vld [vmem:[#allocation2 + $0x18] sm:$0xff]
      %v409 = vld [vmem:[#allocation2 + $0x20] sm:$0xff]
      %v410 = vld [vmem:[#allocation2 + $0x28] sm:$0xff]
      %v411 = vld [vmem:[#allocation2 + $0x30] sm:$0xff]
      %v412 = vld [vmem:[#allocation2 + $0x38] sm:$0xff]
      %v413 = vld [vmem:[#allocation2 + $0x40] sm:$0xff]
      %v414 = vld [vmem:[#allocation2 + $0x48] sm:$0xff]
      %v415 = vld [vmem:[#allocation2 + $0x50] sm:$0xff]
      %v416 = vld [vmem:[#allocation2 + $0x58] sm:$0xff]
      %v417 = vld [vmem:[#allocation2 + $0x60] sm:$0xff]
      %v418 = vld [vmem:[#allocation2 + $0x68] sm:$0xff]
      %v419 = vld [vmem:[#allocation2 + $0x70] sm:$0xff]
      %v420 = vld [vmem:[#allocation2 + $0x78] sm:$0xff]
      %v421 = vld [vmem:[#allocation2 + $0x80] sm:$0xff]
      %v422 = vld [vmem:[#allocation2 + $0x88] sm:$0xff]
      %v423 = vld [vmem:[#allocation2 + $0x90] sm:$0xff]
      %v424 = vld [vmem:[#allocation2 + $0x98] sm:$0xff]
      %v425 = vld [vmem:[#allocation2 + $0xa0] sm:$0xff]
      %v426 = vld [vmem:[#allocation2 + $0xa8] sm:$0xff]
      %v427 = vld [vmem:[#allocation2 + $0xb0] sm:$0xff]
      %v428 = vld [vmem:[#allocation2 + $0xb8] sm:$0xff]
      %v429 = vld [vmem:[#allocation2 + $0xc0] sm:$0xff]
      %v430 = vld [vmem:[#allocation2 + $0xc8] sm:$0xff]
      %v431 = vld [vmem:[#allocation2 + $0xd0] sm:$0xff]
      %v432 = vld [vmem:[#allocation2 + $0xd8] sm:$0xff]
      %v433 = vld [vmem:[#allocation2 + $0xe0] sm:$0xff]
      %v434 = vld [vmem:[#allocation2 + $0xe8] sm:$0xff]
      %v435 = vld [vmem:[#allocation2 + $0xf0] sm:$0xff]
      %v436 = vld [vmem:[#allocation2 + $0xf8] sm:$0xff]
      %v437 = vld [vmem:[#allocation2 + $0x100] sm:$0xff]
      %v438 = vld [vmem:[#allocation2 + $0x108] sm:$0xff]
      %v439 = vld [vmem:[#allocation2 + $0x110] sm:$0xff]
      %v440 = vld [vmem:[#allocation2 + $0x118] sm:$0xff]
      %v441 = vld [vmem:[#allocation2 + $0x120] sm:$0xff]
      %v442 = vld [vmem:[#allocation2 + $0x128] sm:$0xff]
      %v443 = vld [vmem:[#allocation2 + $0x130] sm:$0xff]
      %v444 = vld [vmem:[#allocation2 + $0x138] sm:$0xff]
      %v445 = vld [vmem:[#allocation2 + $0x140] sm:$0xff]
      %v446 = vld [vmem:[#allocation2 + $0x148] sm:$0xff]
      %v447 = vld [vmem:[#allocation2 + $0x150] sm:$0xff]
      %v448 = vld [vmem:[#allocation2 + $0x158] sm:$0xff]
      %v449 = vld [vmem:[#allocation2 + $0x160] sm:$0xff]
      %v450 = vld [vmem:[#allocation2 + $0x168] sm:$0xff]
      %v451 = vld [vmem:[#allocation2 + $0x170] sm:$0xff]
      %v452 = vld [vmem:[#allocation2 + $0x178] sm:$0xff]
      %v453 = vld [vmem:[%s281] sm:$0xf]
      %v454 = vld [vmem:[%s281 + $0x4] sm:$0xf]
      %v503 = vunpack.c.l.b16 %v350
      %v504 = vunpack.c.l.b16 %v351
      %v505 = vunpack.c.l.b16 %v352
      %v506 = vunpack.c.l.b16 %v353
      %v507 = vunpack.c.l.b16 %v354
      %v508 = vunpack.c.l.b16 %v355
      %v509 = vunpack.c.l.b16 %v356
      %v510 = vunpack.c.l.b16 %v357
      %v511 = vunpack.c.l.b16 %v358
      %v512 = vunpack.c.l.b16 %v359
      %v513 = vunpack.c.l.b16 %v360
      %v514 = vunpack.c.l.b16 %v361
      %v515 = vunpack.c.l.b16 %v362
      %v516 = vunpack.c.l.b16 %v363
      %v517 = vunpack.c.l.b16 %v364
      %v518 = vunpack.c.l.b16 %v365
      %v519 = vunpack.c.l.b16 %v366
      %v520 = vunpack.c.l.b16 %v367
      %v521 = vunpack.c.l.b16 %v368
      %v522 = vunpack.c.l.b16 %v369
      %v523 = vunpack.c.l.b16 %v370
      %v524 = vunpack.c.l.b16 %v371
      %v525 = vunpack.c.l.b16 %v372
      %v526 = vunpack.c.l.b16 %v373
      %v527 = vunpack.c.l.b16 %v374
      %v528 = vunpack.c.l.b16 %v375
      %v529 = vunpack.c.l.b16 %v376
      %v530 = vunpack.c.l.b16 %v377
      %v531 = vunpack.c.l.b16 %v378
      %v532 = vunpack.c.l.b16 %v379
      %v533 = vunpack.c.l.b16 %v380
      %v534 = vunpack.c.l.b16 %v381
      %v535 = vunpack.c.l.b16 %v382
      %v536 = vunpack.c.l.b16 %v383
      %v537 = vunpack.c.l.b16 %v384
      %v538 = vunpack.c.l.b16 %v385
      %v539 = vunpack.c.l.b16 %v386
      %v540 = vunpack.c.l.b16 %v387
      %v541 = vunpack.c.l.b16 %v388
      %v542 = vunpack.c.l.b16 %v389
      %v543 = vunpack.c.l.b16 %v390
      %v544 = vunpack.c.l.b16 %v391
      %v545 = vunpack.c.l.b16 %v392
      %v546 = vunpack.c.l.b16 %v393
      %v547 = vunpack.c.l.b16 %v394
      %v548 = vunpack.c.l.b16 %v395
      %v549 = vunpack.c.l.b16 %v396
      %v550 = vunpack.c.l.b16 %v397
      %v551 = vpack.c.b16 %v504, %v503
      %v552 = vpack.c.b16 %v506, %v505
      %v553 = vpack.c.b16 %v508, %v507
      %v554 = vpack.c.b16 %v510, %v509
      %v555 = vpack.c.b16 %v512, %v511
      %v556 = vpack.c.b16 %v514, %v513
      %v557 = vpack.c.b16 %v516, %v515
      %v558 = vpack.c.b16 %v518, %v517
      %v559 = vpack.c.b16 %v520, %v519
      %v560 = vpack.c.b16 %v522, %v521
      %v561 = vpack.c.b16 %v524, %v523
      %v562 = vpack.c.b16 %v526, %v525
      %v563 = vpack.c.b16 %v528, %v527
      %v564 = vpack.c.b16 %v530, %v529
      %v565 = vpack.c.b16 %v532, %v531
      %v566 = vpack.c.b16 %v534, %v533
      %v567 = vpack.c.b16 %v536, %v535
      %v568 = vpack.c.b16 %v538, %v537
      %v569 = vpack.c.b16 %v540, %v539
      %v570 = vpack.c.b16 %v542, %v541
      %v571 = vpack.c.b16 %v544, %v543
      %v572 = vpack.c.b16 %v546, %v545
      %v573 = vpack.c.b16 %v548, %v547
      %v574 = vpack.c.b16 %v550, %v549
      %v577 = vunpack.c.l.b16 %v453
      %v578 = vunpack.c.l.b16 %v454
      %v579 = vpack.c.b16 %v578, %v577
      %vm581 = vcmask 130048
      %v583 = vsel %vm581, %v551, 0
      %v586 = vsel %vm581, %v552, 0
      %v589 = vsel %vm581, %v553, 0
      %v592 = vsel %vm581, %v554, 0
      %v595 = vsel %vm581, %v555, 0
      %v598 = vsel %vm581, %v556, 0
      %v601 = vsel %vm581, %v557, 0
      %v604 = vsel %vm581, %v558, 0
      %v607 = vsel %vm581, %v559, 0
      %v610 = vsel %vm581, %v560, 0
      %v613 = vsel %vm581, %v561, 0
      %v616 = vsel %vm581, %v562, 0
      %v619 = vsel %vm581, %v563, 0
      %v622 = vsel %vm581, %v564, 0
      %v625 = vsel %vm581, %v565, 0
      %v628 = vsel %vm581, %v566, 0
      %v631 = vsel %vm581, %v567, 0
      %v634 = vsel %vm581, %v568, 0
      %v637 = vsel %vm581, %v569, 0
      %v640 = vsel %vm581, %v570, 0
      %v643 = vsel %vm581, %v571, 0
      %v646 = vsel %vm581, %v572, 0
      %v649 = vsel %vm581, %v573, 0
      %v652 = vsel %vm581, %v574, 0
      %654 = vmatprep.subr.bf16.mxu0 0
      %655 = vmatpush1.bf16.msra.mxu0 0
      %656 = vmatprep.subr.bf16.mxu0 0
      %657 = vmatpush1.bf16.msra.mxu0 0
      %658 = vmatprep.subr.bf16.mxu0 0
      %659 = vmatpush1.bf16.msra.mxu0 0
      %660 = vmatprep.subr.bf16.mxu0 0
      %661 = vmatpush1.bf16.msra.mxu0 0
      %662 = vmatprep.subr.bf16.mxu0 0
      %663 = vmatpush1.bf16.msra.mxu0 0
      %664 = vmatprep.subr.bf16.mxu0 0
      %665 = vmatpush1.bf16.msra.mxu0 0
      %666 = vmatprep.subr.bf16.mxu0 0
      %667 = vmatpush1.bf16.msra.mxu0 0
      %668 = vmatprep.subr.bf16.mxu0 0
      %669 = vmatpush1.bf16.msra.mxu0 %v579
      %670 = vmatprep.subr.bf16.mxu0 0
      %671 = vmatpush2.bf16.msra.mxu0 0
      %672 = vmatprep.subr.bf16.mxu0 0
      %673 = vmatpush2.bf16.msra.mxu0 0
      %674 = vmatprep.subr.bf16.mxu0 0
      %675 = vmatpush2.bf16.msra.mxu0 0
      %676 = vmatprep.subr.bf16.mxu0 0
      %677 = vmatpush2.bf16.msra.mxu0 0
      %678 = vmatprep.subr.bf16.mxu0 0
      %679 = vmatpush2.bf16.msra.mxu0 0
      %680 = vmatprep.subr.bf16.mxu0 0
      %681 = vmatpush2.bf16.msra.mxu0 0
      %682 = vmatprep.subr.bf16.mxu0 0
      %683 = vmatpush2.bf16.msra.mxu0 0
      %684 = vmatprep.subr.bf16.mxu0 0
      %685 = vmatpush2.bf16.msra.mxu0 0
      %686 = vmatprep.mubr.bf16.mxu0 0
      %687 = vmatmul.mubr.bf16.gmra.mxu0 %v583
      %v688 = vpop.f32.mrf.mxu0
      %v689 = vadd.f32 0.0, %v688
      %v690 = vpop.f32.mrf.mxu0
      %v691 = vpop.f32.mrf.mxu0
      %v692 = vadd.f32 0.0, %v691
      %v693 = vpop.f32.mrf.mxu0
      %694 = vmatprep.mubr.bf16.mxu0 0
      %695 = vmatmul.mubr.bf16.gmra.mxu0 %v586
      %v696 = vpop.f32.mrf.mxu0
      %v697 = vadd.f32 0.0, %v696
      %v698 = vpop.f32.mrf.mxu0
      %v699 = vpop.f32.mrf.mxu0
      %v700 = vadd.f32 0.0, %v699
      %v701 = vpop.f32.mrf.mxu0
      %702 = vmatprep.mubr.bf16.mxu0 0
      %703 = vmatmul.mubr.bf16.gmra.mxu0 %v589
      %v704 = vpop.f32.mrf.mxu0
      %v705 = vadd.f32 0.0, %v704
      %v706 = vpop.f32.mrf.mxu0
      %v707 = vpop.f32.mrf.mxu0
      %v708 = vadd.f32 0.0, %v707
      %v709 = vpop.f32.mrf.mxu0
      %710 = vmatprep.mubr.bf16.mxu0 0
      %711 = vmatmul.mubr.bf16.gmra.mxu0 %v592
      %v712 = vpop.f32.mrf.mxu0
      %v713 = vadd.f32 0.0, %v712
      %v714 = vpop.f32.mrf.mxu0
      %v715 = vpop.f32.mrf.mxu0
      %v716 = vadd.f32 0.0, %v715
      %v717 = vpop.f32.mrf.mxu0
      %718 = vmatprep.mubr.bf16.mxu0 0
      %719 = vmatmul.mubr.bf16.gmra.mxu0 %v595
      %v720 = vpop.f32.mrf.mxu0
      %v721 = vadd.f32 0.0, %v720
      %v722 = vpop.f32.mrf.mxu0
      %v723 = vpop.f32.mrf.mxu0
      %v724 = vadd.f32 0.0, %v723
      %v725 = vpop.f32.mrf.mxu0
      %726 = vmatprep.mubr.bf16.mxu0 0
      %727 = vmatmul.mubr.bf16.gmra.mxu0 %v598
      %v728 = vpop.f32.mrf.mxu0
      %v729 = vadd.f32 0.0, %v728
      %v730 = vpop.f32.mrf.mxu0
      %v731 = vpop.f32.mrf.mxu0
      %v732 = vadd.f32 0.0, %v731
      %v733 = vpop.f32.mrf.mxu0
      %734 = vmatprep.mubr.bf16.mxu0 0
      %735 = vmatmul.mubr.bf16.gmra.mxu0 %v601
      %v736 = vpop.f32.mrf.mxu0
      %v737 = vadd.f32 0.0, %v736
      %v738 = vpop.f32.mrf.mxu0
      %v739 = vpop.f32.mrf.mxu0
      %v740 = vadd.f32 0.0, %v739
      %v741 = vpop.f32.mrf.mxu0
      %742 = vmatprep.mubr.bf16.mxu0 0
      %743 = vmatmul.mubr.bf16.gmra.mxu0 %v604
      %v744 = vpop.f32.mrf.mxu0
      %v745 = vadd.f32 0.0, %v744
      %v746 = vpop.f32.mrf.mxu0
      %v747 = vpop.f32.mrf.mxu0
      %v748 = vadd.f32 0.0, %v747
      %v749 = vpop.f32.mrf.mxu0
      %750 = vmatprep.mubr.bf16.mxu0 0
      %751 = vmatmul.mubr.bf16.gmra.mxu0 %v607
      %v752 = vpop.f32.mrf.mxu0
      %v753 = vadd.f32 0.0, %v752
      %v754 = vpop.f32.mrf.mxu0
      %v755 = vpop.f32.mrf.mxu0
      %v756 = vadd.f32 0.0, %v755
      %v757 = vpop.f32.mrf.mxu0
      %758 = vmatprep.mubr.bf16.mxu0 0
      %759 = vmatmul.mubr.bf16.gmra.mxu0 %v610
      %v760 = vpop.f32.mrf.mxu0
      %v761 = vadd.f32 0.0, %v760
      %v762 = vpop.f32.mrf.mxu0
      %v763 = vpop.f32.mrf.mxu0
      %v764 = vadd.f32 0.0, %v763
      %v765 = vpop.f32.mrf.mxu0
      %766 = vmatprep.mubr.bf16.mxu0 0
      %767 = vmatmul.mubr.bf16.gmra.mxu0 %v613
      %v768 = vpop.f32.mrf.mxu0
      %v769 = vadd.f32 0.0, %v768
      %v770 = vpop.f32.mrf.mxu0
      %v771 = vpop.f32.mrf.mxu0
      %v772 = vadd.f32 0.0, %v771
      %v773 = vpop.f32.mrf.mxu0
      %774 = vmatprep.mubr.bf16.mxu0 0
      %775 = vmatmul.mubr.bf16.gmra.mxu0 %v616
      %v776 = vpop.f32.mrf.mxu0
      %v777 = vadd.f32 0.0, %v776
      %v778 = vpop.f32.mrf.mxu0
      %v779 = vpop.f32.mrf.mxu0
      %v780 = vadd.f32 0.0, %v779
      %v781 = vpop.f32.mrf.mxu0
      %782 = vmatprep.mubr.bf16.mxu0 0
      %783 = vmatmul.mubr.bf16.gmra.mxu0 %v619
      %v784 = vpop.f32.mrf.mxu0
      %v785 = vadd.f32 0.0, %v784
      %v786 = vpop.f32.mrf.mxu0
      %v787 = vpop.f32.mrf.mxu0
      %v788 = vadd.f32 0.0, %v787
      %v789 = vpop.f32.mrf.mxu0
      %790 = vmatprep.mubr.bf16.mxu0 0
      %791 = vmatmul.mubr.bf16.gmra.mxu0 %v622
      %v792 = vpop.f32.mrf.mxu0
      %v793 = vadd.f32 0.0, %v792
      %v794 = vpop.f32.mrf.mxu0
      %v795 = vpop.f32.mrf.mxu0
      %v796 = vadd.f32 0.0, %v795
      %v797 = vpop.f32.mrf.mxu0
      %798 = vmatprep.mubr.bf16.mxu0 0
      %799 = vmatmul.mubr.bf16.gmra.mxu0 %v625
      %v800 = vpop.f32.mrf.mxu0
      %v801 = vadd.f32 0.0, %v800
      %v802 = vpop.f32.mrf.mxu0
      %v803 = vpop.f32.mrf.mxu0
      %v804 = vadd.f32 0.0, %v803
      %v805 = vpop.f32.mrf.mxu0
      %806 = vmatprep.mubr.bf16.mxu0 0
      %807 = vmatmul.mubr.bf16.gmra.mxu0 %v628
      %v808 = vpop.f32.mrf.mxu0
      %v809 = vadd.f32 0.0, %v808
      %v810 = vpop.f32.mrf.mxu0
      %v811 = vpop.f32.mrf.mxu0
      %v812 = vadd.f32 0.0, %v811
      %v813 = vpop.f32.mrf.mxu0
      %814 = vmatprep.mubr.bf16.mxu0 0
      %815 = vmatmul.mubr.bf16.gmra.mxu0 %v631
      %v816 = vpop.f32.mrf.mxu0
      %v817 = vadd.f32 0.0, %v816
      %v818 = vpop.f32.mrf.mxu0
      %v819 = vpop.f32.mrf.mxu0
      %v820 = vadd.f32 0.0, %v819
      %v821 = vpop.f32.mrf.mxu0
      %822 = vmatprep.mubr.bf16.mxu0 0
      %823 = vmatmul.mubr.bf16.gmra.mxu0 %v634
      %v824 = vpop.f32.mrf.mxu0
      %v825 = vadd.f32 0.0, %v824
      %v826 = vpop.f32.mrf.mxu0
      %v827 = vpop.f32.mrf.mxu0
      %v828 = vadd.f32 0.0, %v827
      %v829 = vpop.f32.mrf.mxu0
      %830 = vmatprep.mubr.bf16.mxu0 0
      %831 = vmatmul.mubr.bf16.gmra.mxu0 %v637
      %v832 = vpop.f32.mrf.mxu0
      %v833 = vadd.f32 0.0, %v832
      %v834 = vpop.f32.mrf.mxu0
      %v835 = vpop.f32.mrf.mxu0
      %v836 = vadd.f32 0.0, %v835
      %v837 = vpop.f32.mrf.mxu0
      %838 = vmatprep.mubr.bf16.mxu0 0
      %839 = vmatmul.mubr.bf16.gmra.mxu0 %v640
      %v840 = vpop.f32.mrf.mxu0
      %v841 = vadd.f32 0.0, %v840
      %v842 = vpop.f32.mrf.mxu0
      %v843 = vpop.f32.mrf.mxu0
      %v844 = vadd.f32 0.0, %v843
      %v845 = vpop.f32.mrf.mxu0
      %846 = vmatprep.mubr.bf16.mxu0 0
      %847 = vmatmul.mubr.bf16.gmra.mxu0 %v643
      %v848 = vpop.f32.mrf.mxu0
      %v849 = vadd.f32 0.0, %v848
      %v850 = vpop.f32.mrf.mxu0
      %v851 = vpop.f32.mrf.mxu0
      %v852 = vadd.f32 0.0, %v851
      %v853 = vpop.f32.mrf.mxu0
      %854 = vmatprep.mubr.bf16.mxu0 0
      %855 = vmatmul.mubr.bf16.gmra.mxu0 %v646
      %v856 = vpop.f32.mrf.mxu0
      %v857 = vadd.f32 0.0, %v856
      %v858 = vpop.f32.mrf.mxu0
      %v859 = vpop.f32.mrf.mxu0
      %v860 = vadd.f32 0.0, %v859
      %v861 = vpop.f32.mrf.mxu0
      %862 = vmatprep.mubr.bf16.mxu0 0
      %863 = vmatmul.mubr.bf16.gmra.mxu0 %v649
      %v864 = vpop.f32.mrf.mxu0
      %v865 = vadd.f32 0.0, %v864
      %v866 = vpop.f32.mrf.mxu0
      %v867 = vpop.f32.mrf.mxu0
      %v868 = vadd.f32 0.0, %v867
      %v869 = vpop.f32.mrf.mxu0
      %870 = vmatprep.mubr.bf16.mxu0 0
      %871 = vmatmul.mubr.bf16.gmra.mxu0 %v652
      %v872 = vpop.f32.mrf.mxu0
      %v873 = vadd.f32 0.0, %v872
      %v874 = vpop.f32.mrf.mxu0
      %v875 = vpop.f32.mrf.mxu0
      %v876 = vadd.f32 0.0, %v875
      %v877 = vpop.f32.mrf.mxu0
      %878 = vdwg.mxu0
      %v879 = vadd.f32 %v405, %v689
      %v880 = vadd.f32 %v406, %v692
      %v881 = vadd.f32 %v407, %v697
      %v882 = vadd.f32 %v408, %v700
      %v883 = vadd.f32 %v409, %v705
      %v884 = vadd.f32 %v410, %v708
      %v885 = vadd.f32 %v411, %v713
      %v886 = vadd.f32 %v412, %v716
      %v887 = vadd.f32 %v413, %v721
      %v888 = vadd.f32 %v414, %v724
      %v889 = vadd.f32 %v415, %v729
      %v890 = vadd.f32 %v416, %v732
      %v891 = vadd.f32 %v417, %v737
      %v892 = vadd.f32 %v418, %v740
      %v893 = vadd.f32 %v419, %v745
      %v894 = vadd.f32 %v420, %v748
      %v895 = vadd.f32 %v421, %v753
      %v896 = vadd.f32 %v422, %v756
      %v897 = vadd.f32 %v423, %v761
      %v898 = vadd.f32 %v424, %v764
      %v899 = vadd.f32 %v425, %v769
      %v900 = vadd.f32 %v426, %v772
      %v901 = vadd.f32 %v427, %v777
      %v902 = vadd.f32 %v428, %v780
      %v903 = vadd.f32 %v429, %v785
      %v904 = vadd.f32 %v430, %v788
      %v905 = vadd.f32 %v431, %v793
      %v906 = vadd.f32 %v432, %v796
      %v907 = vadd.f32 %v433, %v801
      %v908 = vadd.f32 %v434, %v804
      %v909 = vadd.f32 %v435, %v809
      %v910 = vadd.f32 %v436, %v812
      %v911 = vadd.f32 %v437, %v817
      %v912 = vadd.f32 %v438, %v820
      %v913 = vadd.f32 %v439, %v825
      %v914 = vadd.f32 %v440, %v828
      %v915 = vadd.f32 %v441, %v833
      %v916 = vadd.f32 %v442, %v836
      %v917 = vadd.f32 %v443, %v841
      %v918 = vadd.f32 %v444, %v844
      %v919 = vadd.f32 %v445, %v849
      %v920 = vadd.f32 %v446, %v852
      %v921 = vadd.f32 %v447, %v857
      %v922 = vadd.f32 %v448, %v860
      %v923 = vadd.f32 %v449, %v865
      %v924 = vadd.f32 %v450, %v868
      %v925 = vadd.f32 %v451, %v873
      %v926 = vadd.f32 %v452, %v876
      %s927 = scalar_lea.vmem %s281, 24
      %v928 = vld [vmem:[%s927] sm:$0xf]
      %v929 = vld [vmem:[%s927 + $0x4] sm:$0xf]
      %v933 = vunpack.c.l.b16 %v398
      %v934 = vunpack.c.l.b16 %v399
      %v935 = vunpack.c.l.b16 %v400
      %v936 = vpack.c.b16 %v507, %v506
      %v937 = vpack.c.b16 %v509, %v508
      %v938 = vpack.c.b16 %v511, %v510
      %v939 = vpack.c.b16 %v513, %v512
      %v940 = vpack.c.b16 %v515, %v514
      %v941 = vpack.c.b16 %v517, %v516
      %v942 = vpack.c.b16 %v519, %v518
      %v943 = vpack.c.b16 %v521, %v520
      %v944 = vpack.c.b16 %v523, %v522
      %v945 = vpack.c.b16 %v525, %v524
      %v946 = vpack.c.b16 %v527, %v526
      %v947 = vpack.c.b16 %v529, %v528
      %v948 = vpack.c.b16 %v531, %v530
      %v949 = vpack.c.b16 %v533, %v532
      %v950 = vpack.c.b16 %v535, %v534
      %v951 = vpack.c.b16 %v537, %v536
      %v952 = vpack.c.b16 %v539, %v538
      %v953 = vpack.c.b16 %v541, %v540
      %v954 = vpack.c.b16 %v543, %v542
      %v955 = vpack.c.b16 %v545, %v544
      %v956 = vpack.c.b16 %v547, %v546
      %v957 = vpack.c.b16 %v549, %v548
      %v958 = vpack.c.b16 %v933, %v550
      %v959 = vpack.c.b16 %v935, %v934
      %v962 = vunpack.c.l.b16 %v928
      %v963 = vunpack.c.l.b16 %v929
      %v964 = vpack.c.b16 %v963, %v962
      %v967 = vsel %vm581, %v936, 0
      %v970 = vsel %vm581, %v937, 0
      %v973 = vsel %vm581, %v938, 0
      %v976 = vsel %vm581, %v939, 0
      %v979 = vsel %vm581, %v940, 0
      %v982 = vsel %vm581, %v941, 0
      %v985 = vsel %vm581, %v942, 0
      %v988 = vsel %vm581, %v943, 0
      %v991 = vsel %vm581, %v944, 0
      %v994 = vsel %vm581, %v945, 0
      %v997 = vsel %vm581, %v946, 0
      %v1000 = vsel %vm581, %v947, 0
      %v1003 = vsel %vm581, %v948, 0
      %v1006 = vsel %vm581, %v949, 0
      %v1009 = vsel %vm581, %v950, 0
      %v1012 = vsel %vm581, %v951, 0
      %v1015 = vsel %vm581, %v952, 0
      %v1018 = vsel %vm581, %v953, 0
      %v1021 = vsel %vm581, %v954, 0
      %v1024 = vsel %vm581, %v955, 0
      %v1027 = vsel %vm581, %v956, 0
      %v1030 = vsel %vm581, %v957, 0
      %v1033 = vsel %vm581, %v958, 0
      %v1036 = vsel %vm581, %v959, 0
      %1038 = vmatprep.subr.bf16.mxu0 0
      %1039 = vmatpush1.bf16.msra.mxu0 0
      %1040 = vmatprep.subr.bf16.mxu0 0
      %1041 = vmatpush1.bf16.msra.mxu0 0
      %1042 = vmatprep.subr.bf16.mxu0 0
      %1043 = vmatpush1.bf16.msra.mxu0 0
      %1044 = vmatprep.subr.bf16.mxu0 0
      %1045 = vmatpush1.bf16.msra.mxu0 0
      %1046 = vmatprep.subr.bf16.mxu0 0
      %1047 = vmatpush1.bf16.msra.mxu0 0
      %1048 = vmatprep.subr.bf16.mxu0 0
      %1049 = vmatpush1.bf16.msra.mxu0 0
      %1050 = vmatprep.subr.bf16.mxu0 0
      %1051 = vmatpush1.bf16.msra.mxu0 0
      %1052 = vmatprep.subr.bf16.mxu0 0
      %1053 = vmatpush1.bf16.msra.mxu0 %v964
      %1054 = vmatprep.subr.bf16.mxu0 0
      %1055 = vmatpush2.bf16.msra.mxu0 0
      %1056 = vmatprep.subr.bf16.mxu0 0
      %1057 = vmatpush2.bf16.msra.mxu0 0
      %1058 = vmatprep.subr.bf16.mxu0 0
      %1059 = vmatpush2.bf16.msra.mxu0 0
      %1060 = vmatprep.subr.bf16.mxu0 0
      %1061 = vmatpush2.bf16.msra.mxu0 0
      %1062 = vmatprep.subr.bf16.mxu0 0
      %1063 = vmatpush2.bf16.msra.mxu0 0
      %1064 = vmatprep.subr.bf16.mxu0 0
      %1065 = vmatpush2.bf16.msra.mxu0 0
      %1066 = vmatprep.subr.bf16.mxu0 0
      %1067 = vmatpush2.bf16.msra.mxu0 0
      %1068 = vmatprep.subr.bf16.mxu0 0
      %1069 = vmatpush2.bf16.msra.mxu0 0
      %1070 = vmatprep.mubr.bf16.mxu0 0
      %1071 = vmatmul.mubr.bf16.gmra.mxu0 %v967
      %v1072 = vpop.f32.mrf.mxu0
      %v1073 = vadd.f32 0.0, %v1072
      %v1074 = vpop.f32.mrf.mxu0
      %v1075 = vpop.f32.mrf.mxu0
      %v1076 = vadd.f32 0.0, %v1075
      %v1077 = vpop.f32.mrf.mxu0
      %1078 = vmatprep.mubr.bf16.mxu0 0
      %1079 = vmatmul.mubr.bf16.gmra.mxu0 %v970
      %v1080 = vpop.f32.mrf.mxu0
      %v1081 = vadd.f32 0.0, %v1080
      %v1082 = vpop.f32.mrf.mxu0
      %v1083 = vpop.f32.mrf.mxu0
      %v1084 = vadd.f32 0.0, %v1083
      %v1085 = vpop.f32.mrf.mxu0
      %1086 = vmatprep.mubr.bf16.mxu0 0
      %1087 = vmatmul.mubr.bf16.gmra.mxu0 %v973
      %v1088 = vpop.f32.mrf.mxu0
      %v1089 = vadd.f32 0.0, %v1088
      %v1090 = vpop.f32.mrf.mxu0
      %v1091 = vpop.f32.mrf.mxu0
      %v1092 = vadd.f32 0.0, %v1091
      %v1093 = vpop.f32.mrf.mxu0
      %1094 = vmatprep.mubr.bf16.mxu0 0
      %1095 = vmatmul.mubr.bf16.gmra.mxu0 %v976
      %v1096 = vpop.f32.mrf.mxu0
      %v1097 = vadd.f32 0.0, %v1096
      %v1098 = vpop.f32.mrf.mxu0
      %v1099 = vpop.f32.mrf.mxu0
      %v1100 = vadd.f32 0.0, %v1099
      %v1101 = vpop.f32.mrf.mxu0
      %1102 = vmatprep.mubr.bf16.mxu0 0
      %1103 = vmatmul.mubr.bf16.gmra.mxu0 %v979
      %v1104 = vpop.f32.mrf.mxu0
      %v1105 = vadd.f32 0.0, %v1104
      %v1106 = vpop.f32.mrf.mxu0
      %v1107 = vpop.f32.mrf.mxu0
      %v1108 = vadd.f32 0.0, %v1107
      %v1109 = vpop.f32.mrf.mxu0
      %1110 = vmatprep.mubr.bf16.mxu0 0
      %1111 = vmatmul.mubr.bf16.gmra.mxu0 %v982
      %v1112 = vpop.f32.mrf.mxu0
      %v1113 = vadd.f32 0.0, %v1112
      %v1114 = vpop.f32.mrf.mxu0
      %v1115 = vpop.f32.mrf.mxu0
      %v1116 = vadd.f32 0.0, %v1115
      %v1117 = vpop.f32.mrf.mxu0
      %1118 = vmatprep.mubr.bf16.mxu0 0
      %1119 = vmatmul.mubr.bf16.gmra.mxu0 %v985
      %v1120 = vpop.f32.mrf.mxu0
      %v1121 = vadd.f32 0.0, %v1120
      %v1122 = vpop.f32.mrf.mxu0
      %v1123 = vpop.f32.mrf.mxu0
      %v1124 = vadd.f32 0.0, %v1123
      %v1125 = vpop.f32.mrf.mxu0
      %1126 = vmatprep.mubr.bf16.mxu0 0
      %1127 = vmatmul.mubr.bf16.gmra.mxu0 %v988
      %v1128 = vpop.f32.mrf.mxu0
      %v1129 = vadd.f32 0.0, %v1128
      %v1130 = vpop.f32.mrf.mxu0
      %v1131 = vpop.f32.mrf.mxu0
      %v1132 = vadd.f32 0.0, %v1131
      %v1133 = vpop.f32.mrf.mxu0
      %1134 = vmatprep.mubr.bf16.mxu0 0
      %1135 = vmatmul.mubr.bf16.gmra.mxu0 %v991
      %v1136 = vpop.f32.mrf.mxu0
      %v1137 = vadd.f32 0.0, %v1136
      %v1138 = vpop.f32.mrf.mxu0
      %v1139 = vpop.f32.mrf.mxu0
      %v1140 = vadd.f32 0.0, %v1139
      %v1141 = vpop.f32.mrf.mxu0
      %1142 = vmatprep.mubr.bf16.mxu0 0
      %1143 = vmatmul.mubr.bf16.gmra.mxu0 %v994
      %v1144 = vpop.f32.mrf.mxu0
      %v1145 = vadd.f32 0.0, %v1144
      %v1146 = vpop.f32.mrf.mxu0
      %v1147 = vpop.f32.mrf.mxu0
      %v1148 = vadd.f32 0.0, %v1147
      %v1149 = vpop.f32.mrf.mxu0
      %1150 = vmatprep.mubr.bf16.mxu0 0
      %1151 = vmatmul.mubr.bf16.gmra.mxu0 %v997
      %v1152 = vpop.f32.mrf.mxu0
      %v1153 = vadd.f32 0.0, %v1152
      %v1154 = vpop.f32.mrf.mxu0
      %v1155 = vpop.f32.mrf.mxu0
      %v1156 = vadd.f32 0.0, %v1155
      %v1157 = vpop.f32.mrf.mxu0
      %1158 = vmatprep.mubr.bf16.mxu0 0
      %1159 = vmatmul.mubr.bf16.gmra.mxu0 %v1000
      %v1160 = vpop.f32.mrf.mxu0
      %v1161 = vadd.f32 0.0, %v1160
      %v1162 = vpop.f32.mrf.mxu0
      %v1163 = vpop.f32.mrf.mxu0
      %v1164 = vadd.f32 0.0, %v1163
      %v1165 = vpop.f32.mrf.mxu0
      %1166 = vmatprep.mubr.bf16.mxu0 0
      %1167 = vmatmul.mubr.bf16.gmra.mxu0 %v1003
      %v1168 = vpop.f32.mrf.mxu0
      %v1169 = vadd.f32 0.0, %v1168
      %v1170 = vpop.f32.mrf.mxu0
      %v1171 = vpop.f32.mrf.mxu0
      %v1172 = vadd.f32 0.0, %v1171
      %v1173 = vpop.f32.mrf.mxu0
      %1174 = vmatprep.mubr.bf16.mxu0 0
      %1175 = vmatmul.mubr.bf16.gmra.mxu0 %v1006
      %v1176 = vpop.f32.mrf.mxu0
      %v1177 = vadd.f32 0.0, %v1176
      %v1178 = vpop.f32.mrf.mxu0
      %v1179 = vpop.f32.mrf.mxu0
      %v1180 = vadd.f32 0.0, %v1179
      %v1181 = vpop.f32.mrf.mxu0
      %1182 = vmatprep.mubr.bf16.mxu0 0
      %1183 = vmatmul.mubr.bf16.gmra.mxu0 %v1009
      %v1184 = vpop.f32.mrf.mxu0
      %v1185 = vadd.f32 0.0, %v1184
      %v1186 = vpop.f32.mrf.mxu0
      %v1187 = vpop.f32.mrf.mxu0
      %v1188 = vadd.f32 0.0, %v1187
      %v1189 = vpop.f32.mrf.mxu0
      %1190 = vmatprep.mubr.bf16.mxu0 0
      %1191 = vmatmul.mubr.bf16.gmra.mxu0 %v1012
      %v1192 = vpop.f32.mrf.mxu0
      %v1193 = vadd.f32 0.0, %v1192
      %v1194 = vpop.f32.mrf.mxu0
      %v1195 = vpop.f32.mrf.mxu0
      %v1196 = vadd.f32 0.0, %v1195
      %v1197 = vpop.f32.mrf.mxu0
      %1198 = vmatprep.mubr.bf16.mxu0 0
      %1199 = vmatmul.mubr.bf16.gmra.mxu0 %v1015
      %v1200 = vpop.f32.mrf.mxu0
      %v1201 = vadd.f32 0.0, %v1200
      %v1202 = vpop.f32.mrf.mxu0
      %v1203 = vpop.f32.mrf.mxu0
      %v1204 = vadd.f32 0.0, %v1203
      %v1205 = vpop.f32.mrf.mxu0
      %1206 = vmatprep.mubr.bf16.mxu0 0
      %1207 = vmatmul.mubr.bf16.gmra.mxu0 %v1018
      %v1208 = vpop.f32.mrf.mxu0
      %v1209 = vadd.f32 0.0, %v1208
      %v1210 = vpop.f32.mrf.mxu0
      %v1211 = vpop.f32.mrf.mxu0
      %v1212 = vadd.f32 0.0, %v1211
      %v1213 = vpop.f32.mrf.mxu0
      %1214 = vmatprep.mubr.bf16.mxu0 0
      %1215 = vmatmul.mubr.bf16.gmra.mxu0 %v1021
      %v1216 = vpop.f32.mrf.mxu0
      %v1217 = vadd.f32 0.0, %v1216
      %v1218 = vpop.f32.mrf.mxu0
      %v1219 = vpop.f32.mrf.mxu0
      %v1220 = vadd.f32 0.0, %v1219
      %v1221 = vpop.f32.mrf.mxu0
      %1222 = vmatprep.mubr.bf16.mxu0 0
      %1223 = vmatmul.mubr.bf16.gmra.mxu0 %v1024
      %v1224 = vpop.f32.mrf.mxu0
      %v1225 = vadd.f32 0.0, %v1224
      %v1226 = vpop.f32.mrf.mxu0
      %v1227 = vpop.f32.mrf.mxu0
      %v1228 = vadd.f32 0.0, %v1227
      %v1229 = vpop.f32.mrf.mxu0
      %1230 = vmatprep.mubr.bf16.mxu0 0
      %1231 = vmatmul.mubr.bf16.gmra.mxu0 %v1027
      %v1232 = vpop.f32.mrf.mxu0
      %v1233 = vadd.f32 0.0, %v1232
      %v1234 = vpop.f32.mrf.mxu0
      %v1235 = vpop.f32.mrf.mxu0
      %v1236 = vadd.f32 0.0, %v1235
      %v1237 = vpop.f32.mrf.mxu0
      %1238 = vmatprep.mubr.bf16.mxu0 0
      %1239 = vmatmul.mubr.bf16.gmra.mxu0 %v1030
      %v1240 = vpop.f32.mrf.mxu0
      %v1241 = vadd.f32 0.0, %v1240
      %v1242 = vpop.f32.mrf.mxu0
      %v1243 = vpop.f32.mrf.mxu0
      %v1244 = vadd.f32 0.0, %v1243
      %v1245 = vpop.f32.mrf.mxu0
      %1246 = vmatprep.mubr.bf16.mxu0 0
      %1247 = vmatmul.mubr.bf16.gmra.mxu0 %v1033
      %v1248 = vpop.f32.mrf.mxu0
      %v1249 = vadd.f32 0.0, %v1248
      %v1250 = vpop.f32.mrf.mxu0
      %v1251 = vpop.f32.mrf.mxu0
      %v1252 = vadd.f32 0.0, %v1251
      %v1253 = vpop.f32.mrf.mxu0
      %1254 = vmatprep.mubr.bf16.mxu0 0
      %1255 = vmatmul.mubr.bf16.gmra.mxu0 %v1036
      %v1256 = vpop.f32.mrf.mxu0
      %v1257 = vadd.f32 0.0, %v1256
      %v1258 = vpop.f32.mrf.mxu0
      %v1259 = vpop.f32.mrf.mxu0
      %v1260 = vadd.f32 0.0, %v1259
      %v1261 = vpop.f32.mrf.mxu0
      %1262 = vdwg.mxu0
      %v1263 = vadd.f32 %v879, %v1073
      %v1264 = vadd.f32 %v880, %v1076
      %v1265 = vadd.f32 %v881, %v1081
      %v1266 = vadd.f32 %v882, %v1084
      %v1267 = vadd.f32 %v883, %v1089
      %v1268 = vadd.f32 %v884, %v1092
      %v1269 = vadd.f32 %v885, %v1097
      %v1270 = vadd.f32 %v886, %v1100
      %v1271 = vadd.f32 %v887, %v1105
      %v1272 = vadd.f32 %v888, %v1108
      %v1273 = vadd.f32 %v889, %v1113
      %v1274 = vadd.f32 %v890, %v1116
      %v1275 = vadd.f32 %v891, %v1121
      %v1276 = vadd.f32 %v892, %v1124
      %v1277 = vadd.f32 %v893, %v1129
      %v1278 = vadd.f32 %v894, %v1132
      %v1279 = vadd.f32 %v895, %v1137
      %v1280 = vadd.f32 %v896, %v1140
      %v1281 = vadd.f32 %v897, %v1145
      %v1282 = vadd.f32 %v898, %v1148
      %v1283 = vadd.f32 %v899, %v1153
      %v1284 = vadd.f32 %v900, %v1156
      %v1285 = vadd.f32 %v901, %v1161
      %v1286 = vadd.f32 %v902, %v1164
      %v1287 = vadd.f32 %v903, %v1169
      %v1288 = vadd.f32 %v904, %v1172
      %v1289 = vadd.f32 %v905, %v1177
      %v1290 = vadd.f32 %v906, %v1180
      %v1291 = vadd.f32 %v907, %v1185
      %v1292 = vadd.f32 %v908, %v1188
      %v1293 = vadd.f32 %v909, %v1193
      %v1294 = vadd.f32 %v910, %v1196
      %v1295 = vadd.f32 %v911, %v1201
      %v1296 = vadd.f32 %v912, %v1204
      %v1297 = vadd.f32 %v913, %v1209
      %v1298 = vadd.f32 %v914, %v1212
      %v1299 = vadd.f32 %v915, %v1217
      %v1300 = vadd.f32 %v916, %v1220
      %v1301 = vadd.f32 %v917, %v1225
      %v1302 = vadd.f32 %v918, %v1228
      %v1303 = vadd.f32 %v919, %v1233
      %v1304 = vadd.f32 %v920, %v1236
      %v1305 = vadd.f32 %v921, %v1241
      %v1306 = vadd.f32 %v922, %v1244
      %v1307 = vadd.f32 %v923, %v1249
      %v1308 = vadd.f32 %v924, %v1252
      %v1309 = vadd.f32 %v925, %v1257
      %v1310 = vadd.f32 %v926, %v1260
      %s1311 = scalar_lea.vmem %s281, 48
      %v1312 = vld [vmem:[%s1311] sm:$0xf]
      %v1313 = vld [vmem:[%s1311 + $0x4] sm:$0xf]
      %v1317 = vunpack.c.l.b16 %v401
      %v1318 = vunpack.c.l.b16 %v402
      %v1319 = vunpack.c.l.b16 %v403
      %v1320 = vpack.c.b16 %v934, %v933
      %v1321 = vpack.c.b16 %v1317, %v935
      %v1322 = vpack.c.b16 %v1319, %v1318
      %v1325 = vunpack.c.l.b16 %v1312
      %v1326 = vunpack.c.l.b16 %v1313
      %v1327 = vpack.c.b16 %v1326, %v1325
      %v1330 = vsel %vm581, %v1320, 0
      %v1333 = vsel %vm581, %v1321, 0
      %v1336 = vsel %vm581, %v1322, 0
      %1338 = vmatprep.subr.bf16.mxu0 0
      %1339 = vmatpush1.bf16.msra.mxu0 0
      %1340 = vmatprep.subr.bf16.mxu0 0
      %1341 = vmatpush1.bf16.msra.mxu0 0
      %1342 = vmatprep.subr.bf16.mxu0 0
      %1343 = vmatpush1.bf16.msra.mxu0 0
      %1344 = vmatprep.subr.bf16.mxu0 0
      %1345 = vmatpush1.bf16.msra.mxu0 0
      %1346 = vmatprep.subr.bf16.mxu0 0
      %1347 = vmatpush1.bf16.msra.mxu0 0
      %1348 = vmatprep.subr.bf16.mxu0 0
      %1349 = vmatpush1.bf16.msra.mxu0 0
      %1350 = vmatprep.subr.bf16.mxu0 0
      %1351 = vmatpush1.bf16.msra.mxu0 0
      %1352 = vmatprep.subr.bf16.mxu0 0
      %1353 = vmatpush1.bf16.msra.mxu0 %v1327
      %1354 = vmatprep.subr.bf16.mxu0 0
      %1355 = vmatpush2.bf16.msra.mxu0 0
      %1356 = vmatprep.subr.bf16.mxu0 0
      %1357 = vmatpush2.bf16.msra.mxu0 0
      %1358 = vmatprep.subr.bf16.mxu0 0
      %1359 = vmatpush2.bf16.msra.mxu0 0
      %1360 = vmatprep.subr.bf16.mxu0 0
      %1361 = vmatpush2.bf16.msra.mxu0 0
      %1362 = vmatprep.subr.bf16.mxu0 0
      %1363 = vmatpush2.bf16.msra.mxu0 0
      %1364 = vmatprep.subr.bf16.mxu0 0
      %1365 = vmatpush2.bf16.msra.mxu0 0
      %1366 = vmatprep.subr.bf16.mxu0 0
      %1367 = vmatpush2.bf16.msra.mxu0 0
      %1368 = vmatprep.subr.bf16.mxu0 0
      %1369 = vmatpush2.bf16.msra.mxu0 0
      %1370 = vmatprep.mubr.bf16.mxu0 0
      %1371 = vmatmul.mubr.bf16.gmra.mxu0 %v592
      %v1372 = vpop.f32.mrf.mxu0
      %v1373 = vadd.f32 0.0, %v1372
      %v1374 = vpop.f32.mrf.mxu0
      %v1375 = vpop.f32.mrf.mxu0
      %v1376 = vadd.f32 0.0, %v1375
      %v1377 = vpop.f32.mrf.mxu0
      %1378 = vmatprep.mubr.bf16.mxu0 0
      %1379 = vmatmul.mubr.bf16.gmra.mxu0 %v595
      %v1380 = vpop.f32.mrf.mxu0
      %v1381 = vadd.f32 0.0, %v1380
      %v1382 = vpop.f32.mrf.mxu0
      %v1383 = vpop.f32.mrf.mxu0
      %v1384 = vadd.f32 0.0, %v1383
      %v1385 = vpop.f32.mrf.mxu0
      %1386 = vmatprep.mubr.bf16.mxu0 0
      %1387 = vmatmul.mubr.bf16.gmra.mxu0 %v598
      %v1388 = vpop.f32.mrf.mxu0
      %v1389 = vadd.f32 0.0, %v1388
      %v1390 = vpop.f32.mrf.mxu0
      %v1391 = vpop.f32.mrf.mxu0
      %v1392 = vadd.f32 0.0, %v1391
      %v1393 = vpop.f32.mrf.mxu0
      %1394 = vmatprep.mubr.bf16.mxu0 0
      %1395 = vmatmul.mubr.bf16.gmra.mxu0 %v601
      %v1396 = vpop.f32.mrf.mxu0
      %v1397 = vadd.f32 0.0, %v1396
      %v1398 = vpop.f32.mrf.mxu0
      %v1399 = vpop.f32.mrf.mxu0
      %v1400 = vadd.f32 0.0, %v1399
      %v1401 = vpop.f32.mrf.mxu0
      %1402 = vmatprep.mubr.bf16.mxu0 0
      %1403 = vmatmul.mubr.bf16.gmra.mxu0 %v604
      %v1404 = vpop.f32.mrf.mxu0
      %v1405 = vadd.f32 0.0, %v1404
      %v1406 = vpop.f32.mrf.mxu0
      %v1407 = vpop.f32.mrf.mxu0
      %v1408 = vadd.f32 0.0, %v1407
      %v1409 = vpop.f32.mrf.mxu0
      %1410 = vmatprep.mubr.bf16.mxu0 0
      %1411 = vmatmul.mubr.bf16.gmra.mxu0 %v607
      %v1412 = vpop.f32.mrf.mxu0
      %v1413 = vadd.f32 0.0, %v1412
      %v1414 = vpop.f32.mrf.mxu0
      %v1415 = vpop.f32.mrf.mxu0
      %v1416 = vadd.f32 0.0, %v1415
      %v1417 = vpop.f32.mrf.mxu0
      %1418 = vmatprep.mubr.bf16.mxu0 0
      %1419 = vmatmul.mubr.bf16.gmra.mxu0 %v610
      %v1420 = vpop.f32.mrf.mxu0
      %v1421 = vadd.f32 0.0, %v1420
      %v1422 = vpop.f32.mrf.mxu0
      %v1423 = vpop.f32.mrf.mxu0
      %v1424 = vadd.f32 0.0, %v1423
      %v1425 = vpop.f32.mrf.mxu0
      %1426 = vmatprep.mubr.bf16.mxu0 0
      %1427 = vmatmul.mubr.bf16.gmra.mxu0 %v613
      %v1428 = vpop.f32.mrf.mxu0
      %v1429 = vadd.f32 0.0, %v1428
      %v1430 = vpop.f32.mrf.mxu0
      %v1431 = vpop.f32.mrf.mxu0
      %v1432 = vadd.f32 0.0, %v1431
      %v1433 = vpop.f32.mrf.mxu0
      %1434 = vmatprep.mubr.bf16.mxu0 0
      %1435 = vmatmul.mubr.bf16.gmra.mxu0 %v616
      %v1436 = vpop.f32.mrf.mxu0
      %v1437 = vadd.f32 0.0, %v1436
      %v1438 = vpop.f32.mrf.mxu0
      %v1439 = vpop.f32.mrf.mxu0
      %v1440 = vadd.f32 0.0, %v1439
      %v1441 = vpop.f32.mrf.mxu0
      %1442 = vmatprep.mubr.bf16.mxu0 0
      %1443 = vmatmul.mubr.bf16.gmra.mxu0 %v619
      %v1444 = vpop.f32.mrf.mxu0
      %v1445 = vadd.f32 0.0, %v1444
      %v1446 = vpop.f32.mrf.mxu0
      %v1447 = vpop.f32.mrf.mxu0
      %v1448 = vadd.f32 0.0, %v1447
      %v1449 = vpop.f32.mrf.mxu0
      %1450 = vmatprep.mubr.bf16.mxu0 0
      %1451 = vmatmul.mubr.bf16.gmra.mxu0 %v622
      %v1452 = vpop.f32.mrf.mxu0
      %v1453 = vadd.f32 0.0, %v1452
      %v1454 = vpop.f32.mrf.mxu0
      %v1455 = vpop.f32.mrf.mxu0
      %v1456 = vadd.f32 0.0, %v1455
      %v1457 = vpop.f32.mrf.mxu0
      %1458 = vmatprep.mubr.bf16.mxu0 0
      %1459 = vmatmul.mubr.bf16.gmra.mxu0 %v625
      %v1460 = vpop.f32.mrf.mxu0
      %v1461 = vadd.f32 0.0, %v1460
      %v1462 = vpop.f32.mrf.mxu0
      %v1463 = vpop.f32.mrf.mxu0
      %v1464 = vadd.f32 0.0, %v1463
      %v1465 = vpop.f32.mrf.mxu0
      %1466 = vmatprep.mubr.bf16.mxu0 0
      %1467 = vmatmul.mubr.bf16.gmra.mxu0 %v628
      %v1468 = vpop.f32.mrf.mxu0
      %v1469 = vadd.f32 0.0, %v1468
      %v1470 = vpop.f32.mrf.mxu0
      %v1471 = vpop.f32.mrf.mxu0
      %v1472 = vadd.f32 0.0, %v1471
      %v1473 = vpop.f32.mrf.mxu0
      %1474 = vmatprep.mubr.bf16.mxu0 0
      %1475 = vmatmul.mubr.bf16.gmra.mxu0 %v631
      %v1476 = vpop.f32.mrf.mxu0
      %v1477 = vadd.f32 0.0, %v1476
      %v1478 = vpop.f32.mrf.mxu0
      %v1479 = vpop.f32.mrf.mxu0
      %v1480 = vadd.f32 0.0, %v1479
      %v1481 = vpop.f32.mrf.mxu0
      %1482 = vmatprep.mubr.bf16.mxu0 0
      %1483 = vmatmul.mubr.bf16.gmra.mxu0 %v634
      %v1484 = vpop.f32.mrf.mxu0
      %v1485 = vadd.f32 0.0, %v1484
      %v1486 = vpop.f32.mrf.mxu0
      %v1487 = vpop.f32.mrf.mxu0
      %v1488 = vadd.f32 0.0, %v1487
      %v1489 = vpop.f32.mrf.mxu0
      %1490 = vmatprep.mubr.bf16.mxu0 0
      %1491 = vmatmul.mubr.bf16.gmra.mxu0 %v637
      %v1492 = vpop.f32.mrf.mxu0
      %v1493 = vadd.f32 0.0, %v1492
      %v1494 = vpop.f32.mrf.mxu0
      %v1495 = vpop.f32.mrf.mxu0
      %v1496 = vadd.f32 0.0, %v1495
      %v1497 = vpop.f32.mrf.mxu0
      %1498 = vmatprep.mubr.bf16.mxu0 0
      %1499 = vmatmul.mubr.bf16.gmra.mxu0 %v640
      %v1500 = vpop.f32.mrf.mxu0
      %v1501 = vadd.f32 0.0, %v1500
      %v1502 = vpop.f32.mrf.mxu0
      %v1503 = vpop.f32.mrf.mxu0
      %v1504 = vadd.f32 0.0, %v1503
      %v1505 = vpop.f32.mrf.mxu0
      %1506 = vmatprep.mubr.bf16.mxu0 0
      %1507 = vmatmul.mubr.bf16.gmra.mxu0 %v643
      %v1508 = vpop.f32.mrf.mxu0
      %v1509 = vadd.f32 0.0, %v1508
      %v1510 = vpop.f32.mrf.mxu0
      %v1511 = vpop.f32.mrf.mxu0
      %v1512 = vadd.f32 0.0, %v1511
      %v1513 = vpop.f32.mrf.mxu0
      %1514 = vmatprep.mubr.bf16.mxu0 0
      %1515 = vmatmul.mubr.bf16.gmra.mxu0 %v646
      %v1516 = vpop.f32.mrf.mxu0
      %v1517 = vadd.f32 0.0, %v1516
      %v1518 = vpop.f32.mrf.mxu0
      %v1519 = vpop.f32.mrf.mxu0
      %v1520 = vadd.f32 0.0, %v1519
      %v1521 = vpop.f32.mrf.mxu0
      %1522 = vmatprep.mubr.bf16.mxu0 0
      %1523 = vmatmul.mubr.bf16.gmra.mxu0 %v649
      %v1524 = vpop.f32.mrf.mxu0
      %v1525 = vadd.f32 0.0, %v1524
      %v1526 = vpop.f32.mrf.mxu0
      %v1527 = vpop.f32.mrf.mxu0
      %v1528 = vadd.f32 0.0, %v1527
      %v1529 = vpop.f32.mrf.mxu0
      %1530 = vmatprep.mubr.bf16.mxu0 0
      %1531 = vmatmul.mubr.bf16.gmra.mxu0 %v652
      %v1532 = vpop.f32.mrf.mxu0
      %v1533 = vadd.f32 0.0, %v1532
      %v1534 = vpop.f32.mrf.mxu0
      %v1535 = vpop.f32.mrf.mxu0
      %v1536 = vadd.f32 0.0, %v1535
      %v1537 = vpop.f32.mrf.mxu0
      %1538 = vmatprep.mubr.bf16.mxu0 0
      %1539 = vmatmul.mubr.bf16.gmra.mxu0 %v1330
      %v1540 = vpop.f32.mrf.mxu0
      %v1541 = vadd.f32 0.0, %v1540
      %v1542 = vpop.f32.mrf.mxu0
      %v1543 = vpop.f32.mrf.mxu0
      %v1544 = vadd.f32 0.0, %v1543
      %v1545 = vpop.f32.mrf.mxu0
      %1546 = vmatprep.mubr.bf16.mxu0 0
      %1547 = vmatmul.mubr.bf16.gmra.mxu0 %v1333
      %v1548 = vpop.f32.mrf.mxu0
      %v1549 = vadd.f32 0.0, %v1548
      %v1550 = vpop.f32.mrf.mxu0
      %v1551 = vpop.f32.mrf.mxu0
      %v1552 = vadd.f32 0.0, %v1551
      %v1553 = vpop.f32.mrf.mxu0
      %1554 = vmatprep.mubr.bf16.mxu0 0
      %1555 = vmatmul.mubr.bf16.gmra.mxu0 %v1336
      %v1556 = vpop.f32.mrf.mxu0
      %v1557 = vadd.f32 0.0, %v1556
      %v1558 = vpop.f32.mrf.mxu0
      %v1559 = vpop.f32.mrf.mxu0
      %v1560 = vadd.f32 0.0, %v1559
      %v1561 = vpop.f32.mrf.mxu0
      %1562 = vdwg.mxu0
      %v1563 = vadd.f32 %v1263, %v1373
      %v1564 = vadd.f32 %v1264, %v1376
      %v1565 = vadd.f32 %v1265, %v1381
      %v1566 = vadd.f32 %v1266, %v1384
      %v1567 = vadd.f32 %v1267, %v1389
      %v1568 = vadd.f32 %v1268, %v1392
      %v1569 = vadd.f32 %v1269, %v1397
      %v1570 = vadd.f32 %v1270, %v1400
      %v1571 = vadd.f32 %v1271, %v1405
      %v1572 = vadd.f32 %v1272, %v1408
      %v1573 = vadd.f32 %v1273, %v1413
      %v1574 = vadd.f32 %v1274, %v1416
      %v1575 = vadd.f32 %v1275, %v1421
      %v1576 = vadd.f32 %v1276, %v1424
      %v1577 = vadd.f32 %v1277, %v1429
      %v1578 = vadd.f32 %v1278, %v1432
      %v1579 = vadd.f32 %v1279, %v1437
      %v1580 = vadd.f32 %v1280, %v1440
      %v1581 = vadd.f32 %v1281, %v1445
      %v1582 = vadd.f32 %v1282, %v1448
      %v1583 = vadd.f32 %v1283, %v1453
      %v1584 = vadd.f32 %v1284, %v1456
      %v1585 = vadd.f32 %v1285, %v1461
      %v1586 = vadd.f32 %v1286, %v1464
      %v1587 = vadd.f32 %v1287, %v1469
      %v1588 = vadd.f32 %v1288, %v1472
      %v1589 = vadd.f32 %v1289, %v1477
      %v1590 = vadd.f32 %v1290, %v1480
      %v1591 = vadd.f32 %v1291, %v1485
      %v1592 = vadd.f32 %v1292, %v1488
      %v1593 = vadd.f32 %v1293, %v1493
      %v1594 = vadd.f32 %v1294, %v1496
      %v1595 = vadd.f32 %v1295, %v1501
      %v1596 = vadd.f32 %v1296, %v1504
      %v1597 = vadd.f32 %v1297, %v1509
      %v1598 = vadd.f32 %v1298, %v1512
      %v1599 = vadd.f32 %v1299, %v1517
      %v1600 = vadd.f32 %v1300, %v1520
      %v1601 = vadd.f32 %v1301, %v1525
      %v1602 = vadd.f32 %v1302, %v1528
      %v1603 = vadd.f32 %v1303, %v1533
      %v1604 = vadd.f32 %v1304, %v1536
      %v1605 = vadd.f32 %v1305, %v1541
      %v1606 = vadd.f32 %v1306, %v1544
      %v1607 = vadd.f32 %v1307, %v1549
      %v1608 = vadd.f32 %v1308, %v1552
      %v1609 = vadd.f32 %v1309, %v1557
      %v1610 = vadd.f32 %v1310, %v1560
      %s1611 = scalar_lea.vmem %s281, 8
      %v1612 = vld [vmem:[%s1611] sm:$0xf]
      %v1613 = vld [vmem:[%s1611 + $0x4] sm:$0xf]
      %v1614 = vpack.c.b16 %v933, %v933
      %vm1615 = vsmask.f32 7424
      %v1616 = vshrl.u32 %v551, 16
      %v1618 = vshll.u32 %v551, 16
      %v1620 = vrot.slane %v1618, 1
      %v1621 = vor.u32 %v1616, %v1620
      %v1622 = vshll.u32 %v552, 16
      %v1624 = vrot.slane %v1622, 1
      %v1625 = vsel %vm1615, %v1621, %v1624
      %v1626 = vshrl.u32 %v552, 16
      %v1628 = vor.u32 %v1626, %v1624
      %v1629 = vshll.u32 %v553, 16
      %v1631 = vrot.slane %v1629, 1
      %v1632 = vsel %vm1615, %v1628, %v1631
      %v1633 = vshrl.u32 %v553, 16
      %v1635 = vor.u32 %v1633, %v1631
      %v1636 = vshll.u32 %v554, 16
      %v1638 = vrot.slane %v1636, 1
      %v1639 = vsel %vm1615, %v1635, %v1638
      %v1640 = vshrl.u32 %v554, 16
      %v1642 = vor.u32 %v1640, %v1638
      %v1643 = vshll.u32 %v555, 16
      %v1645 = vrot.slane %v1643, 1
      %v1646 = vsel %vm1615, %v1642, %v1645
      %v1647 = vshrl.u32 %v555, 16
      %v1649 = vor.u32 %v1647, %v1645
      %v1650 = vshll.u32 %v556, 16
      %v1652 = vrot.slane %v1650, 1
      %v1653 = vsel %vm1615, %v1649, %v1652
      %v1654 = vshrl.u32 %v556, 16
      %v1656 = vor.u32 %v1654, %v1652
      %v1657 = vshll.u32 %v557, 16
      %v1659 = vrot.slane %v1657, 1
      %v1660 = vsel %vm1615, %v1656, %v1659
      %v1661 = vshrl.u32 %v557, 16
      %v1663 = vor.u32 %v1661, %v1659
      %v1664 = vshll.u32 %v558, 16
      %v1666 = vrot.slane %v1664, 1
      %v1667 = vsel %vm1615, %v1663, %v1666
      %v1668 = vshrl.u32 %v558, 16
      %v1670 = vor.u32 %v1668, %v1666
      %v1671 = vshll.u32 %v559, 16
      %v1673 = vrot.slane %v1671, 1
      %v1674 = vsel %vm1615, %v1670, %v1673
      %v1675 = vshrl.u32 %v559, 16
      %v1677 = vor.u32 %v1675, %v1673
      %v1678 = vshll.u32 %v560, 16
      %v1680 = vrot.slane %v1678, 1
      %v1681 = vsel %vm1615, %v1677, %v1680
      %v1682 = vshrl.u32 %v560, 16
      %v1684 = vor.u32 %v1682, %v1680
      %v1685 = vshll.u32 %v561, 16
      %v1687 = vrot.slane %v1685, 1
      %v1688 = vsel %vm1615, %v1684, %v1687
      %v1689 = vshrl.u32 %v561, 16
      %v1691 = vor.u32 %v1689, %v1687
      %v1692 = vshll.u32 %v562, 16
      %v1694 = vrot.slane %v1692, 1
      %v1695 = vsel %vm1615, %v1691, %v1694
      %v1696 = vshrl.u32 %v562, 16
      %v1698 = vor.u32 %v1696, %v1694
      %v1699 = vshll.u32 %v563, 16
      %v1701 = vrot.slane %v1699, 1
      %v1702 = vsel %vm1615, %v1698, %v1701
      %v1703 = vshrl.u32 %v563, 16
      %v1705 = vor.u32 %v1703, %v1701
      %v1706 = vshll.u32 %v564, 16
      %v1708 = vrot.slane %v1706, 1
      %v1709 = vsel %vm1615, %v1705, %v1708
      %v1710 = vshrl.u32 %v564, 16
      %v1712 = vor.u32 %v1710, %v1708
      %v1713 = vshll.u32 %v565, 16
      %v1715 = vrot.slane %v1713, 1
      %v1716 = vsel %vm1615, %v1712, %v1715
      %v1717 = vshrl.u32 %v565, 16
      %v1719 = vor.u32 %v1717, %v1715
      %v1720 = vshll.u32 %v566, 16
      %v1722 = vrot.slane %v1720, 1
      %v1723 = vsel %vm1615, %v1719, %v1722
      %v1724 = vshrl.u32 %v566, 16
      %v1726 = vor.u32 %v1724, %v1722
      %v1727 = vshll.u32 %v567, 16
      %v1729 = vrot.slane %v1727, 1
      %v1730 = vsel %vm1615, %v1726, %v1729
      %v1731 = vshrl.u32 %v567, 16
      %v1733 = vor.u32 %v1731, %v1729
      %v1734 = vshll.u32 %v568, 16
      %v1736 = vrot.slane %v1734, 1
      %v1737 = vsel %vm1615, %v1733, %v1736
      %v1738 = vshrl.u32 %v568, 16
      %v1740 = vor.u32 %v1738, %v1736
      %v1741 = vshll.u32 %v569, 16
      %v1743 = vrot.slane %v1741, 1
      %v1744 = vsel %vm1615, %v1740, %v1743
      %v1745 = vshrl.u32 %v569, 16
      %v1747 = vor.u32 %v1745, %v1743
      %v1748 = vshll.u32 %v570, 16
      %v1750 = vrot.slane %v1748, 1
      %v1751 = vsel %vm1615, %v1747, %v1750
      %v1752 = vshrl.u32 %v570, 16
      %v1754 = vor.u32 %v1752, %v1750
      %v1755 = vshll.u32 %v571, 16
      %v1757 = vrot.slane %v1755, 1
      %v1758 = vsel %vm1615, %v1754, %v1757
      %v1759 = vshrl.u32 %v571, 16
      %v1761 = vor.u32 %v1759, %v1757
      %v1762 = vshll.u32 %v572, 16
      %v1764 = vrot.slane %v1762, 1
      %v1765 = vsel %vm1615, %v1761, %v1764
      %v1766 = vshrl.u32 %v572, 16
      %v1768 = vor.u32 %v1766, %v1764
      %v1769 = vshll.u32 %v573, 16
      %v1771 = vrot.slane %v1769, 1
      %v1772 = vsel %vm1615, %v1768, %v1771
      %v1773 = vshrl.u32 %v573, 16
      %v1775 = vor.u32 %v1773, %v1771
      %v1776 = vshll.u32 %v574, 16
      %v1778 = vrot.slane %v1776, 1
      %v1779 = vsel %vm1615, %v1775, %v1778
      %v1780 = vshrl.u32 %v574, 16
      %v1782 = vor.u32 %v1780, %v1778
      %v1784 = vshll.u32 %v1614, 16
      %v1786 = vrot.slane %v1784, 1
      %v1787 = vsel %vm1615, %v1782, %v1786
      %v1790 = vunpack.c.l.b16 %v1612
      %v1791 = vunpack.c.l.b16 %v1613
      %v1792 = vpack.c.b16 %v1791, %v1790
      %v1795 = vsel %vm581, %v1625, 0
      %v1798 = vsel %vm581, %v1632, 0
      %v1801 = vsel %vm581, %v1639, 0
      %v1804 = vsel %vm581, %v1646, 0
      %v1807 = vsel %vm581, %v1653, 0
      %v1810 = vsel %vm581, %v1660, 0
      %v1813 = vsel %vm581, %v1667, 0
      %v1816 = vsel %vm581, %v1674, 0
      %v1819 = vsel %vm581, %v1681, 0
      %v1822 = vsel %vm581, %v1688, 0
      %v1825 = vsel %vm581, %v1695, 0
      %v1828 = vsel %vm581, %v1702, 0
      %v1831 = vsel %vm581, %v1709, 0
      %v1834 = vsel %vm581, %v1716, 0
      %v1837 = vsel %vm581, %v1723, 0
      %v1840 = vsel %vm581, %v1730, 0
      %v1843 = vsel %vm581, %v1737, 0
      %v1846 = vsel %vm581, %v1744, 0
      %v1849 = vsel %vm581, %v1751, 0
      %v1852 = vsel %vm581, %v1758, 0
      %v1855 = vsel %vm581, %v1765, 0
      %v1858 = vsel %vm581, %v1772, 0
      %v1861 = vsel %vm581, %v1779, 0
      %v1864 = vsel %vm581, %v1787, 0
      %1866 = vmatprep.subr.bf16.mxu0 0
      %1867 = vmatpush1.bf16.msra.mxu0 0
      %1868 = vmatprep.subr.bf16.mxu0 0
      %1869 = vmatpush1.bf16.msra.mxu0 0
      %1870 = vmatprep.subr.bf16.mxu0 0
      %1871 = vmatpush1.bf16.msra.mxu0 0
      %1872 = vmatprep.subr.bf16.mxu0 0
      %1873 = vmatpush1.bf16.msra.mxu0 0
      %1874 = vmatprep.subr.bf16.mxu0 0
      %1875 = vmatpush1.bf16.msra.mxu0 0
      %1876 = vmatprep.subr.bf16.mxu0 0
      %1877 = vmatpush1.bf16.msra.mxu0 0
      %1878 = vmatprep.subr.bf16.mxu0 0
      %1879 = vmatpush1.bf16.msra.mxu0 0
      %1880 = vmatprep.subr.bf16.mxu0 0
      %1881 = vmatpush1.bf16.msra.mxu0 %v1792
      %1882 = vmatprep.subr.bf16.mxu0 0
      %1883 = vmatpush2.bf16.msra.mxu0 0
      %1884 = vmatprep.subr.bf16.mxu0 0
      %1885 = vmatpush2.bf16.msra.mxu0 0
      %1886 = vmatprep.subr.bf16.mxu0 0
      %1887 = vmatpush2.bf16.msra.mxu0 0
      %1888 = vmatprep.subr.bf16.mxu0 0
      %1889 = vmatpush2.bf16.msra.mxu0 0
      %1890 = vmatprep.subr.bf16.mxu0 0
      %1891 = vmatpush2.bf16.msra.mxu0 0
      %1892 = vmatprep.subr.bf16.mxu0 0
      %1893 = vmatpush2.bf16.msra.mxu0 0
      %1894 = vmatprep.subr.bf16.mxu0 0
      %1895 = vmatpush2.bf16.msra.mxu0 0
      %1896 = vmatprep.subr.bf16.mxu0 0
      %1897 = vmatpush2.bf16.msra.mxu0 0
      %1898 = vmatprep.mubr.bf16.mxu0 0
      %1899 = vmatmul.mubr.bf16.gmra.mxu0 %v1795
      %v1900 = vpop.f32.mrf.mxu0
      %v1901 = vadd.f32 0.0, %v1900
      %v1902 = vpop.f32.mrf.mxu0
      %v1903 = vpop.f32.mrf.mxu0
      %v1904 = vadd.f32 0.0, %v1903
      %v1905 = vpop.f32.mrf.mxu0
      %1906 = vmatprep.mubr.bf16.mxu0 0
      %1907 = vmatmul.mubr.bf16.gmra.mxu0 %v1798
      %v1908 = vpop.f32.mrf.mxu0
      %v1909 = vadd.f32 0.0, %v1908
      %v1910 = vpop.f32.mrf.mxu0
      %v1911 = vpop.f32.mrf.mxu0
      %v1912 = vadd.f32 0.0, %v1911
      %v1913 = vpop.f32.mrf.mxu0
      %1914 = vmatprep.mubr.bf16.mxu0 0
      %1915 = vmatmul.mubr.bf16.gmra.mxu0 %v1801
      %v1916 = vpop.f32.mrf.mxu0
      %v1917 = vadd.f32 0.0, %v1916
      %v1918 = vpop.f32.mrf.mxu0
      %v1919 = vpop.f32.mrf.mxu0
      %v1920 = vadd.f32 0.0, %v1919
      %v1921 = vpop.f32.mrf.mxu0
      %1922 = vmatprep.mubr.bf16.mxu0 0
      %1923 = vmatmul.mubr.bf16.gmra.mxu0 %v1804
      %v1924 = vpop.f32.mrf.mxu0
      %v1925 = vadd.f32 0.0, %v1924
      %v1926 = vpop.f32.mrf.mxu0
      %v1927 = vpop.f32.mrf.mxu0
      %v1928 = vadd.f32 0.0, %v1927
      %v1929 = vpop.f32.mrf.mxu0
      %1930 = vmatprep.mubr.bf16.mxu0 0
      %1931 = vmatmul.mubr.bf16.gmra.mxu0 %v1807
      %v1932 = vpop.f32.mrf.mxu0
      %v1933 = vadd.f32 0.0, %v1932
      %v1934 = vpop.f32.mrf.mxu0
      %v1935 = vpop.f32.mrf.mxu0
      %v1936 = vadd.f32 0.0, %v1935
      %v1937 = vpop.f32.mrf.mxu0
      %1938 = vmatprep.mubr.bf16.mxu0 0
      %1939 = vmatmul.mubr.bf16.gmra.mxu0 %v1810
      %v1940 = vpop.f32.mrf.mxu0
      %v1941 = vadd.f32 0.0, %v1940
      %v1942 = vpop.f32.mrf.mxu0
      %v1943 = vpop.f32.mrf.mxu0
      %v1944 = vadd.f32 0.0, %v1943
      %v1945 = vpop.f32.mrf.mxu0
      %1946 = vmatprep.mubr.bf16.mxu0 0
      %1947 = vmatmul.mubr.bf16.gmra.mxu0 %v1813
      %v1948 = vpop.f32.mrf.mxu0
      %v1949 = vadd.f32 0.0, %v1948
      %v1950 = vpop.f32.mrf.mxu0
      %v1951 = vpop.f32.mrf.mxu0
      %v1952 = vadd.f32 0.0, %v1951
      %v1953 = vpop.f32.mrf.mxu0
      %1954 = vmatprep.mubr.bf16.mxu0 0
      %1955 = vmatmul.mubr.bf16.gmra.mxu0 %v1816
      %v1956 = vpop.f32.mrf.mxu0
      %v1957 = vadd.f32 0.0, %v1956
      %v1958 = vpop.f32.mrf.mxu0
      %v1959 = vpop.f32.mrf.mxu0
      %v1960 = vadd.f32 0.0, %v1959
      %v1961 = vpop.f32.mrf.mxu0
      %1962 = vmatprep.mubr.bf16.mxu0 0
      %1963 = vmatmul.mubr.bf16.gmra.mxu0 %v1819
      %v1964 = vpop.f32.mrf.mxu0
      %v1965 = vadd.f32 0.0, %v1964
      %v1966 = vpop.f32.mrf.mxu0
      %v1967 = vpop.f32.mrf.mxu0
      %v1968 = vadd.f32 0.0, %v1967
      %v1969 = vpop.f32.mrf.mxu0
      %1970 = vmatprep.mubr.bf16.mxu0 0
      %1971 = vmatmul.mubr.bf16.gmra.mxu0 %v1822
      %v1972 = vpop.f32.mrf.mxu0
      %v1973 = vadd.f32 0.0, %v1972
      %v1974 = vpop.f32.mrf.mxu0
      %v1975 = vpop.f32.mrf.mxu0
      %v1976 = vadd.f32 0.0, %v1975
      %v1977 = vpop.f32.mrf.mxu0
      %1978 = vmatprep.mubr.bf16.mxu0 0
      %1979 = vmatmul.mubr.bf16.gmra.mxu0 %v1825
      %v1980 = vpop.f32.mrf.mxu0
      %v1981 = vadd.f32 0.0, %v1980
      %v1982 = vpop.f32.mrf.mxu0
      %v1983 = vpop.f32.mrf.mxu0
      %v1984 = vadd.f32 0.0, %v1983
      %v1985 = vpop.f32.mrf.mxu0
      %1986 = vmatprep.mubr.bf16.mxu0 0
      %1987 = vmatmul.mubr.bf16.gmra.mxu0 %v1828
      %v1988 = vpop.f32.mrf.mxu0
      %v1989 = vadd.f32 0.0, %v1988
      %v1990 = vpop.f32.mrf.mxu0
      %v1991 = vpop.f32.mrf.mxu0
      %v1992 = vadd.f32 0.0, %v1991
      %v1993 = vpop.f32.mrf.mxu0
      %1994 = vmatprep.mubr.bf16.mxu0 0
      %1995 = vmatmul.mubr.bf16.gmra.mxu0 %v1831
      %v1996 = vpop.f32.mrf.mxu0
      %v1997 = vadd.f32 0.0, %v1996
      %v1998 = vpop.f32.mrf.mxu0
      %v1999 = vpop.f32.mrf.mxu0
      %v2000 = vadd.f32 0.0, %v1999
      %v2001 = vpop.f32.mrf.mxu0
      %2002 = vmatprep.mubr.bf16.mxu0 0
      %2003 = vmatmul.mubr.bf16.gmra.mxu0 %v1834
      %v2004 = vpop.f32.mrf.mxu0
      %v2005 = vadd.f32 0.0, %v2004
      %v2006 = vpop.f32.mrf.mxu0
      %v2007 = vpop.f32.mrf.mxu0
      %v2008 = vadd.f32 0.0, %v2007
      %v2009 = vpop.f32.mrf.mxu0
      %2010 = vmatprep.mubr.bf16.mxu0 0
      %2011 = vmatmul.mubr.bf16.gmra.mxu0 %v1837
      %v2012 = vpop.f32.mrf.mxu0
      %v2013 = vadd.f32 0.0, %v2012
      %v2014 = vpop.f32.mrf.mxu0
      %v2015 = vpop.f32.mrf.mxu0
      %v2016 = vadd.f32 0.0, %v2015
      %v2017 = vpop.f32.mrf.mxu0
      %2018 = vmatprep.mubr.bf16.mxu0 0
      %2019 = vmatmul.mubr.bf16.gmra.mxu0 %v1840
      %v2020 = vpop.f32.mrf.mxu0
      %v2021 = vadd.f32 0.0, %v2020
      %v2022 = vpop.f32.mrf.mxu0
      %v2023 = vpop.f32.mrf.mxu0
      %v2024 = vadd.f32 0.0, %v2023
      %v2025 = vpop.f32.mrf.mxu0
      %2026 = vmatprep.mubr.bf16.mxu0 0
      %2027 = vmatmul.mubr.bf16.gmra.mxu0 %v1843
      %v2028 = vpop.f32.mrf.mxu0
      %v2029 = vadd.f32 0.0, %v2028
      %v2030 = vpop.f32.mrf.mxu0
      %v2031 = vpop.f32.mrf.mxu0
      %v2032 = vadd.f32 0.0, %v2031
      %v2033 = vpop.f32.mrf.mxu0
      %2034 = vmatprep.mubr.bf16.mxu0 0
      %2035 = vmatmul.mubr.bf16.gmra.mxu0 %v1846
      %v2036 = vpop.f32.mrf.mxu0
      %v2037 = vadd.f32 0.0, %v2036
      %v2038 = vpop.f32.mrf.mxu0
      %v2039 = vpop.f32.mrf.mxu0
      %v2040 = vadd.f32 0.0, %v2039
      %v2041 = vpop.f32.mrf.mxu0
      %2042 = vmatprep.mubr.bf16.mxu0 0
      %2043 = vmatmul.mubr.bf16.gmra.mxu0 %v1849
      %v2044 = vpop.f32.mrf.mxu0
      %v2045 = vadd.f32 0.0, %v2044
      %v2046 = vpop.f32.mrf.mxu0
      %v2047 = vpop.f32.mrf.mxu0
      %v2048 = vadd.f32 0.0, %v2047
      %v2049 = vpop.f32.mrf.mxu0
      %2050 = vmatprep.mubr.bf16.mxu0 0
      %2051 = vmatmul.mubr.bf16.gmra.mxu0 %v1852
      %v2052 = vpop.f32.mrf.mxu0
      %v2053 = vadd.f32 0.0, %v2052
      %v2054 = vpop.f32.mrf.mxu0
      %v2055 = vpop.f32.mrf.mxu0
      %v2056 = vadd.f32 0.0, %v2055
      %v2057 = vpop.f32.mrf.mxu0
      %2058 = vmatprep.mubr.bf16.mxu0 0
      %2059 = vmatmul.mubr.bf16.gmra.mxu0 %v1855
      %v2060 = vpop.f32.mrf.mxu0
      %v2061 = vadd.f32 0.0, %v2060
      %v2062 = vpop.f32.mrf.mxu0
      %v2063 = vpop.f32.mrf.mxu0
      %v2064 = vadd.f32 0.0, %v2063
      %v2065 = vpop.f32.mrf.mxu0
      %2066 = vmatprep.mubr.bf16.mxu0 0
      %2067 = vmatmul.mubr.bf16.gmra.mxu0 %v1858
      %v2068 = vpop.f32.mrf.mxu0
      %v2069 = vadd.f32 0.0, %v2068
      %v2070 = vpop.f32.mrf.mxu0
      %v2071 = vpop.f32.mrf.mxu0
      %v2072 = vadd.f32 0.0, %v2071
      %v2073 = vpop.f32.mrf.mxu0
      %2074 = vmatprep.mubr.bf16.mxu0 0
      %2075 = vmatmul.mubr.bf16.gmra.mxu0 %v1861
      %v2076 = vpop.f32.mrf.mxu0
      %v2077 = vadd.f32 0.0, %v2076
      %v2078 = vpop.f32.mrf.mxu0
      %v2079 = vpop.f32.mrf.mxu0
      %v2080 = vadd.f32 0.0, %v2079
      %v2081 = vpop.f32.mrf.mxu0
      %2082 = vmatprep.mubr.bf16.mxu0 0
      %2083 = vmatmul.mubr.bf16.gmra.mxu0 %v1864
      %v2084 = vpop.f32.mrf.mxu0
      %v2085 = vadd.f32 0.0, %v2084
      %v2086 = vpop.f32.mrf.mxu0
      %v2087 = vpop.f32.mrf.mxu0
      %v2088 = vadd.f32 0.0, %v2087
      %v2089 = vpop.f32.mrf.mxu0
      %2090 = vdwg.mxu0
      %v2091 = vadd.f32 %v1563, %v1901
      %v2092 = vadd.f32 %v1564, %v1904
      %v2093 = vadd.f32 %v1565, %v1909
      %v2094 = vadd.f32 %v1566, %v1912
      %v2095 = vadd.f32 %v1567, %v1917
      %v2096 = vadd.f32 %v1568, %v1920
      %v2097 = vadd.f32 %v1569, %v1925
      %v2098 = vadd.f32 %v1570, %v1928
      %v2099 = vadd.f32 %v1571, %v1933
      %v2100 = vadd.f32 %v1572, %v1936
      %v2101 = vadd.f32 %v1573, %v1941
      %v2102 = vadd.f32 %v1574, %v1944
      %v2103 = vadd.f32 %v1575, %v1949
      %v2104 = vadd.f32 %v1576, %v1952
      %v2105 = vadd.f32 %v1577, %v1957
      %v2106 = vadd.f32 %v1578, %v1960
      %v2107 = vadd.f32 %v1579, %v1965
      %v2108 = vadd.f32 %v1580, %v1968
      %v2109 = vadd.f32 %v1581, %v1973
      %v2110 = vadd.f32 %v1582, %v1976
      %v2111 = vadd.f32 %v1583, %v1981
      %v2112 = vadd.f32 %v1584, %v1984
      %v2113 = vadd.f32 %v1585, %v1989
      %v2114 = vadd.f32 %v1586, %v1992
      %v2115 = vadd.f32 %v1587, %v1997
      %v2116 = vadd.f32 %v1588, %v2000
      %v2117 = vadd.f32 %v1589, %v2005
      %v2118 = vadd.f32 %v1590, %v2008
      %v2119 = vadd.f32 %v1591, %v2013
      %v2120 = vadd.f32 %v1592, %v2016
      %v2121 = vadd.f32 %v1593, %v2021
      %v2122 = vadd.f32 %v1594, %v2024
      %v2123 = vadd.f32 %v1595, %v2029
      %v2124 = vadd.f32 %v1596, %v2032
      %v2125 = vadd.f32 %v1597, %v2037
      %v2126 = vadd.f32 %v1598, %v2040
      %v2127 = vadd.f32 %v1599, %v2045
      %v2128 = vadd.f32 %v1600, %v2048
      %v2129 = vadd.f32 %v1601, %v2053
      %v2130 = vadd.f32 %v1602, %v2056
      %v2131 = vadd.f32 %v1603, %v2061
      %v2132 = vadd.f32 %v1604, %v2064
      %v2133 = vadd.f32 %v1605, %v2069
      %v2134 = vadd.f32 %v1606, %v2072
      %v2135 = vadd.f32 %v1607, %v2077
      %v2136 = vadd.f32 %v1608, %v2080
      %v2137 = vadd.f32 %v1609, %v2085
      %v2138 = vadd.f32 %v1610, %v2088
      %s2139 = scalar_lea.vmem %s281, 32
      %v2140 = vld [vmem:[%s2139] sm:$0xf]
      %v2141 = vld [vmem:[%s2139 + $0x4] sm:$0xf]
      %v2142 = vpack.c.b16 %v1317, %v1317
      %v2143 = vshrl.u32 %v936, 16
      %v2145 = vshll.u32 %v936, 16
      %v2147 = vrot.slane %v2145, 1
      %v2148 = vor.u32 %v2143, %v2147
      %v2149 = vshll.u32 %v937, 16
      %v2151 = vrot.slane %v2149, 1
      %v2152 = vsel %vm1615, %v2148, %v2151
      %v2153 = vshrl.u32 %v937, 16
      %v2155 = vor.u32 %v2153, %v2151
      %v2156 = vshll.u32 %v938, 16
      %v2158 = vrot.slane %v2156, 1
      %v2159 = vsel %vm1615, %v2155, %v2158
      %v2160 = vshrl.u32 %v938, 16
      %v2162 = vor.u32 %v2160, %v2158
      %v2163 = vshll.u32 %v939, 16
      %v2165 = vrot.slane %v2163, 1
      %v2166 = vsel %vm1615, %v2162, %v2165
      %v2167 = vshrl.u32 %v939, 16
      %v2169 = vor.u32 %v2167, %v2165
      %v2170 = vshll.u32 %v940, 16
      %v2172 = vrot.slane %v2170, 1
      %v2173 = vsel %vm1615, %v2169, %v2172
      %v2174 = vshrl.u32 %v940, 16
      %v2176 = vor.u32 %v2174, %v2172
      %v2177 = vshll.u32 %v941, 16
      %v2179 = vrot.slane %v2177, 1
      %v2180 = vsel %vm1615, %v2176, %v2179
      %v2181 = vshrl.u32 %v941, 16
      %v2183 = vor.u32 %v2181, %v2179
      %v2184 = vshll.u32 %v942, 16
      %v2186 = vrot.slane %v2184, 1
      %v2187 = vsel %vm1615, %v2183, %v2186
      %v2188 = vshrl.u32 %v942, 16
      %v2190 = vor.u32 %v2188, %v2186
      %v2191 = vshll.u32 %v943, 16
      %v2193 = vrot.slane %v2191, 1
      %v2194 = vsel %vm1615, %v2190, %v2193
      %v2195 = vshrl.u32 %v943, 16
      %v2197 = vor.u32 %v2195, %v2193
      %v2198 = vshll.u32 %v944, 16
      %v2200 = vrot.slane %v2198, 1
      %v2201 = vsel %vm1615, %v2197, %v2200
      %v2202 = vshrl.u32 %v944, 16
      %v2204 = vor.u32 %v2202, %v2200
      %v2205 = vshll.u32 %v945, 16
      %v2207 = vrot.slane %v2205, 1
      %v2208 = vsel %vm1615, %v2204, %v2207
      %v2209 = vshrl.u32 %v945, 16
      %v2211 = vor.u32 %v2209, %v2207
      %v2212 = vshll.u32 %v946, 16
      %v2214 = vrot.slane %v2212, 1
      %v2215 = vsel %vm1615, %v2211, %v2214
      %v2216 = vshrl.u32 %v946, 16
      %v2218 = vor.u32 %v2216, %v2214
      %v2219 = vshll.u32 %v947, 16
      %v2221 = vrot.slane %v2219, 1
      %v2222 = vsel %vm1615, %v2218, %v2221
      %v2223 = vshrl.u32 %v947, 16
      %v2225 = vor.u32 %v2223, %v2221
      %v2226 = vshll.u32 %v948, 16
      %v2228 = vrot.slane %v2226, 1
      %v2229 = vsel %vm1615, %v2225, %v2228
      %v2230 = vshrl.u32 %v948, 16
      %v2232 = vor.u32 %v2230, %v2228
      %v2233 = vshll.u32 %v949, 16
      %v2235 = vrot.slane %v2233, 1
      %v2236 = vsel %vm1615, %v2232, %v2235
      %v2237 = vshrl.u32 %v949, 16
      %v2239 = vor.u32 %v2237, %v2235
      %v2240 = vshll.u32 %v950, 16
      %v2242 = vrot.slane %v2240, 1
      %v2243 = vsel %vm1615, %v2239, %v2242
      %v2244 = vshrl.u32 %v950, 16
      %v2246 = vor.u32 %v2244, %v2242
      %v2247 = vshll.u32 %v951, 16
      %v2249 = vrot.slane %v2247, 1
      %v2250 = vsel %vm1615, %v2246, %v2249
      %v2251 = vshrl.u32 %v951, 16
      %v2253 = vor.u32 %v2251, %v2249
      %v2254 = vshll.u32 %v952, 16
      %v2256 = vrot.slane %v2254, 1
      %v2257 = vsel %vm1615, %v2253, %v2256
      %v2258 = vshrl.u32 %v952, 16
      %v2260 = vor.u32 %v2258, %v2256
      %v2261 = vshll.u32 %v953, 16
      %v2263 = vrot.slane %v2261, 1
      %v2264 = vsel %vm1615, %v2260, %v2263
      %v2265 = vshrl.u32 %v953, 16
      %v2267 = vor.u32 %v2265, %v2263
      %v2268 = vshll.u32 %v954, 16
      %v2270 = vrot.slane %v2268, 1
      %v2271 = vsel %vm1615, %v2267, %v2270
      %v2272 = vshrl.u32 %v954, 16
      %v2274 = vor.u32 %v2272, %v2270
      %v2275 = vshll.u32 %v955, 16
      %v2277 = vrot.slane %v2275, 1
      %v2278 = vsel %vm1615, %v2274, %v2277
      %v2279 = vshrl.u32 %v955, 16
      %v2281 = vor.u32 %v2279, %v2277
      %v2282 = vshll.u32 %v956, 16
      %v2284 = vrot.slane %v2282, 1
      %v2285 = vsel %vm1615, %v2281, %v2284
      %v2286 = vshrl.u32 %v956, 16
      %v2288 = vor.u32 %v2286, %v2284
      %v2289 = vshll.u32 %v957, 16
      %v2291 = vrot.slane %v2289, 1
      %v2292 = vsel %vm1615, %v2288, %v2291
      %v2293 = vshrl.u32 %v957, 16
      %v2295 = vor.u32 %v2293, %v2291
      %v2296 = vshll.u32 %v958, 16
      %v2298 = vrot.slane %v2296, 1
      %v2299 = vsel %vm1615, %v2295, %v2298
      %v2300 = vshrl.u32 %v958, 16
      %v2302 = vor.u32 %v2300, %v2298
      %v2303 = vshll.u32 %v959, 16
      %v2305 = vrot.slane %v2303, 1
      %v2306 = vsel %vm1615, %v2302, %v2305
      %v2307 = vshrl.u32 %v959, 16
      %v2309 = vor.u32 %v2307, %v2305
      %v2311 = vshll.u32 %v2142, 16
      %v2313 = vrot.slane %v2311, 1
      %v2314 = vsel %vm1615, %v2309, %v2313
      %v2317 = vunpack.c.l.b16 %v2140
      %v2318 = vunpack.c.l.b16 %v2141
      %v2319 = vpack.c.b16 %v2318, %v2317
      %v2322 = vsel %vm581, %v2152, 0
      %v2325 = vsel %vm581, %v2159, 0
      %v2328 = vsel %vm581, %v2166, 0
      %v2331 = vsel %vm581, %v2173, 0
      %v2334 = vsel %vm581, %v2180, 0
      %v2337 = vsel %vm581, %v2187, 0
      %v2340 = vsel %vm581, %v2194, 0
      %v2343 = vsel %vm581, %v2201, 0
      %v2346 = vsel %vm581, %v2208, 0
      %v2349 = vsel %vm581, %v2215, 0
      %v2352 = vsel %vm581, %v2222, 0
      %v2355 = vsel %vm581, %v2229, 0
      %v2358 = vsel %vm581, %v2236, 0
      %v2361 = vsel %vm581, %v2243, 0
      %v2364 = vsel %vm581, %v2250, 0
      %v2367 = vsel %vm581, %v2257, 0
      %v2370 = vsel %vm581, %v2264, 0
      %v2373 = vsel %vm581, %v2271, 0
      %v2376 = vsel %vm581, %v2278, 0
      %v2379 = vsel %vm581, %v2285, 0
      %v2382 = vsel %vm581, %v2292, 0
      %v2385 = vsel %vm581, %v2299, 0
      %v2388 = vsel %vm581, %v2306, 0
      %v2391 = vsel %vm581, %v2314, 0
      %2393 = vmatprep.subr.bf16.mxu0 0
      %2394 = vmatpush1.bf16.msra.mxu0 0
      %2395 = vmatprep.subr.bf16.mxu0 0
      %2396 = vmatpush1.bf16.msra.mxu0 0
      %2397 = vmatprep.subr.bf16.mxu0 0
      %2398 = vmatpush1.bf16.msra.mxu0 0
      %2399 = vmatprep.subr.bf16.mxu0 0
      %2400 = vmatpush1.bf16.msra.mxu0 0
      %2401 = vmatprep.subr.bf16.mxu0 0
      %2402 = vmatpush1.bf16.msra.mxu0 0
      %2403 = vmatprep.subr.bf16.mxu0 0
      %2404 = vmatpush1.bf16.msra.mxu0 0
      %2405 = vmatprep.subr.bf16.mxu0 0
      %2406 = vmatpush1.bf16.msra.mxu0 0
      %2407 = vmatprep.subr.bf16.mxu0 0
      %2408 = vmatpush1.bf16.msra.mxu0 %v2319
      %2409 = vmatprep.subr.bf16.mxu0 0
      %2410 = vmatpush2.bf16.msra.mxu0 0
      %2411 = vmatprep.subr.bf16.mxu0 0
      %2412 = vmatpush2.bf16.msra.mxu0 0
      %2413 = vmatprep.subr.bf16.mxu0 0
      %2414 = vmatpush2.bf16.msra.mxu0 0
      %2415 = vmatprep.subr.bf16.mxu0 0
      %2416 = vmatpush2.bf16.msra.mxu0 0
      %2417 = vmatprep.subr.bf16.mxu0 0
      %2418 = vmatpush2.bf16.msra.mxu0 0
      %2419 = vmatprep.subr.bf16.mxu0 0
      %2420 = vmatpush2.bf16.msra.mxu0 0
      %2421 = vmatprep.subr.bf16.mxu0 0
      %2422 = vmatpush2.bf16.msra.mxu0 0
      %2423 = vmatprep.subr.bf16.mxu0 0
      %2424 = vmatpush2.bf16.msra.mxu0 0
      %2425 = vmatprep.mubr.bf16.mxu0 0
      %2426 = vmatmul.mubr.bf16.gmra.mxu0 %v2322
      %v2427 = vpop.f32.mrf.mxu0
      %v2428 = vadd.f32 0.0, %v2427
      %v2429 = vpop.f32.mrf.mxu0
      %v2430 = vpop.f32.mrf.mxu0
      %v2431 = vadd.f32 0.0, %v2430
      %v2432 = vpop.f32.mrf.mxu0
      %2433 = vmatprep.mubr.bf16.mxu0 0
      %2434 = vmatmul.mubr.bf16.gmra.mxu0 %v2325
      %v2435 = vpop.f32.mrf.mxu0
      %v2436 = vadd.f32 0.0, %v2435
      %v2437 = vpop.f32.mrf.mxu0
      %v2438 = vpop.f32.mrf.mxu0
      %v2439 = vadd.f32 0.0, %v2438
      %v2440 = vpop.f32.mrf.mxu0
      %2441 = vmatprep.mubr.bf16.mxu0 0
      %2442 = vmatmul.mubr.bf16.gmra.mxu0 %v2328
      %v2443 = vpop.f32.mrf.mxu0
      %v2444 = vadd.f32 0.0, %v2443
      %v2445 = vpop.f32.mrf.mxu0
      %v2446 = vpop.f32.mrf.mxu0
      %v2447 = vadd.f32 0.0, %v2446
      %v2448 = vpop.f32.mrf.mxu0
      %2449 = vmatprep.mubr.bf16.mxu0 0
      %2450 = vmatmul.mubr.bf16.gmra.mxu0 %v2331
      %v2451 = vpop.f32.mrf.mxu0
      %v2452 = vadd.f32 0.0, %v2451
      %v2453 = vpop.f32.mrf.mxu0
      %v2454 = vpop.f32.mrf.mxu0
      %v2455 = vadd.f32 0.0, %v2454
      %v2456 = vpop.f32.mrf.mxu0
      %2457 = vmatprep.mubr.bf16.mxu0 0
      %2458 = vmatmul.mubr.bf16.gmra.mxu0 %v2334
      %v2459 = vpop.f32.mrf.mxu0
      %v2460 = vadd.f32 0.0, %v2459
      %v2461 = vpop.f32.mrf.mxu0
      %v2462 = vpop.f32.mrf.mxu0
      %v2463 = vadd.f32 0.0, %v2462
      %v2464 = vpop.f32.mrf.mxu0
      %2465 = vmatprep.mubr.bf16.mxu0 0
      %2466 = vmatmul.mubr.bf16.gmra.mxu0 %v2337
      %v2467 = vpop.f32.mrf.mxu0
      %v2468 = vadd.f32 0.0, %v2467
      %v2469 = vpop.f32.mrf.mxu0
      %v2470 = vpop.f32.mrf.mxu0
      %v2471 = vadd.f32 0.0, %v2470
      %v2472 = vpop.f32.mrf.mxu0
      %2473 = vmatprep.mubr.bf16.mxu0 0
      %2474 = vmatmul.mubr.bf16.gmra.mxu0 %v2340
      %v2475 = vpop.f32.mrf.mxu0
      %v2476 = vadd.f32 0.0, %v2475
      %v2477 = vpop.f32.mrf.mxu0
      %v2478 = vpop.f32.mrf.mxu0
      %v2479 = vadd.f32 0.0, %v2478
      %v2480 = vpop.f32.mrf.mxu0
      %2481 = vmatprep.mubr.bf16.mxu0 0
      %2482 = vmatmul.mubr.bf16.gmra.mxu0 %v2343
      %v2483 = vpop.f32.mrf.mxu0
      %v2484 = vadd.f32 0.0, %v2483
      %v2485 = vpop.f32.mrf.mxu0
      %v2486 = vpop.f32.mrf.mxu0
      %v2487 = vadd.f32 0.0, %v2486
      %v2488 = vpop.f32.mrf.mxu0
      %2489 = vmatprep.mubr.bf16.mxu0 0
      %2490 = vmatmul.mubr.bf16.gmra.mxu0 %v2346
      %v2491 = vpop.f32.mrf.mxu0
      %v2492 = vadd.f32 0.0, %v2491
      %v2493 = vpop.f32.mrf.mxu0
      %v2494 = vpop.f32.mrf.mxu0
      %v2495 = vadd.f32 0.0, %v2494
      %v2496 = vpop.f32.mrf.mxu0
      %2497 = vmatprep.mubr.bf16.mxu0 0
      %2498 = vmatmul.mubr.bf16.gmra.mxu0 %v2349
      %v2499 = vpop.f32.mrf.mxu0
      %v2500 = vadd.f32 0.0, %v2499
      %v2501 = vpop.f32.mrf.mxu0
      %v2502 = vpop.f32.mrf.mxu0
      %v2503 = vadd.f32 0.0, %v2502
      %v2504 = vpop.f32.mrf.mxu0
      %2505 = vmatprep.mubr.bf16.mxu0 0
      %2506 = vmatmul.mubr.bf16.gmra.mxu0 %v2352
      %v2507 = vpop.f32.mrf.mxu0
      %v2508 = vadd.f32 0.0, %v2507
      %v2509 = vpop.f32.mrf.mxu0
      %v2510 = vpop.f32.mrf.mxu0
      %v2511 = vadd.f32 0.0, %v2510
      %v2512 = vpop.f32.mrf.mxu0
      %2513 = vmatprep.mubr.bf16.mxu0 0
      %2514 = vmatmul.mubr.bf16.gmra.mxu0 %v2355
      %v2515 = vpop.f32.mrf.mxu0
      %v2516 = vadd.f32 0.0, %v2515
      %v2517 = vpop.f32.mrf.mxu0
      %v2518 = vpop.f32.mrf.mxu0
      %v2519 = vadd.f32 0.0, %v2518
      %v2520 = vpop.f32.mrf.mxu0
      %2521 = vmatprep.mubr.bf16.mxu0 0
      %2522 = vmatmul.mubr.bf16.gmra.mxu0 %v2358
      %v2523 = vpop.f32.mrf.mxu0
      %v2524 = vadd.f32 0.0, %v2523
      %v2525 = vpop.f32.mrf.mxu0
      %v2526 = vpop.f32.mrf.mxu0
      %v2527 = vadd.f32 0.0, %v2526
      %v2528 = vpop.f32.mrf.mxu0
      %2529 = vmatprep.mubr.bf16.mxu0 0
      %2530 = vmatmul.mubr.bf16.gmra.mxu0 %v2361
      %v2531 = vpop.f32.mrf.mxu0
      %v2532 = vadd.f32 0.0, %v2531
      %v2533 = vpop.f32.mrf.mxu0
      %v2534 = vpop.f32.mrf.mxu0
      %v2535 = vadd.f32 0.0, %v2534
      %v2536 = vpop.f32.mrf.mxu0
      %2537 = vmatprep.mubr.bf16.mxu0 0
      %2538 = vmatmul.mubr.bf16.gmra.mxu0 %v2364
      %v2539 = vpop.f32.mrf.mxu0
      %v2540 = vadd.f32 0.0, %v2539
      %v2541 = vpop.f32.mrf.mxu0
      %v2542 = vpop.f32.mrf.mxu0
      %v2543 = vadd.f32 0.0, %v2542
      %v2544 = vpop.f32.mrf.mxu0
      %2545 = vmatprep.mubr.bf16.mxu0 0
      %2546 = vmatmul.mubr.bf16.gmra.mxu0 %v2367
      %v2547 = vpop.f32.mrf.mxu0
      %v2548 = vadd.f32 0.0, %v2547
      %v2549 = vpop.f32.mrf.mxu0
      %v2550 = vpop.f32.mrf.mxu0
      %v2551 = vadd.f32 0.0, %v2550
      %v2552 = vpop.f32.mrf.mxu0
      %2553 = vmatprep.mubr.bf16.mxu0 0
      %2554 = vmatmul.mubr.bf16.gmra.mxu0 %v2370
      %v2555 = vpop.f32.mrf.mxu0
      %v2556 = vadd.f32 0.0, %v2555
      %v2557 = vpop.f32.mrf.mxu0
      %v2558 = vpop.f32.mrf.mxu0
      %v2559 = vadd.f32 0.0, %v2558
      %v2560 = vpop.f32.mrf.mxu0
      %2561 = vmatprep.mubr.bf16.mxu0 0
      %2562 = vmatmul.mubr.bf16.gmra.mxu0 %v2373
      %v2563 = vpop.f32.mrf.mxu0
      %v2564 = vadd.f32 0.0, %v2563
      %v2565 = vpop.f32.mrf.mxu0
      %v2566 = vpop.f32.mrf.mxu0
      %v2567 = vadd.f32 0.0, %v2566
      %v2568 = vpop.f32.mrf.mxu0
      %2569 = vmatprep.mubr.bf16.mxu0 0
      %2570 = vmatmul.mubr.bf16.gmra.mxu0 %v2376
      %v2571 = vpop.f32.mrf.mxu0
      %v2572 = vadd.f32 0.0, %v2571
      %v2573 = vpop.f32.mrf.mxu0
      %v2574 = vpop.f32.mrf.mxu0
      %v2575 = vadd.f32 0.0, %v2574
      %v2576 = vpop.f32.mrf.mxu0
      %2577 = vmatprep.mubr.bf16.mxu0 0
      %2578 = vmatmul.mubr.bf16.gmra.mxu0 %v2379
      %v2579 = vpop.f32.mrf.mxu0
      %v2580 = vadd.f32 0.0, %v2579
      %v2581 = vpop.f32.mrf.mxu0
      %v2582 = vpop.f32.mrf.mxu0
      %v2583 = vadd.f32 0.0, %v2582
      %v2584 = vpop.f32.mrf.mxu0
      %2585 = vmatprep.mubr.bf16.mxu0 0
      %2586 = vmatmul.mubr.bf16.gmra.mxu0 %v2382
      %v2587 = vpop.f32.mrf.mxu0
      %v2588 = vadd.f32 0.0, %v2587
      %v2589 = vpop.f32.mrf.mxu0
      %v2590 = vpop.f32.mrf.mxu0
      %v2591 = vadd.f32 0.0, %v2590
      %v2592 = vpop.f32.mrf.mxu0
      %2593 = vmatprep.mubr.bf16.mxu0 0
      %2594 = vmatmul.mubr.bf16.gmra.mxu0 %v2385
      %v2595 = vpop.f32.mrf.mxu0
      %v2596 = vadd.f32 0.0, %v2595
      %v2597 = vpop.f32.mrf.mxu0
      %v2598 = vpop.f32.mrf.mxu0
      %v2599 = vadd.f32 0.0, %v2598
      %v2600 = vpop.f32.mrf.mxu0
      %2601 = vmatprep.mubr.bf16.mxu0 0
      %2602 = vmatmul.mubr.bf16.gmra.mxu0 %v2388
      %v2603 = vpop.f32.mrf.mxu0
      %v2604 = vadd.f32 0.0, %v2603
      %v2605 = vpop.f32.mrf.mxu0
      %v2606 = vpop.f32.mrf.mxu0
      %v2607 = vadd.f32 0.0, %v2606
      %v2608 = vpop.f32.mrf.mxu0
      %2609 = vmatprep.mubr.bf16.mxu0 0
      %2610 = vmatmul.mubr.bf16.gmra.mxu0 %v2391
      %v2611 = vpop.f32.mrf.mxu0
      %v2612 = vadd.f32 0.0, %v2611
      %v2613 = vpop.f32.mrf.mxu0
      %v2614 = vpop.f32.mrf.mxu0
      %v2615 = vadd.f32 0.0, %v2614
      %v2616 = vpop.f32.mrf.mxu0
      %2617 = vdwg.mxu0
      %v2618 = vadd.f32 %v2091, %v2428
      %v2619 = vadd.f32 %v2092, %v2431
      %v2620 = vadd.f32 %v2093, %v2436
      %v2621 = vadd.f32 %v2094, %v2439
      %v2622 = vadd.f32 %v2095, %v2444
      %v2623 = vadd.f32 %v2096, %v2447
      %v2624 = vadd.f32 %v2097, %v2452
      %v2625 = vadd.f32 %v2098, %v2455
      %v2626 = vadd.f32 %v2099, %v2460
      %v2627 = vadd.f32 %v2100, %v2463
      %v2628 = vadd.f32 %v2101, %v2468
      %v2629 = vadd.f32 %v2102, %v2471
      %v2630 = vadd.f32 %v2103, %v2476
      %v2631 = vadd.f32 %v2104, %v2479
      %v2632 = vadd.f32 %v2105, %v2484
      %v2633 = vadd.f32 %v2106, %v2487
      %v2634 = vadd.f32 %v2107, %v2492
      %v2635 = vadd.f32 %v2108, %v2495
      %v2636 = vadd.f32 %v2109, %v2500
      %v2637 = vadd.f32 %v2110, %v2503
      %v2638 = vadd.f32 %v2111, %v2508
      %v2639 = vadd.f32 %v2112, %v2511
      %v2640 = vadd.f32 %v2113, %v2516
      %v2641 = vadd.f32 %v2114, %v2519
      %v2642 = vadd.f32 %v2115, %v2524
      %v2643 = vadd.f32 %v2116, %v2527
      %v2644 = vadd.f32 %v2117, %v2532
      %v2645 = vadd.f32 %v2118, %v2535
      %v2646 = vadd.f32 %v2119, %v2540
      %v2647 = vadd.f32 %v2120, %v2543
      %v2648 = vadd.f32 %v2121, %v2548
      %v2649 = vadd.f32 %v2122, %v2551
      %v2650 = vadd.f32 %v2123, %v2556
      %v2651 = vadd.f32 %v2124, %v2559
      %v2652 = vadd.f32 %v2125, %v2564
      %v2653 = vadd.f32 %v2126, %v2567
      %v2654 = vadd.f32 %v2127, %v2572
      %v2655 = vadd.f32 %v2128, %v2575
      %v2656 = vadd.f32 %v2129, %v2580
      %v2657 = vadd.f32 %v2130, %v2583
      %v2658 = vadd.f32 %v2131, %v2588
      %v2659 = vadd.f32 %v2132, %v2591
      %v2660 = vadd.f32 %v2133, %v2596
      %v2661 = vadd.f32 %v2134, %v2599
      %v2662 = vadd.f32 %v2135, %v2604
      %v2663 = vadd.f32 %v2136, %v2607
      %v2664 = vadd.f32 %v2137, %v2612
      %v2665 = vadd.f32 %v2138, %v2615
      %s2666 = scalar_lea.vmem %s281, 56
      %v2667 = vld [vmem:[%s2666] sm:$0xf]
      %v2668 = vld [vmem:[%s2666 + $0x4] sm:$0xf]
      %v2670 = vunpack.c.l.b16 %v404
      %v2671 = vpack.c.b16 %v2670, %v2670
      %v2672 = vshll.u32 %v1320, 16
      %v2674 = vrot.slane %v2672, 1
      %v2675 = vsel %vm1615, %v1782, %v2674
      %v2676 = vshrl.u32 %v1320, 16
      %v2678 = vor.u32 %v2676, %v2674
      %v2679 = vshll.u32 %v1321, 16
      %v2681 = vrot.slane %v2679, 1
      %v2682 = vsel %vm1615, %v2678, %v2681
      %v2683 = vshrl.u32 %v1321, 16
      %v2685 = vor.u32 %v2683, %v2681
      %v2686 = vshll.u32 %v1322, 16
      %v2688 = vrot.slane %v2686, 1
      %v2689 = vsel %vm1615, %v2685, %v2688
      %v2690 = vshrl.u32 %v1322, 16
      %v2692 = vor.u32 %v2690, %v2688
      %v2694 = vshll.u32 %v2671, 16
      %v2696 = vrot.slane %v2694, 1
      %v2697 = vsel %vm1615, %v2692, %v2696
      %v2700 = vunpack.c.l.b16 %v2667
      %v2701 = vunpack.c.l.b16 %v2668
      %v2702 = vpack.c.b16 %v2701, %v2700
      %v2705 = vsel %vm581, %v2675, 0
      %v2708 = vsel %vm581, %v2682, 0
      %v2711 = vsel %vm581, %v2689, 0
      %v2714 = vsel %vm581, %v2697, 0
      %2716 = vmatprep.subr.bf16.mxu0 0
      %2717 = vmatpush1.bf16.msra.mxu0 0
      %2718 = vmatprep.subr.bf16.mxu0 0
      %2719 = vmatpush1.bf16.msra.mxu0 0
      %2720 = vmatprep.subr.bf16.mxu0 0
      %2721 = vmatpush1.bf16.msra.mxu0 0
      %2722 = vmatprep.subr.bf16.mxu0 0
      %2723 = vmatpush1.bf16.msra.mxu0 0
      %2724 = vmatprep.subr.bf16.mxu0 0
      %2725 = vmatpush1.bf16.msra.mxu0 0
      %2726 = vmatprep.subr.bf16.mxu0 0
      %2727 = vmatpush1.bf16.msra.mxu0 0
      %2728 = vmatprep.subr.bf16.mxu0 0
      %2729 = vmatpush1.bf16.msra.mxu0 0
      %2730 = vmatprep.subr.bf16.mxu0 0
      %2731 = vmatpush1.bf16.msra.mxu0 %v2702
      %2732 = vmatprep.subr.bf16.mxu0 0
      %2733 = vmatpush2.bf16.msra.mxu0 0
      %2734 = vmatprep.subr.bf16.mxu0 0
      %2735 = vmatpush2.bf16.msra.mxu0 0
      %2736 = vmatprep.subr.bf16.mxu0 0
      %2737 = vmatpush2.bf16.msra.mxu0 0
      %2738 = vmatprep.subr.bf16.mxu0 0
      %2739 = vmatpush2.bf16.msra.mxu0 0
      %2740 = vmatprep.subr.bf16.mxu0 0
      %2741 = vmatpush2.bf16.msra.mxu0 0
      %2742 = vmatprep.subr.bf16.mxu0 0
      %2743 = vmatpush2.bf16.msra.mxu0 0
      %2744 = vmatprep.subr.bf16.mxu0 0
      %2745 = vmatpush2.bf16.msra.mxu0 0
      %2746 = vmatprep.subr.bf16.mxu0 0
      %2747 = vmatpush2.bf16.msra.mxu0 0
      %2748 = vmatprep.mubr.bf16.mxu0 0
      %2749 = vmatmul.mubr.bf16.gmra.mxu0 %v1804
      %v2750 = vpop.f32.mrf.mxu0
      %v2751 = vadd.f32 0.0, %v2750
      %v2752 = vpop.f32.mrf.mxu0
      %v2753 = vpop.f32.mrf.mxu0
      %v2754 = vadd.f32 0.0, %v2753
      %v2755 = vpop.f32.mrf.mxu0
      %2756 = vmatprep.mubr.bf16.mxu0 0
      %2757 = vmatmul.mubr.bf16.gmra.mxu0 %v1807
      %v2758 = vpop.f32.mrf.mxu0
      %v2759 = vadd.f32 0.0, %v2758
      %v2760 = vpop.f32.mrf.mxu0
      %v2761 = vpop.f32.mrf.mxu0
      %v2762 = vadd.f32 0.0, %v2761
      %v2763 = vpop.f32.mrf.mxu0
      %2764 = vmatprep.mubr.bf16.mxu0 0
      %2765 = vmatmul.mubr.bf16.gmra.mxu0 %v1810
      %v2766 = vpop.f32.mrf.mxu0
      %v2767 = vadd.f32 0.0, %v2766
      %v2768 = vpop.f32.mrf.mxu0
      %v2769 = vpop.f32.mrf.mxu0
      %v2770 = vadd.f32 0.0, %v2769
      %v2771 = vpop.f32.mrf.mxu0
      %2772 = vmatprep.mubr.bf16.mxu0 0
      %2773 = vmatmul.mubr.bf16.gmra.mxu0 %v1813
      %v2774 = vpop.f32.mrf.mxu0
      %v2775 = vadd.f32 0.0, %v2774
      %v2776 = vpop.f32.mrf.mxu0
      %v2777 = vpop.f32.mrf.mxu0
      %v2778 = vadd.f32 0.0, %v2777
      %v2779 = vpop.f32.mrf.mxu0
      %2780 = vmatprep.mubr.bf16.mxu0 0
      %2781 = vmatmul.mubr.bf16.gmra.mxu0 %v1816
      %v2782 = vpop.f32.mrf.mxu0
      %v2783 = vadd.f32 0.0, %v2782
      %v2784 = vpop.f32.mrf.mxu0
      %v2785 = vpop.f32.mrf.mxu0
      %v2786 = vadd.f32 0.0, %v2785
      %v2787 = vpop.f32.mrf.mxu0
      %2788 = vmatprep.mubr.bf16.mxu0 0
      %2789 = vmatmul.mubr.bf16.gmra.mxu0 %v1819
      %v2790 = vpop.f32.mrf.mxu0
      %v2791 = vadd.f32 0.0, %v2790
      %v2792 = vpop.f32.mrf.mxu0
      %v2793 = vpop.f32.mrf.mxu0
      %v2794 = vadd.f32 0.0, %v2793
      %v2795 = vpop.f32.mrf.mxu0
      %2796 = vmatprep.mubr.bf16.mxu0 0
      %2797 = vmatmul.mubr.bf16.gmra.mxu0 %v1822
      %v2798 = vpop.f32.mrf.mxu0
      %v2799 = vadd.f32 0.0, %v2798
      %v2800 = vpop.f32.mrf.mxu0
      %v2801 = vpop.f32.mrf.mxu0
      %v2802 = vadd.f32 0.0, %v2801
      %v2803 = vpop.f32.mrf.mxu0
      %2804 = vmatprep.mubr.bf16.mxu0 0
      %2805 = vmatmul.mubr.bf16.gmra.mxu0 %v1825
      %v2806 = vpop.f32.mrf.mxu0
      %v2807 = vadd.f32 0.0, %v2806
      %v2808 = vpop.f32.mrf.mxu0
      %v2809 = vpop.f32.mrf.mxu0
      %v2810 = vadd.f32 0.0, %v2809
      %v2811 = vpop.f32.mrf.mxu0
      %2812 = vmatprep.mubr.bf16.mxu0 0
      %2813 = vmatmul.mubr.bf16.gmra.mxu0 %v1828
      %v2814 = vpop.f32.mrf.mxu0
      %v2815 = vadd.f32 0.0, %v2814
      %v2816 = vpop.f32.mrf.mxu0
      %v2817 = vpop.f32.mrf.mxu0
      %v2818 = vadd.f32 0.0, %v2817
      %v2819 = vpop.f32.mrf.mxu0
      %2820 = vmatprep.mubr.bf16.mxu0 0
      %2821 = vmatmul.mubr.bf16.gmra.mxu0 %v1831
      %v2822 = vpop.f32.mrf.mxu0
      %v2823 = vadd.f32 0.0, %v2822
      %v2824 = vpop.f32.mrf.mxu0
      %v2825 = vpop.f32.mrf.mxu0
      %v2826 = vadd.f32 0.0, %v2825
      %v2827 = vpop.f32.mrf.mxu0
      %2828 = vmatprep.mubr.bf16.mxu0 0
      %2829 = vmatmul.mubr.bf16.gmra.mxu0 %v1834
      %v2830 = vpop.f32.mrf.mxu0
      %v2831 = vadd.f32 0.0, %v2830
      %v2832 = vpop.f32.mrf.mxu0
      %v2833 = vpop.f32.mrf.mxu0
      %v2834 = vadd.f32 0.0, %v2833
      %v2835 = vpop.f32.mrf.mxu0
      %2836 = vmatprep.mubr.bf16.mxu0 0
      %2837 = vmatmul.mubr.bf16.gmra.mxu0 %v1837
      %v2838 = vpop.f32.mrf.mxu0
      %v2839 = vadd.f32 0.0, %v2838
      %v2840 = vpop.f32.mrf.mxu0
      %v2841 = vpop.f32.mrf.mxu0
      %v2842 = vadd.f32 0.0, %v2841
      %v2843 = vpop.f32.mrf.mxu0
      %2844 = vmatprep.mubr.bf16.mxu0 0
      %2845 = vmatmul.mubr.bf16.gmra.mxu0 %v1840
      %v2846 = vpop.f32.mrf.mxu0
      %v2847 = vadd.f32 0.0, %v2846
      %v2848 = vpop.f32.mrf.mxu0
      %v2849 = vpop.f32.mrf.mxu0
      %v2850 = vadd.f32 0.0, %v2849
      %v2851 = vpop.f32.mrf.mxu0
      %2852 = vmatprep.mubr.bf16.mxu0 0
      %2853 = vmatmul.mubr.bf16.gmra.mxu0 %v1843
      %v2854 = vpop.f32.mrf.mxu0
      %v2855 = vadd.f32 0.0, %v2854
      %v2856 = vpop.f32.mrf.mxu0
      %v2857 = vpop.f32.mrf.mxu0
      %v2858 = vadd.f32 0.0, %v2857
      %v2859 = vpop.f32.mrf.mxu0
      %2860 = vmatprep.mubr.bf16.mxu0 0
      %2861 = vmatmul.mubr.bf16.gmra.mxu0 %v1846
      %v2862 = vpop.f32.mrf.mxu0
      %v2863 = vadd.f32 0.0, %v2862
      %v2864 = vpop.f32.mrf.mxu0
      %v2865 = vpop.f32.mrf.mxu0
      %v2866 = vadd.f32 0.0, %v2865
      %v2867 = vpop.f32.mrf.mxu0
      %2868 = vmatprep.mubr.bf16.mxu0 0
      %2869 = vmatmul.mubr.bf16.gmra.mxu0 %v1849
      %v2870 = vpop.f32.mrf.mxu0
      %v2871 = vadd.f32 0.0, %v2870
      %v2872 = vpop.f32.mrf.mxu0
      %v2873 = vpop.f32.mrf.mxu0
      %v2874 = vadd.f32 0.0, %v2873
      %v2875 = vpop.f32.mrf.mxu0
      %2876 = vmatprep.mubr.bf16.mxu0 0
      %2877 = vmatmul.mubr.bf16.gmra.mxu0 %v1852
      %v2878 = vpop.f32.mrf.mxu0
      %v2879 = vadd.f32 0.0, %v2878
      %v2880 = vpop.f32.mrf.mxu0
      %v2881 = vpop.f32.mrf.mxu0
      %v2882 = vadd.f32 0.0, %v2881
      %v2883 = vpop.f32.mrf.mxu0
      %2884 = vmatprep.mubr.bf16.mxu0 0
      %2885 = vmatmul.mubr.bf16.gmra.mxu0 %v1855
      %v2886 = vpop.f32.mrf.mxu0
      %v2887 = vadd.f32 0.0, %v2886
      %v2888 = vpop.f32.mrf.mxu0
      %v2889 = vpop.f32.mrf.mxu0
      %v2890 = vadd.f32 0.0, %v2889
      %v2891 = vpop.f32.mrf.mxu0
      %2892 = vmatprep.mubr.bf16.mxu0 0
      %2893 = vmatmul.mubr.bf16.gmra.mxu0 %v1858
      %v2894 = vpop.f32.mrf.mxu0
      %v2895 = vadd.f32 0.0, %v2894
      %v2896 = vpop.f32.mrf.mxu0
      %v2897 = vpop.f32.mrf.mxu0
      %v2898 = vadd.f32 0.0, %v2897
      %v2899 = vpop.f32.mrf.mxu0
      %2900 = vmatprep.mubr.bf16.mxu0 0
      %2901 = vmatmul.mubr.bf16.gmra.mxu0 %v1861
      %v2902 = vpop.f32.mrf.mxu0
      %v2903 = vadd.f32 0.0, %v2902
      %v2904 = vpop.f32.mrf.mxu0
      %v2905 = vpop.f32.mrf.mxu0
      %v2906 = vadd.f32 0.0, %v2905
      %v2907 = vpop.f32.mrf.mxu0
      %2908 = vmatprep.mubr.bf16.mxu0 0
      %2909 = vmatmul.mubr.bf16.gmra.mxu0 %v2705
      %v2910 = vpop.f32.mrf.mxu0
      %v2911 = vadd.f32 0.0, %v2910
      %v2912 = vpop.f32.mrf.mxu0
      %v2913 = vpop.f32.mrf.mxu0
      %v2914 = vadd.f32 0.0, %v2913
      %v2915 = vpop.f32.mrf.mxu0
      %2916 = vmatprep.mubr.bf16.mxu0 0
      %2917 = vmatmul.mubr.bf16.gmra.mxu0 %v2708
      %v2918 = vpop.f32.mrf.mxu0
      %v2919 = vadd.f32 0.0, %v2918
      %v2920 = vpop.f32.mrf.mxu0
      %v2921 = vpop.f32.mrf.mxu0
      %v2922 = vadd.f32 0.0, %v2921
      %v2923 = vpop.f32.mrf.mxu0
      %2924 = vmatprep.mubr.bf16.mxu0 0
      %2925 = vmatmul.mubr.bf16.gmra.mxu0 %v2711
      %v2926 = vpop.f32.mrf.mxu0
      %v2927 = vadd.f32 0.0, %v2926
      %v2928 = vpop.f32.mrf.mxu0
      %v2929 = vpop.f32.mrf.mxu0
      %v2930 = vadd.f32 0.0, %v2929
      %v2931 = vpop.f32.mrf.mxu0
      %2932 = vmatprep.mubr.bf16.mxu0 0
      %2933 = vmatmul.mubr.bf16.gmra.mxu0 %v2714
      %v2934 = vpop.f32.mrf.mxu0
      %v2935 = vadd.f32 0.0, %v2934
      %v2936 = vpop.f32.mrf.mxu0
      %v2937 = vpop.f32.mrf.mxu0
      %v2938 = vadd.f32 0.0, %v2937
      %v2939 = vpop.f32.mrf.mxu0
      %2940 = vdwg.mxu0
      %v2941 = vadd.f32 %v2618, %v2751
      %v2942 = vadd.f32 %v2619, %v2754
      %v2943 = vadd.f32 %v2620, %v2759
      %v2944 = vadd.f32 %v2621, %v2762
      %v2945 = vadd.f32 %v2622, %v2767
      %v2946 = vadd.f32 %v2623, %v2770
      %v2947 = vadd.f32 %v2624, %v2775
      %v2948 = vadd.f32 %v2625, %v2778
      %v2949 = vadd.f32 %v2626, %v2783
      %v2950 = vadd.f32 %v2627, %v2786
      %v2951 = vadd.f32 %v2628, %v2791
      %v2952 = vadd.f32 %v2629, %v2794
      %v2953 = vadd.f32 %v2630, %v2799
      %v2954 = vadd.f32 %v2631, %v2802
      %v2955 = vadd.f32 %v2632, %v2807
      %v2956 = vadd.f32 %v2633, %v2810
      %v2957 = vadd.f32 %v2634, %v2815
      %v2958 = vadd.f32 %v2635, %v2818
      %v2959 = vadd.f32 %v2636, %v2823
      %v2960 = vadd.f32 %v2637, %v2826
      %v2961 = vadd.f32 %v2638, %v2831
      %v2962 = vadd.f32 %v2639, %v2834
      %v2963 = vadd.f32 %v2640, %v2839
      %v2964 = vadd.f32 %v2641, %v2842
      %v2965 = vadd.f32 %v2642, %v2847
      %v2966 = vadd.f32 %v2643, %v2850
      %v2967 = vadd.f32 %v2644, %v2855
      %v2968 = vadd.f32 %v2645, %v2858
      %v2969 = vadd.f32 %v2646, %v2863
      %v2970 = vadd.f32 %v2647, %v2866
      %v2971 = vadd.f32 %v2648, %v2871
      %v2972 = vadd.f32 %v2649, %v2874
      %v2973 = vadd.f32 %v2650, %v2879
      %v2974 = vadd.f32 %v2651, %v2882
      %v2975 = vadd.f32 %v2652, %v2887
      %v2976 = vadd.f32 %v2653, %v2890
      %v2977 = vadd.f32 %v2654, %v2895
      %v2978 = vadd.f32 %v2655, %v2898
      %v2979 = vadd.f32 %v2656, %v2903
      %v2980 = vadd.f32 %v2657, %v2906
      %v2981 = vadd.f32 %v2658, %v2911
      %v2982 = vadd.f32 %v2659, %v2914
      %v2983 = vadd.f32 %v2660, %v2919
      %v2984 = vadd.f32 %v2661, %v2922
      %v2985 = vadd.f32 %v2662, %v2927
      %v2986 = vadd.f32 %v2663, %v2930
      %v2987 = vadd.f32 %v2664, %v2935
      %v2988 = vadd.f32 %v2665, %v2938
      %s2989 = scalar_lea.vmem %s281, 16
      %v2990 = vld [vmem:[%s2989] sm:$0xf]
      %v2991 = vld [vmem:[%s2989 + $0x4] sm:$0xf]
      %vm2992 = vcmask 1046528
      %v2993 = vrot.slane %v551, 1
      %v2994 = vrot.slane %v552, 1
      %v2995 = vsel %vm2992, %v2993, %v2994
      %v2996 = vrot.slane %v553, 1
      %v2997 = vsel %vm2992, %v2994, %v2996
      %v2998 = vrot.slane %v554, 1
      %v2999 = vsel %vm2992, %v2996, %v2998
      %v3000 = vrot.slane %v555, 1
      %v3001 = vsel %vm2992, %v2998, %v3000
      %v3002 = vrot.slane %v556, 1
      %v3003 = vsel %vm2992, %v3000, %v3002
      %v3004 = vrot.slane %v557, 1
      %v3005 = vsel %vm2992, %v3002, %v3004
      %v3006 = vrot.slane %v558, 1
      %v3007 = vsel %vm2992, %v3004, %v3006
      %v3008 = vrot.slane %v559, 1
      %v3009 = vsel %vm2992, %v3006, %v3008
      %v3010 = vrot.slane %v560, 1
      %v3011 = vsel %vm2992, %v3008, %v3010
      %v3012 = vrot.slane %v561, 1
      %v3013 = vsel %vm2992, %v3010, %v3012
      %v3014 = vrot.slane %v562, 1
      %v3015 = vsel %vm2992, %v3012, %v3014
      %v3016 = vrot.slane %v563, 1
      %v3017 = vsel %vm2992, %v3014, %v3016
      %v3018 = vrot.slane %v564, 1
      %v3019 = vsel %vm2992, %v3016, %v3018
      %v3020 = vrot.slane %v565, 1
      %v3021 = vsel %vm2992, %v3018, %v3020
      %v3022 = vrot.slane %v566, 1
      %v3023 = vsel %vm2992, %v3020, %v3022
      %v3024 = vrot.slane %v567, 1
      %v3025 = vsel %vm2992, %v3022, %v3024
      %v3026 = vrot.slane %v568, 1
      %v3027 = vsel %vm2992, %v3024, %v3026
      %v3028 = vrot.slane %v569, 1
      %v3029 = vsel %vm2992, %v3026, %v3028
      %v3030 = vrot.slane %v570, 1
      %v3031 = vsel %vm2992, %v3028, %v3030
      %v3032 = vrot.slane %v571, 1
      %v3033 = vsel %vm2992, %v3030, %v3032
      %v3034 = vrot.slane %v572, 1
      %v3035 = vsel %vm2992, %v3032, %v3034
      %v3036 = vrot.slane %v573, 1
      %v3037 = vsel %vm2992, %v3034, %v3036
      %v3038 = vrot.slane %v574, 1
      %v3039 = vsel %vm2992, %v3036, %v3038
      %v3040 = vrot.slane %v1614, 1
      %v3041 = vsel %vm2992, %v3038, %v3040
      %v3044 = vunpack.c.l.b16 %v2990
      %v3045 = vunpack.c.l.b16 %v2991
      %v3046 = vpack.c.b16 %v3045, %v3044
      %v3049 = vsel %vm581, %v2995, 0
      %v3052 = vsel %vm581, %v2997, 0
      %v3055 = vsel %vm581, %v2999, 0
      %v3058 = vsel %vm581, %v3001, 0
      %v3061 = vsel %vm581, %v3003, 0
      %v3064 = vsel %vm581, %v3005, 0
      %v3067 = vsel %vm581, %v3007, 0
      %v3070 = vsel %vm581, %v3009, 0
      %v3073 = vsel %vm581, %v3011, 0
      %v3076 = vsel %vm581, %v3013, 0
      %v3079 = vsel %vm581, %v3015, 0
      %v3082 = vsel %vm581, %v3017, 0
      %v3085 = vsel %vm581, %v3019, 0
      %v3088 = vsel %vm581, %v3021, 0
      %v3091 = vsel %vm581, %v3023, 0
      %v3094 = vsel %vm581, %v3025, 0
      %v3097 = vsel %vm581, %v3027, 0
      %v3100 = vsel %vm581, %v3029, 0
      %v3103 = vsel %vm581, %v3031, 0
      %v3106 = vsel %vm581, %v3033, 0
      %v3109 = vsel %vm581, %v3035, 0
      %v3112 = vsel %vm581, %v3037, 0
      %v3115 = vsel %vm581, %v3039, 0
      %v3118 = vsel %vm581, %v3041, 0
      %3120 = vmatprep.subr.bf16.mxu0 0
      %3121 = vmatpush1.bf16.msra.mxu0 0
      %3122 = vmatprep.subr.bf16.mxu0 0
      %3123 = vmatpush1.bf16.msra.mxu0 0
      %3124 = vmatprep.subr.bf16.mxu0 0
      %3125 = vmatpush1.bf16.msra.mxu0 0
      %3126 = vmatprep.subr.bf16.mxu0 0
      %3127 = vmatpush1.bf16.msra.mxu0 0
      %3128 = vmatprep.subr.bf16.mxu0 0
      %3129 = vmatpush1.bf16.msra.mxu0 0
      %3130 = vmatprep.subr.bf16.mxu0 0
      %3131 = vmatpush1.bf16.msra.mxu0 0
      %3132 = vmatprep.subr.bf16.mxu0 0
      %3133 = vmatpush1.bf16.msra.mxu0 0
      %3134 = vmatprep.subr.bf16.mxu0 0
      %3135 = vmatpush1.bf16.msra.mxu0 %v3046
      %3136 = vmatprep.subr.bf16.mxu0 0
      %3137 = vmatpush2.bf16.msra.mxu0 0
      %3138 = vmatprep.subr.bf16.mxu0 0
      %3139 = vmatpush2.bf16.msra.mxu0 0
      %3140 = vmatprep.subr.bf16.mxu0 0
      %3141 = vmatpush2.bf16.msra.mxu0 0
      %3142 = vmatprep.subr.bf16.mxu0 0
      %3143 = vmatpush2.bf16.msra.mxu0 0
      %3144 = vmatprep.subr.bf16.mxu0 0
      %3145 = vmatpush2.bf16.msra.mxu0 0
      %3146 = vmatprep.subr.bf16.mxu0 0
      %3147 = vmatpush2.bf16.msra.mxu0 0
      %3148 = vmatprep.subr.bf16.mxu0 0
      %3149 = vmatpush2.bf16.msra.mxu0 0
      %3150 = vmatprep.subr.bf16.mxu0 0
      %3151 = vmatpush2.bf16.msra.mxu0 0
      %3152 = vmatprep.mubr.bf16.mxu0 0
      %3153 = vmatmul.mubr.bf16.gmra.mxu0 %v3049
      %v3154 = vpop.f32.mrf.mxu0
      %v3155 = vadd.f32 0.0, %v3154
      %v3156 = vpop.f32.mrf.mxu0
      %v3157 = vpop.f32.mrf.mxu0
      %v3158 = vadd.f32 0.0, %v3157
      %v3159 = vpop.f32.mrf.mxu0
      %3160 = vmatprep.mubr.bf16.mxu0 0
      %3161 = vmatmul.mubr.bf16.gmra.mxu0 %v3052
      %v3162 = vpop.f32.mrf.mxu0
      %v3163 = vadd.f32 0.0, %v3162
      %v3164 = vpop.f32.mrf.mxu0
      %v3165 = vpop.f32.mrf.mxu0
      %v3166 = vadd.f32 0.0, %v3165
      %v3167 = vpop.f32.mrf.mxu0
      %3168 = vmatprep.mubr.bf16.mxu0 0
      %3169 = vmatmul.mubr.bf16.gmra.mxu0 %v3055
      %v3170 = vpop.f32.mrf.mxu0
      %v3171 = vadd.f32 0.0, %v3170
      %v3172 = vpop.f32.mrf.mxu0
      %v3173 = vpop.f32.mrf.mxu0
      %v3174 = vadd.f32 0.0, %v3173
      %v3175 = vpop.f32.mrf.mxu0
      %3176 = vmatprep.mubr.bf16.mxu0 0
      %3177 = vmatmul.mubr.bf16.gmra.mxu0 %v3058
      %v3178 = vpop.f32.mrf.mxu0
      %v3179 = vadd.f32 0.0, %v3178
      %v3180 = vpop.f32.mrf.mxu0
      %v3181 = vpop.f32.mrf.mxu0
      %v3182 = vadd.f32 0.0, %v3181
      %v3183 = vpop.f32.mrf.mxu0
      %3184 = vmatprep.mubr.bf16.mxu0 0
      %3185 = vmatmul.mubr.bf16.gmra.mxu0 %v3061
      %v3186 = vpop.f32.mrf.mxu0
      %v3187 = vadd.f32 0.0, %v3186
      %v3188 = vpop.f32.mrf.mxu0
      %v3189 = vpop.f32.mrf.mxu0
      %v3190 = vadd.f32 0.0, %v3189
      %v3191 = vpop.f32.mrf.mxu0
      %3192 = vmatprep.mubr.bf16.mxu0 0
      %3193 = vmatmul.mubr.bf16.gmra.mxu0 %v3064
      %v3194 = vpop.f32.mrf.mxu0
      %v3195 = vadd.f32 0.0, %v3194
      %v3196 = vpop.f32.mrf.mxu0
      %v3197 = vpop.f32.mrf.mxu0
      %v3198 = vadd.f32 0.0, %v3197
      %v3199 = vpop.f32.mrf.mxu0
      %3200 = vmatprep.mubr.bf16.mxu0 0
      %3201 = vmatmul.mubr.bf16.gmra.mxu0 %v3067
      %v3202 = vpop.f32.mrf.mxu0
      %v3203 = vadd.f32 0.0, %v3202
      %v3204 = vpop.f32.mrf.mxu0
      %v3205 = vpop.f32.mrf.mxu0
      %v3206 = vadd.f32 0.0, %v3205
      %v3207 = vpop.f32.mrf.mxu0
      %3208 = vmatprep.mubr.bf16.mxu0 0
      %3209 = vmatmul.mubr.bf16.gmra.mxu0 %v3070
      %v3210 = vpop.f32.mrf.mxu0
      %v3211 = vadd.f32 0.0, %v3210
      %v3212 = vpop.f32.mrf.mxu0
      %v3213 = vpop.f32.mrf.mxu0
      %v3214 = vadd.f32 0.0, %v3213
      %v3215 = vpop.f32.mrf.mxu0
      %3216 = vmatprep.mubr.bf16.mxu0 0
      %3217 = vmatmul.mubr.bf16.gmra.mxu0 %v3073
      %v3218 = vpop.f32.mrf.mxu0
      %v3219 = vadd.f32 0.0, %v3218
      %v3220 = vpop.f32.mrf.mxu0
      %v3221 = vpop.f32.mrf.mxu0
      %v3222 = vadd.f32 0.0, %v3221
      %v3223 = vpop.f32.mrf.mxu0
      %3224 = vmatprep.mubr.bf16.mxu0 0
      %3225 = vmatmul.mubr.bf16.gmra.mxu0 %v3076
      %v3226 = vpop.f32.mrf.mxu0
      %v3227 = vadd.f32 0.0, %v3226
      %v3228 = vpop.f32.mrf.mxu0
      %v3229 = vpop.f32.mrf.mxu0
      %v3230 = vadd.f32 0.0, %v3229
      %v3231 = vpop.f32.mrf.mxu0
      %3232 = vmatprep.mubr.bf16.mxu0 0
      %3233 = vmatmul.mubr.bf16.gmra.mxu0 %v3079
      %v3234 = vpop.f32.mrf.mxu0
      %v3235 = vadd.f32 0.0, %v3234
      %v3236 = vpop.f32.mrf.mxu0
      %v3237 = vpop.f32.mrf.mxu0
      %v3238 = vadd.f32 0.0, %v3237
      %v3239 = vpop.f32.mrf.mxu0
      %3240 = vmatprep.mubr.bf16.mxu0 0
      %3241 = vmatmul.mubr.bf16.gmra.mxu0 %v3082
      %v3242 = vpop.f32.mrf.mxu0
      %v3243 = vadd.f32 0.0, %v3242
      %v3244 = vpop.f32.mrf.mxu0
      %v3245 = vpop.f32.mrf.mxu0
      %v3246 = vadd.f32 0.0, %v3245
      %v3247 = vpop.f32.mrf.mxu0
      %3248 = vmatprep.mubr.bf16.mxu0 0
      %3249 = vmatmul.mubr.bf16.gmra.mxu0 %v3085
      %v3250 = vpop.f32.mrf.mxu0
      %v3251 = vadd.f32 0.0, %v3250
      %v3252 = vpop.f32.mrf.mxu0
      %v3253 = vpop.f32.mrf.mxu0
      %v3254 = vadd.f32 0.0, %v3253
      %v3255 = vpop.f32.mrf.mxu0
      %3256 = vmatprep.mubr.bf16.mxu0 0
      %3257 = vmatmul.mubr.bf16.gmra.mxu0 %v3088
      %v3258 = vpop.f32.mrf.mxu0
      %v3259 = vadd.f32 0.0, %v3258
      %v3260 = vpop.f32.mrf.mxu0
      %v3261 = vpop.f32.mrf.mxu0
      %v3262 = vadd.f32 0.0, %v3261
      %v3263 = vpop.f32.mrf.mxu0
      %3264 = vmatprep.mubr.bf16.mxu0 0
      %3265 = vmatmul.mubr.bf16.gmra.mxu0 %v3091
      %v3266 = vpop.f32.mrf.mxu0
      %v3267 = vadd.f32 0.0, %v3266
      %v3268 = vpop.f32.mrf.mxu0
      %v3269 = vpop.f32.mrf.mxu0
      %v3270 = vadd.f32 0.0, %v3269
      %v3271 = vpop.f32.mrf.mxu0
      %3272 = vmatprep.mubr.bf16.mxu0 0
      %3273 = vmatmul.mubr.bf16.gmra.mxu0 %v3094
      %v3274 = vpop.f32.mrf.mxu0
      %v3275 = vadd.f32 0.0, %v3274
      %v3276 = vpop.f32.mrf.mxu0
      %v3277 = vpop.f32.mrf.mxu0
      %v3278 = vadd.f32 0.0, %v3277
      %v3279 = vpop.f32.mrf.mxu0
      %3280 = vmatprep.mubr.bf16.mxu0 0
      %3281 = vmatmul.mubr.bf16.gmra.mxu0 %v3097
      %v3282 = vpop.f32.mrf.mxu0
      %v3283 = vadd.f32 0.0, %v3282
      %v3284 = vpop.f32.mrf.mxu0
      %v3285 = vpop.f32.mrf.mxu0
      %v3286 = vadd.f32 0.0, %v3285
      %v3287 = vpop.f32.mrf.mxu0
      %3288 = vmatprep.mubr.bf16.mxu0 0
      %3289 = vmatmul.mubr.bf16.gmra.mxu0 %v3100
      %v3290 = vpop.f32.mrf.mxu0
      %v3291 = vadd.f32 0.0, %v3290
      %v3292 = vpop.f32.mrf.mxu0
      %v3293 = vpop.f32.mrf.mxu0
      %v3294 = vadd.f32 0.0, %v3293
      %v3295 = vpop.f32.mrf.mxu0
      %3296 = vmatprep.mubr.bf16.mxu0 0
      %3297 = vmatmul.mubr.bf16.gmra.mxu0 %v3103
      %v3298 = vpop.f32.mrf.mxu0
      %v3299 = vadd.f32 0.0, %v3298
      %v3300 = vpop.f32.mrf.mxu0
      %v3301 = vpop.f32.mrf.mxu0
      %v3302 = vadd.f32 0.0, %v3301
      %v3303 = vpop.f32.mrf.mxu0
      %3304 = vmatprep.mubr.bf16.mxu0 0
      %3305 = vmatmul.mubr.bf16.gmra.mxu0 %v3106
      %v3306 = vpop.f32.mrf.mxu0
      %v3307 = vadd.f32 0.0, %v3306
      %v3308 = vpop.f32.mrf.mxu0
      %v3309 = vpop.f32.mrf.mxu0
      %v3310 = vadd.f32 0.0, %v3309
      %v3311 = vpop.f32.mrf.mxu0
      %3312 = vmatprep.mubr.bf16.mxu0 0
      %3313 = vmatmul.mubr.bf16.gmra.mxu0 %v3109
      %v3314 = vpop.f32.mrf.mxu0
      %v3315 = vadd.f32 0.0, %v3314
      %v3316 = vpop.f32.mrf.mxu0
      %v3317 = vpop.f32.mrf.mxu0
      %v3318 = vadd.f32 0.0, %v3317
      %v3319 = vpop.f32.mrf.mxu0
      %3320 = vmatprep.mubr.bf16.mxu0 0
      %3321 = vmatmul.mubr.bf16.gmra.mxu0 %v3112
      %v3322 = vpop.f32.mrf.mxu0
      %v3323 = vadd.f32 0.0, %v3322
      %v3324 = vpop.f32.mrf.mxu0
      %v3325 = vpop.f32.mrf.mxu0
      %v3326 = vadd.f32 0.0, %v3325
      %v3327 = vpop.f32.mrf.mxu0
      %3328 = vmatprep.mubr.bf16.mxu0 0
      %3329 = vmatmul.mubr.bf16.gmra.mxu0 %v3115
      %v3330 = vpop.f32.mrf.mxu0
      %v3331 = vadd.f32 0.0, %v3330
      %v3332 = vpop.f32.mrf.mxu0
      %v3333 = vpop.f32.mrf.mxu0
      %v3334 = vadd.f32 0.0, %v3333
      %v3335 = vpop.f32.mrf.mxu0
      %3336 = vmatprep.mubr.bf16.mxu0 0
      %3337 = vmatmul.mubr.bf16.gmra.mxu0 %v3118
      %v3338 = vpop.f32.mrf.mxu0
      %v3339 = vadd.f32 0.0, %v3338
      %v3340 = vpop.f32.mrf.mxu0
      %v3341 = vpop.f32.mrf.mxu0
      %v3342 = vadd.f32 0.0, %v3341
      %v3343 = vpop.f32.mrf.mxu0
      %3344 = vdwg.mxu0
      %v3345 = vadd.f32 %v2941, %v3155
      %v3346 = vadd.f32 %v2942, %v3158
      %v3347 = vadd.f32 %v2943, %v3163
      %v3348 = vadd.f32 %v2944, %v3166
      %v3349 = vadd.f32 %v2945, %v3171
      %v3350 = vadd.f32 %v2946, %v3174
      %v3351 = vadd.f32 %v2947, %v3179
      %v3352 = vadd.f32 %v2948, %v3182
      %v3353 = vadd.f32 %v2949, %v3187
      %v3354 = vadd.f32 %v2950, %v3190
      %v3355 = vadd.f32 %v2951, %v3195
      %v3356 = vadd.f32 %v2952, %v3198
      %v3357 = vadd.f32 %v2953, %v3203
      %v3358 = vadd.f32 %v2954, %v3206
      %v3359 = vadd.f32 %v2955, %v3211
      %v3360 = vadd.f32 %v2956, %v3214
      %v3361 = vadd.f32 %v2957, %v3219
      %v3362 = vadd.f32 %v2958, %v3222
      %v3363 = vadd.f32 %v2959, %v3227
      %v3364 = vadd.f32 %v2960, %v3230
      %v3365 = vadd.f32 %v2961, %v3235
      %v3366 = vadd.f32 %v2962, %v3238
      %v3367 = vadd.f32 %v2963, %v3243
      %v3368 = vadd.f32 %v2964, %v3246
      %v3369 = vadd.f32 %v2965, %v3251
      %v3370 = vadd.f32 %v2966, %v3254
      %v3371 = vadd.f32 %v2967, %v3259
      %v3372 = vadd.f32 %v2968, %v3262
      %v3373 = vadd.f32 %v2969, %v3267
      %v3374 = vadd.f32 %v2970, %v3270
      %v3375 = vadd.f32 %v2971, %v3275
      %v3376 = vadd.f32 %v2972, %v3278
      %v3377 = vadd.f32 %v2973, %v3283
      %v3378 = vadd.f32 %v2974, %v3286
      %v3379 = vadd.f32 %v2975, %v3291
      %v3380 = vadd.f32 %v2976, %v3294
      %v3381 = vadd.f32 %v2977, %v3299
      %v3382 = vadd.f32 %v2978, %v3302
      %v3383 = vadd.f32 %v2979, %v3307
      %v3384 = vadd.f32 %v2980, %v3310
      %v3385 = vadd.f32 %v2981, %v3315
      %v3386 = vadd.f32 %v2982, %v3318
      %v3387 = vadd.f32 %v2983, %v3323
      %v3388 = vadd.f32 %v2984, %v3326
      %v3389 = vadd.f32 %v2985, %v3331
      %v3390 = vadd.f32 %v2986, %v3334
      %v3391 = vadd.f32 %v2987, %v3339
      %v3392 = vadd.f32 %v2988, %v3342
      %s3393 = scalar_lea.vmem %s281, 40
      %v3394 = vld [vmem:[%s3393] sm:$0xf]
      %v3395 = vld [vmem:[%s3393 + $0x4] sm:$0xf]
      %v3396 = vrot.slane %v936, 1
      %v3397 = vrot.slane %v937, 1
      %v3398 = vsel %vm2992, %v3396, %v3397
      %v3399 = vrot.slane %v938, 1
      %v3400 = vsel %vm2992, %v3397, %v3399
      %v3401 = vrot.slane %v939, 1
      %v3402 = vsel %vm2992, %v3399, %v3401
      %v3403 = vrot.slane %v940, 1
      %v3404 = vsel %vm2992, %v3401, %v3403
      %v3405 = vrot.slane %v941, 1
      %v3406 = vsel %vm2992, %v3403, %v3405
      %v3407 = vrot.slane %v942, 1
      %v3408 = vsel %vm2992, %v3405, %v3407
      %v3409 = vrot.slane %v943, 1
      %v3410 = vsel %vm2992, %v3407, %v3409
      %v3411 = vrot.slane %v944, 1
      %v3412 = vsel %vm2992, %v3409, %v3411
      %v3413 = vrot.slane %v945, 1
      %v3414 = vsel %vm2992, %v3411, %v3413
      %v3415 = vrot.slane %v946, 1
      %v3416 = vsel %vm2992, %v3413, %v3415
      %v3417 = vrot.slane %v947, 1
      %v3418 = vsel %vm2992, %v3415, %v3417
      %v3419 = vrot.slane %v948, 1
      %v3420 = vsel %vm2992, %v3417, %v3419
      %v3421 = vrot.slane %v949, 1
      %v3422 = vsel %vm2992, %v3419, %v3421
      %v3423 = vrot.slane %v950, 1
      %v3424 = vsel %vm2992, %v3421, %v3423
      %v3425 = vrot.slane %v951, 1
      %v3426 = vsel %vm2992, %v3423, %v3425
      %v3427 = vrot.slane %v952, 1
      %v3428 = vsel %vm2992, %v3425, %v3427
      %v3429 = vrot.slane %v953, 1
      %v3430 = vsel %vm2992, %v3427, %v3429
      %v3431 = vrot.slane %v954, 1
      %v3432 = vsel %vm2992, %v3429, %v3431
      %v3433 = vrot.slane %v955, 1
      %v3434 = vsel %vm2992, %v3431, %v3433
      %v3435 = vrot.slane %v956, 1
      %v3436 = vsel %vm2992, %v3433, %v3435
      %v3437 = vrot.slane %v957, 1
      %v3438 = vsel %vm2992, %v3435, %v3437
      %v3439 = vrot.slane %v958, 1
      %v3440 = vsel %vm2992, %v3437, %v3439
      %v3441 = vrot.slane %v959, 1
      %v3442 = vsel %vm2992, %v3439, %v3441
      %v3443 = vrot.slane %v2142, 1
      %v3444 = vsel %vm2992, %v3441, %v3443
      %v3447 = vunpack.c.l.b16 %v3394
      %v3448 = vunpack.c.l.b16 %v3395
      %v3449 = vpack.c.b16 %v3448, %v3447
      %v3452 = vsel %vm581, %v3398, 0
      %v3455 = vsel %vm581, %v3400, 0
      %v3458 = vsel %vm581, %v3402, 0
      %v3461 = vsel %vm581, %v3404, 0
      %v3464 = vsel %vm581, %v3406, 0
      %v3467 = vsel %vm581, %v3408, 0
      %v3470 = vsel %vm581, %v3410, 0
      %v3473 = vsel %vm581, %v3412, 0
      %v3476 = vsel %vm581, %v3414, 0
      %v3479 = vsel %vm581, %v3416, 0
      %v3482 = vsel %vm581, %v3418, 0
      %v3485 = vsel %vm581, %v3420, 0
      %v3488 = vsel %vm581, %v3422, 0
      %v3491 = vsel %vm581, %v3424, 0
      %v3494 = vsel %vm581, %v3426, 0
      %v3497 = vsel %vm581, %v3428, 0
      %v3500 = vsel %vm581, %v3430, 0
      %v3503 = vsel %vm581, %v3432, 0
      %v3506 = vsel %vm581, %v3434, 0
      %v3509 = vsel %vm581, %v3436, 0
      %v3512 = vsel %vm581, %v3438, 0
      %v3515 = vsel %vm581, %v3440, 0
      %v3518 = vsel %vm581, %v3442, 0
      %v3521 = vsel %vm581, %v3444, 0
      %3523 = vmatprep.subr.bf16.mxu0 0
      %3524 = vmatpush1.bf16.msra.mxu0 0
      %3525 = vmatprep.subr.bf16.mxu0 0
      %3526 = vmatpush1.bf16.msra.mxu0 0
      %3527 = vmatprep.subr.bf16.mxu0 0
      %3528 = vmatpush1.bf16.msra.mxu0 0
      %3529 = vmatprep.subr.bf16.mxu0 0
      %3530 = vmatpush1.bf16.msra.mxu0 0
      %3531 = vmatprep.subr.bf16.mxu0 0
      %3532 = vmatpush1.bf16.msra.mxu0 0
      %3533 = vmatprep.subr.bf16.mxu0 0
      %3534 = vmatpush1.bf16.msra.mxu0 0
      %3535 = vmatprep.subr.bf16.mxu0 0
      %3536 = vmatpush1.bf16.msra.mxu0 0
      %3537 = vmatprep.subr.bf16.mxu0 0
      %3538 = vmatpush1.bf16.msra.mxu0 %v3449
      %3539 = vmatprep.subr.bf16.mxu0 0
      %3540 = vmatpush2.bf16.msra.mxu0 0
      %3541 = vmatprep.subr.bf16.mxu0 0
      %3542 = vmatpush2.bf16.msra.mxu0 0
      %3543 = vmatprep.subr.bf16.mxu0 0
      %3544 = vmatpush2.bf16.msra.mxu0 0
      %3545 = vmatprep.subr.bf16.mxu0 0
      %3546 = vmatpush2.bf16.msra.mxu0 0
      %3547 = vmatprep.subr.bf16.mxu0 0
      %3548 = vmatpush2.bf16.msra.mxu0 0
      %3549 = vmatprep.subr.bf16.mxu0 0
      %3550 = vmatpush2.bf16.msra.mxu0 0
      %3551 = vmatprep.subr.bf16.mxu0 0
      %3552 = vmatpush2.bf16.msra.mxu0 0
      %3553 = vmatprep.subr.bf16.mxu0 0
      %3554 = vmatpush2.bf16.msra.mxu0 0
      %3555 = vmatprep.mubr.bf16.mxu0 0
      %3556 = vmatmul.mubr.bf16.gmra.mxu0 %v3452
      %v3557 = vpop.f32.mrf.mxu0
      %v3558 = vadd.f32 0.0, %v3557
      %v3559 = vpop.f32.mrf.mxu0
      %v3560 = vpop.f32.mrf.mxu0
      %v3561 = vadd.f32 0.0, %v3560
      %v3562 = vpop.f32.mrf.mxu0
      %3563 = vmatprep.mubr.bf16.mxu0 0
      %3564 = vmatmul.mubr.bf16.gmra.mxu0 %v3455
      %v3565 = vpop.f32.mrf.mxu0
      %v3566 = vadd.f32 0.0, %v3565
      %v3567 = vpop.f32.mrf.mxu0
      %v3568 = vpop.f32.mrf.mxu0
      %v3569 = vadd.f32 0.0, %v3568
      %v3570 = vpop.f32.mrf.mxu0
      %3571 = vmatprep.mubr.bf16.mxu0 0
      %3572 = vmatmul.mubr.bf16.gmra.mxu0 %v3458
      %v3573 = vpop.f32.mrf.mxu0
      %v3574 = vadd.f32 0.0, %v3573
      %v3575 = vpop.f32.mrf.mxu0
      %v3576 = vpop.f32.mrf.mxu0
      %v3577 = vadd.f32 0.0, %v3576
      %v3578 = vpop.f32.mrf.mxu0
      %3579 = vmatprep.mubr.bf16.mxu0 0
      %3580 = vmatmul.mubr.bf16.gmra.mxu0 %v3461
      %v3581 = vpop.f32.mrf.mxu0
      %v3582 = vadd.f32 0.0, %v3581
      %v3583 = vpop.f32.mrf.mxu0
      %v3584 = vpop.f32.mrf.mxu0
      %v3585 = vadd.f32 0.0, %v3584
      %v3586 = vpop.f32.mrf.mxu0
      %3587 = vmatprep.mubr.bf16.mxu0 0
      %3588 = vmatmul.mubr.bf16.gmra.mxu0 %v3464
      %v3589 = vpop.f32.mrf.mxu0
      %v3590 = vadd.f32 0.0, %v3589
      %v3591 = vpop.f32.mrf.mxu0
      %v3592 = vpop.f32.mrf.mxu0
      %v3593 = vadd.f32 0.0, %v3592
      %v3594 = vpop.f32.mrf.mxu0
      %3595 = vmatprep.mubr.bf16.mxu0 0
      %3596 = vmatmul.mubr.bf16.gmra.mxu0 %v3467
      %v3597 = vpop.f32.mrf.mxu0
      %v3598 = vadd.f32 0.0, %v3597
      %v3599 = vpop.f32.mrf.mxu0
      %v3600 = vpop.f32.mrf.mxu0
      %v3601 = vadd.f32 0.0, %v3600
      %v3602 = vpop.f32.mrf.mxu0
      %3603 = vmatprep.mubr.bf16.mxu0 0
      %3604 = vmatmul.mubr.bf16.gmra.mxu0 %v3470
      %v3605 = vpop.f32.mrf.mxu0
      %v3606 = vadd.f32 0.0, %v3605
      %v3607 = vpop.f32.mrf.mxu0
      %v3608 = vpop.f32.mrf.mxu0
      %v3609 = vadd.f32 0.0, %v3608
      %v3610 = vpop.f32.mrf.mxu0
      %3611 = vmatprep.mubr.bf16.mxu0 0
      %3612 = vmatmul.mubr.bf16.gmra.mxu0 %v3473
      %v3613 = vpop.f32.mrf.mxu0
      %v3614 = vadd.f32 0.0, %v3613
      %v3615 = vpop.f32.mrf.mxu0
      %v3616 = vpop.f32.mrf.mxu0
      %v3617 = vadd.f32 0.0, %v3616
      %v3618 = vpop.f32.mrf.mxu0
      %3619 = vmatprep.mubr.bf16.mxu0 0
      %3620 = vmatmul.mubr.bf16.gmra.mxu0 %v3476
      %v3621 = vpop.f32.mrf.mxu0
      %v3622 = vadd.f32 0.0, %v3621
      %v3623 = vpop.f32.mrf.mxu0
      %v3624 = vpop.f32.mrf.mxu0
      %v3625 = vadd.f32 0.0, %v3624
      %v3626 = vpop.f32.mrf.mxu0
      %3627 = vmatprep.mubr.bf16.mxu0 0
      %3628 = vmatmul.mubr.bf16.gmra.mxu0 %v3479
      %v3629 = vpop.f32.mrf.mxu0
      %v3630 = vadd.f32 0.0, %v3629
      %v3631 = vpop.f32.mrf.mxu0
      %v3632 = vpop.f32.mrf.mxu0
      %v3633 = vadd.f32 0.0, %v3632
      %v3634 = vpop.f32.mrf.mxu0
      %3635 = vmatprep.mubr.bf16.mxu0 0
      %3636 = vmatmul.mubr.bf16.gmra.mxu0 %v3482
      %v3637 = vpop.f32.mrf.mxu0
      %v3638 = vadd.f32 0.0, %v3637
      %v3639 = vpop.f32.mrf.mxu0
      %v3640 = vpop.f32.mrf.mxu0
      %v3641 = vadd.f32 0.0, %v3640
      %v3642 = vpop.f32.mrf.mxu0
      %3643 = vmatprep.mubr.bf16.mxu0 0
      %3644 = vmatmul.mubr.bf16.gmra.mxu0 %v3485
      %v3645 = vpop.f32.mrf.mxu0
      %v3646 = vadd.f32 0.0, %v3645
      %v3647 = vpop.f32.mrf.mxu0
      %v3648 = vpop.f32.mrf.mxu0
      %v3649 = vadd.f32 0.0, %v3648
      %v3650 = vpop.f32.mrf.mxu0
      %3651 = vmatprep.mubr.bf16.mxu0 0
      %3652 = vmatmul.mubr.bf16.gmra.mxu0 %v3488
      %v3653 = vpop.f32.mrf.mxu0
      %v3654 = vadd.f32 0.0, %v3653
      %v3655 = vpop.f32.mrf.mxu0
      %v3656 = vpop.f32.mrf.mxu0
      %v3657 = vadd.f32 0.0, %v3656
      %v3658 = vpop.f32.mrf.mxu0
      %3659 = vmatprep.mubr.bf16.mxu0 0
      %3660 = vmatmul.mubr.bf16.gmra.mxu0 %v3491
      %v3661 = vpop.f32.mrf.mxu0
      %v3662 = vadd.f32 0.0, %v3661
      %v3663 = vpop.f32.mrf.mxu0
      %v3664 = vpop.f32.mrf.mxu0
      %v3665 = vadd.f32 0.0, %v3664
      %v3666 = vpop.f32.mrf.mxu0
      %3667 = vmatprep.mubr.bf16.mxu0 0
      %3668 = vmatmul.mubr.bf16.gmra.mxu0 %v3494
      %v3669 = vpop.f32.mrf.mxu0
      %v3670 = vadd.f32 0.0, %v3669
      %v3671 = vpop.f32.mrf.mxu0
      %v3672 = vpop.f32.mrf.mxu0
      %v3673 = vadd.f32 0.0, %v3672
      %v3674 = vpop.f32.mrf.mxu0
      %3675 = vmatprep.mubr.bf16.mxu0 0
      %3676 = vmatmul.mubr.bf16.gmra.mxu0 %v3497
      %v3677 = vpop.f32.mrf.mxu0
      %v3678 = vadd.f32 0.0, %v3677
      %v3679 = vpop.f32.mrf.mxu0
      %v3680 = vpop.f32.mrf.mxu0
      %v3681 = vadd.f32 0.0, %v3680
      %v3682 = vpop.f32.mrf.mxu0
      %3683 = vmatprep.mubr.bf16.mxu0 0
      %3684 = vmatmul.mubr.bf16.gmra.mxu0 %v3500
      %v3685 = vpop.f32.mrf.mxu0
      %v3686 = vadd.f32 0.0, %v3685
      %v3687 = vpop.f32.mrf.mxu0
      %v3688 = vpop.f32.mrf.mxu0
      %v3689 = vadd.f32 0.0, %v3688
      %v3690 = vpop.f32.mrf.mxu0
      %3691 = vmatprep.mubr.bf16.mxu0 0
      %3692 = vmatmul.mubr.bf16.gmra.mxu0 %v3503
      %v3693 = vpop.f32.mrf.mxu0
      %v3694 = vadd.f32 0.0, %v3693
      %v3695 = vpop.f32.mrf.mxu0
      %v3696 = vpop.f32.mrf.mxu0
      %v3697 = vadd.f32 0.0, %v3696
      %v3698 = vpop.f32.mrf.mxu0
      %3699 = vmatprep.mubr.bf16.mxu0 0
      %3700 = vmatmul.mubr.bf16.gmra.mxu0 %v3506
      %v3701 = vpop.f32.mrf.mxu0
      %v3702 = vadd.f32 0.0, %v3701
      %v3703 = vpop.f32.mrf.mxu0
      %v3704 = vpop.f32.mrf.mxu0
      %v3705 = vadd.f32 0.0, %v3704
      %v3706 = vpop.f32.mrf.mxu0
      %3707 = vmatprep.mubr.bf16.mxu0 0
      %3708 = vmatmul.mubr.bf16.gmra.mxu0 %v3509
      %v3709 = vpop.f32.mrf.mxu0
      %v3710 = vadd.f32 0.0, %v3709
      %v3711 = vpop.f32.mrf.mxu0
      %v3712 = vpop.f32.mrf.mxu0
      %v3713 = vadd.f32 0.0, %v3712
      %v3714 = vpop.f32.mrf.mxu0
      %3715 = vmatprep.mubr.bf16.mxu0 0
      %3716 = vmatmul.mubr.bf16.gmra.mxu0 %v3512
      %v3717 = vpop.f32.mrf.mxu0
      %v3718 = vadd.f32 0.0, %v3717
      %v3719 = vpop.f32.mrf.mxu0
      %v3720 = vpop.f32.mrf.mxu0
      %v3721 = vadd.f32 0.0, %v3720
      %v3722 = vpop.f32.mrf.mxu0
      %3723 = vmatprep.mubr.bf16.mxu0 0
      %3724 = vmatmul.mubr.bf16.gmra.mxu0 %v3515
      %v3725 = vpop.f32.mrf.mxu0
      %v3726 = vadd.f32 0.0, %v3725
      %v3727 = vpop.f32.mrf.mxu0
      %v3728 = vpop.f32.mrf.mxu0
      %v3729 = vadd.f32 0.0, %v3728
      %v3730 = vpop.f32.mrf.mxu0
      %3731 = vmatprep.mubr.bf16.mxu0 0
      %3732 = vmatmul.mubr.bf16.gmra.mxu0 %v3518
      %v3733 = vpop.f32.mrf.mxu0
      %v3734 = vadd.f32 0.0, %v3733
      %v3735 = vpop.f32.mrf.mxu0
      %v3736 = vpop.f32.mrf.mxu0
      %v3737 = vadd.f32 0.0, %v3736
      %v3738 = vpop.f32.mrf.mxu0
      %3739 = vmatprep.mubr.bf16.mxu0 0
      %3740 = vmatmul.mubr.bf16.gmra.mxu0 %v3521
      %v3741 = vpop.f32.mrf.mxu0
      %v3742 = vadd.f32 0.0, %v3741
      %v3743 = vpop.f32.mrf.mxu0
      %v3744 = vpop.f32.mrf.mxu0
      %v3745 = vadd.f32 0.0, %v3744
      %v3746 = vpop.f32.mrf.mxu0
      %3747 = vdwg.mxu0
      %v3748 = vadd.f32 %v3345, %v3558
      %v3749 = vadd.f32 %v3346, %v3561
      %v3750 = vadd.f32 %v3347, %v3566
      %v3751 = vadd.f32 %v3348, %v3569
      %v3752 = vadd.f32 %v3349, %v3574
      %v3753 = vadd.f32 %v3350, %v3577
      %v3754 = vadd.f32 %v3351, %v3582
      %v3755 = vadd.f32 %v3352, %v3585
      %v3756 = vadd.f32 %v3353, %v3590
      %v3757 = vadd.f32 %v3354, %v3593
      %v3758 = vadd.f32 %v3355, %v3598
      %v3759 = vadd.f32 %v3356, %v3601
      %v3760 = vadd.f32 %v3357, %v3606
      %v3761 = vadd.f32 %v3358, %v3609
      %v3762 = vadd.f32 %v3359, %v3614
      %v3763 = vadd.f32 %v3360, %v3617
      %v3764 = vadd.f32 %v3361, %v3622
      %v3765 = vadd.f32 %v3362, %v3625
      %v3766 = vadd.f32 %v3363, %v3630
      %v3767 = vadd.f32 %v3364, %v3633
      %v3768 = vadd.f32 %v3365, %v3638
      %v3769 = vadd.f32 %v3366, %v3641
      %v3770 = vadd.f32 %v3367, %v3646
      %v3771 = vadd.f32 %v3368, %v3649
      %v3772 = vadd.f32 %v3369, %v3654
      %v3773 = vadd.f32 %v3370, %v3657
      %v3774 = vadd.f32 %v3371, %v3662
      %v3775 = vadd.f32 %v3372, %v3665
      %v3776 = vadd.f32 %v3373, %v3670
      %v3777 = vadd.f32 %v3374, %v3673
      %v3778 = vadd.f32 %v3375, %v3678
      %v3779 = vadd.f32 %v3376, %v3681
      %v3780 = vadd.f32 %v3377, %v3686
      %v3781 = vadd.f32 %v3378, %v3689
      %v3782 = vadd.f32 %v3379, %v3694
      %v3783 = vadd.f32 %v3380, %v3697
      %v3784 = vadd.f32 %v3381, %v3702
      %v3785 = vadd.f32 %v3382, %v3705
      %v3786 = vadd.f32 %v3383, %v3710
      %v3787 = vadd.f32 %v3384, %v3713
      %v3788 = vadd.f32 %v3385, %v3718
      %v3789 = vadd.f32 %v3386, %v3721
      %v3790 = vadd.f32 %v3387, %v3726
      %v3791 = vadd.f32 %v3388, %v3729
      %v3792 = vadd.f32 %v3389, %v3734
      %v3793 = vadd.f32 %v3390, %v3737
      %v3794 = vadd.f32 %v3391, %v3742
      %v3795 = vadd.f32 %v3392, %v3745
      %s3796 = scalar_lea.vmem %s281, 64
      %v3797 = vld [vmem:[%s3796] sm:$0xf]
      %v3798 = vld [vmem:[%s3796 + $0x4] sm:$0xf]
      %v3799 = vrot.slane %v1320, 1
      %v3800 = vsel %vm2992, %v3038, %v3799
      %v3801 = vrot.slane %v1321, 1
      %v3802 = vsel %vm2992, %v3799, %v3801
      %v3803 = vrot.slane %v1322, 1
      %v3804 = vsel %vm2992, %v3801, %v3803
      %v3805 = vrot.slane %v2671, 1
      %v3806 = vsel %vm2992, %v3803, %v3805
      %v3809 = vunpack.c.l.b16 %v3797
      %v3810 = vunpack.c.l.b16 %v3798
      %v3811 = vpack.c.b16 %v3810, %v3809
      %v3814 = vsel %vm581, %v3800, 0
      %v3817 = vsel %vm581, %v3802, 0
      %v3820 = vsel %vm581, %v3804, 0
      %v3823 = vsel %vm581, %v3806, 0
      %3825 = vmatprep.subr.bf16.mxu0 0
      %3826 = vmatpush1.bf16.msra.mxu0 0
      %3827 = vmatprep.subr.bf16.mxu0 0
      %3828 = vmatpush1.bf16.msra.mxu0 0
      %3829 = vmatprep.subr.bf16.mxu0 0
      %3830 = vmatpush1.bf16.msra.mxu0 0
      %3831 = vmatprep.subr.bf16.mxu0 0
      %3832 = vmatpush1.bf16.msra.mxu0 0
      %3833 = vmatprep.subr.bf16.mxu0 0
      %3834 = vmatpush1.bf16.msra.mxu0 0
      %3835 = vmatprep.subr.bf16.mxu0 0
      %3836 = vmatpush1.bf16.msra.mxu0 0
      %3837 = vmatprep.subr.bf16.mxu0 0
      %3838 = vmatpush1.bf16.msra.mxu0 0
      %3839 = vmatprep.subr.bf16.mxu0 0
      %3840 = vmatpush1.bf16.msra.mxu0 %v3811
      %3841 = vmatprep.subr.bf16.mxu0 0
      %3842 = vmatpush2.bf16.msra.mxu0 0
      %3843 = vmatprep.subr.bf16.mxu0 0
      %3844 = vmatpush2.bf16.msra.mxu0 0
      %3845 = vmatprep.subr.bf16.mxu0 0
      %3846 = vmatpush2.bf16.msra.mxu0 0
      %3847 = vmatprep.subr.bf16.mxu0 0
      %3848 = vmatpush2.bf16.msra.mxu0 0
      %3849 = vmatprep.subr.bf16.mxu0 0
      %3850 = vmatpush2.bf16.msra.mxu0 0
      %3851 = vmatprep.subr.bf16.mxu0 0
      %3852 = vmatpush2.bf16.msra.mxu0 0
      %3853 = vmatprep.subr.bf16.mxu0 0
      %3854 = vmatpush2.bf16.msra.mxu0 0
      %3855 = vmatprep.subr.bf16.mxu0 0
      %3856 = vmatpush2.bf16.msra.mxu0 0
      %3857 = vmatprep.mubr.bf16.mxu0 0
      %3858 = vmatmul.mubr.bf16.gmra.mxu0 %v3058
      %v3859 = vpop.f32.mrf.mxu0
      %v3860 = vadd.f32 0.0, %v3859
      %v3861 = vpop.f32.mrf.mxu0
      %v3862 = vpop.f32.mrf.mxu0
      %v3863 = vadd.f32 0.0, %v3862
      %v3864 = vpop.f32.mrf.mxu0
      %3865 = vmatprep.mubr.bf16.mxu0 0
      %3866 = vmatmul.mubr.bf16.gmra.mxu0 %v3061
      %v3867 = vpop.f32.mrf.mxu0
      %v3868 = vadd.f32 0.0, %v3867
      %v3869 = vpop.f32.mrf.mxu0
      %v3870 = vpop.f32.mrf.mxu0
      %v3871 = vadd.f32 0.0, %v3870
      %v3872 = vpop.f32.mrf.mxu0
      %3873 = vmatprep.mubr.bf16.mxu0 0
      %3874 = vmatmul.mubr.bf16.gmra.mxu0 %v3064
      %v3875 = vpop.f32.mrf.mxu0
      %v3876 = vadd.f32 0.0, %v3875
      %v3877 = vpop.f32.mrf.mxu0
      %v3878 = vpop.f32.mrf.mxu0
      %v3879 = vadd.f32 0.0, %v3878
      %v3880 = vpop.f32.mrf.mxu0
      %3881 = vmatprep.mubr.bf16.mxu0 0
      %3882 = vmatmul.mubr.bf16.gmra.mxu0 %v3067
      %v3883 = vpop.f32.mrf.mxu0
      %v3884 = vadd.f32 0.0, %v3883
      %v3885 = vpop.f32.mrf.mxu0
      %v3886 = vpop.f32.mrf.mxu0
      %v3887 = vadd.f32 0.0, %v3886
      %v3888 = vpop.f32.mrf.mxu0
      %3889 = vmatprep.mubr.bf16.mxu0 0
      %3890 = vmatmul.mubr.bf16.gmra.mxu0 %v3070
      %v3891 = vpop.f32.mrf.mxu0
      %v3892 = vadd.f32 0.0, %v3891
      %v3893 = vpop.f32.mrf.mxu0
      %v3894 = vpop.f32.mrf.mxu0
      %v3895 = vadd.f32 0.0, %v3894
      %v3896 = vpop.f32.mrf.mxu0
      %3897 = vmatprep.mubr.bf16.mxu0 0
      %3898 = vmatmul.mubr.bf16.gmra.mxu0 %v3073
      %v3899 = vpop.f32.mrf.mxu0
      %v3900 = vadd.f32 0.0, %v3899
      %v3901 = vpop.f32.mrf.mxu0
      %v3902 = vpop.f32.mrf.mxu0
      %v3903 = vadd.f32 0.0, %v3902
      %v3904 = vpop.f32.mrf.mxu0
      %3905 = vmatprep.mubr.bf16.mxu0 0
      %3906 = vmatmul.mubr.bf16.gmra.mxu0 %v3076
      %v3907 = vpop.f32.mrf.mxu0
      %v3908 = vadd.f32 0.0, %v3907
      %v3909 = vpop.f32.mrf.mxu0
      %v3910 = vpop.f32.mrf.mxu0
      %v3911 = vadd.f32 0.0, %v3910
      %v3912 = vpop.f32.mrf.mxu0
      %3913 = vmatprep.mubr.bf16.mxu0 0
      %3914 = vmatmul.mubr.bf16.gmra.mxu0 %v3079
      %v3915 = vpop.f32.mrf.mxu0
      %v3916 = vadd.f32 0.0, %v3915
      %v3917 = vpop.f32.mrf.mxu0
      %v3918 = vpop.f32.mrf.mxu0
      %v3919 = vadd.f32 0.0, %v3918
      %v3920 = vpop.f32.mrf.mxu0
      %3921 = vmatprep.mubr.bf16.mxu0 0
      %3922 = vmatmul.mubr.bf16.gmra.mxu0 %v3082
      %v3923 = vpop.f32.mrf.mxu0
      %v3924 = vadd.f32 0.0, %v3923
      %v3925 = vpop.f32.mrf.mxu0
      %v3926 = vpop.f32.mrf.mxu0
      %v3927 = vadd.f32 0.0, %v3926
      %v3928 = vpop.f32.mrf.mxu0
      %3929 = vmatprep.mubr.bf16.mxu0 0
      %3930 = vmatmul.mubr.bf16.gmra.mxu0 %v3085
      %v3931 = vpop.f32.mrf.mxu0
      %v3932 = vadd.f32 0.0, %v3931
      %v3933 = vpop.f32.mrf.mxu0
      %v3934 = vpop.f32.mrf.mxu0
      %v3935 = vadd.f32 0.0, %v3934
      %v3936 = vpop.f32.mrf.mxu0
      %3937 = vmatprep.mubr.bf16.mxu0 0
      %3938 = vmatmul.mubr.bf16.gmra.mxu0 %v3088
      %v3939 = vpop.f32.mrf.mxu0
      %v3940 = vadd.f32 0.0, %v3939
      %v3941 = vpop.f32.mrf.mxu0
      %v3942 = vpop.f32.mrf.mxu0
      %v3943 = vadd.f32 0.0, %v3942
      %v3944 = vpop.f32.mrf.mxu0
      %3945 = vmatprep.mubr.bf16.mxu0 0
      %3946 = vmatmul.mubr.bf16.gmra.mxu0 %v3091
      %v3947 = vpop.f32.mrf.mxu0
      %v3948 = vadd.f32 0.0, %v3947
      %v3949 = vpop.f32.mrf.mxu0
      %v3950 = vpop.f32.mrf.mxu0
      %v3951 = vadd.f32 0.0, %v3950
      %v3952 = vpop.f32.mrf.mxu0
      %3953 = vmatprep.mubr.bf16.mxu0 0
      %3954 = vmatmul.mubr.bf16.gmra.mxu0 %v3094
      %v3955 = vpop.f32.mrf.mxu0
      %v3956 = vadd.f32 0.0, %v3955
      %v3957 = vpop.f32.mrf.mxu0
      %v3958 = vpop.f32.mrf.mxu0
      %v3959 = vadd.f32 0.0, %v3958
      %v3960 = vpop.f32.mrf.mxu0
      %3961 = vmatprep.mubr.bf16.mxu0 0
      %3962 = vmatmul.mubr.bf16.gmra.mxu0 %v3097
      %v3963 = vpop.f32.mrf.mxu0
      %v3964 = vadd.f32 0.0, %v3963
      %v3965 = vpop.f32.mrf.mxu0
      %v3966 = vpop.f32.mrf.mxu0
      %v3967 = vadd.f32 0.0, %v3966
      %v3968 = vpop.f32.mrf.mxu0
      %3969 = vmatprep.mubr.bf16.mxu0 0
      %3970 = vmatmul.mubr.bf16.gmra.mxu0 %v3100
      %v3971 = vpop.f32.mrf.mxu0
      %v3972 = vadd.f32 0.0, %v3971
      %v3973 = vpop.f32.mrf.mxu0
      %v3974 = vpop.f32.mrf.mxu0
      %v3975 = vadd.f32 0.0, %v3974
      %v3976 = vpop.f32.mrf.mxu0
      %3977 = vmatprep.mubr.bf16.mxu0 0
      %3978 = vmatmul.mubr.bf16.gmra.mxu0 %v3103
      %v3979 = vpop.f32.mrf.mxu0
      %v3980 = vadd.f32 0.0, %v3979
      %v3981 = vpop.f32.mrf.mxu0
      %v3982 = vpop.f32.mrf.mxu0
      %v3983 = vadd.f32 0.0, %v3982
      %v3984 = vpop.f32.mrf.mxu0
      %3985 = vmatprep.mubr.bf16.mxu0 0
      %3986 = vmatmul.mubr.bf16.gmra.mxu0 %v3106
      %v3987 = vpop.f32.mrf.mxu0
      %v3988 = vadd.f32 0.0, %v3987
      %v3989 = vpop.f32.mrf.mxu0
      %v3990 = vpop.f32.mrf.mxu0
      %v3991 = vadd.f32 0.0, %v3990
      %v3992 = vpop.f32.mrf.mxu0
      %3993 = vmatprep.mubr.bf16.mxu0 0
      %3994 = vmatmul.mubr.bf16.gmra.mxu0 %v3109
      %v3995 = vpop.f32.mrf.mxu0
      %v3996 = vadd.f32 0.0, %v3995
      %v3997 = vpop.f32.mrf.mxu0
      %v3998 = vpop.f32.mrf.mxu0
      %v3999 = vadd.f32 0.0, %v3998
      %v4000 = vpop.f32.mrf.mxu0
      %4001 = vmatprep.mubr.bf16.mxu0 0
      %4002 = vmatmul.mubr.bf16.gmra.mxu0 %v3112
      %v4003 = vpop.f32.mrf.mxu0
      %v4004 = vadd.f32 0.0, %v4003
      %v4005 = vpop.f32.mrf.mxu0
      %v4006 = vpop.f32.mrf.mxu0
      %v4007 = vadd.f32 0.0, %v4006
      %v4008 = vpop.f32.mrf.mxu0
      %4009 = vmatprep.mubr.bf16.mxu0 0
      %4010 = vmatmul.mubr.bf16.gmra.mxu0 %v3115
      %v4011 = vpop.f32.mrf.mxu0
      %v4012 = vadd.f32 0.0, %v4011
      %v4013 = vpop.f32.mrf.mxu0
      %v4014 = vpop.f32.mrf.mxu0
      %v4015 = vadd.f32 0.0, %v4014
      %v4016 = vpop.f32.mrf.mxu0
      %4017 = vmatprep.mubr.bf16.mxu0 0
      %4018 = vmatmul.mubr.bf16.gmra.mxu0 %v3814
      %v4019 = vpop.f32.mrf.mxu0
      %v4020 = vadd.f32 0.0, %v4019
      %v4021 = vpop.f32.mrf.mxu0
      %v4022 = vpop.f32.mrf.mxu0
      %v4023 = vadd.f32 0.0, %v4022
      %v4024 = vpop.f32.mrf.mxu0
      %4025 = vmatprep.mubr.bf16.mxu0 0
      %4026 = vmatmul.mubr.bf16.gmra.mxu0 %v3817
      %v4027 = vpop.f32.mrf.mxu0
      %v4028 = vadd.f32 0.0, %v4027
      %v4029 = vpop.f32.mrf.mxu0
      %v4030 = vpop.f32.mrf.mxu0
      %v4031 = vadd.f32 0.0, %v4030
      %v4032 = vpop.f32.mrf.mxu0
      %4033 = vmatprep.mubr.bf16.mxu0 0
      %4034 = vmatmul.mubr.bf16.gmra.mxu0 %v3820
      %v4035 = vpop.f32.mrf.mxu0
      %v4036 = vadd.f32 0.0, %v4035
      %v4037 = vpop.f32.mrf.mxu0
      %v4038 = vpop.f32.mrf.mxu0
      %v4039 = vadd.f32 0.0, %v4038
      %v4040 = vpop.f32.mrf.mxu0
      %4041 = vmatprep.mubr.bf16.mxu0 0
      %4042 = vmatmul.mubr.bf16.gmra.mxu0 %v3823
      %v4043 = vpop.f32.mrf.mxu0
      %v4044 = vadd.f32 0.0, %v4043
      %v4045 = vpop.f32.mrf.mxu0
      %v4046 = vpop.f32.mrf.mxu0
      %v4047 = vadd.f32 0.0, %v4046
      %v4048 = vpop.f32.mrf.mxu0
      %4049 = vdwg.mxu0
      %v4050 = vadd.f32 %v3748, %v3860
      %v4051 = vadd.f32 %v3749, %v3863
      %v4052 = vadd.f32 %v3750, %v3868
      %v4053 = vadd.f32 %v3751, %v3871
      %v4054 = vadd.f32 %v3752, %v3876
      %v4055 = vadd.f32 %v3753, %v3879
      %v4056 = vadd.f32 %v3754, %v3884
      %v4057 = vadd.f32 %v3755, %v3887
      %v4058 = vadd.f32 %v3756, %v3892
      %v4059 = vadd.f32 %v3757, %v3895
      %v4060 = vadd.f32 %v3758, %v3900
      %v4061 = vadd.f32 %v3759, %v3903
      %v4062 = vadd.f32 %v3760, %v3908
      %v4063 = vadd.f32 %v3761, %v3911
      %v4064 = vadd.f32 %v3762, %v3916
      %v4065 = vadd.f32 %v3763, %v3919
      %v4066 = vadd.f32 %v3764, %v3924
      %v4067 = vadd.f32 %v3765, %v3927
      %v4068 = vadd.f32 %v3766, %v3932
      %v4069 = vadd.f32 %v3767, %v3935
      %v4070 = vadd.f32 %v3768, %v3940
      %v4071 = vadd.f32 %v3769, %v3943
      %v4072 = vadd.f32 %v3770, %v3948
      %v4073 = vadd.f32 %v3771, %v3951
      %v4074 = vadd.f32 %v3772, %v3956
      %v4075 = vadd.f32 %v3773, %v3959
      %v4076 = vadd.f32 %v3774, %v3964
      %v4077 = vadd.f32 %v3775, %v3967
      %v4078 = vadd.f32 %v3776, %v3972
      %v4079 = vadd.f32 %v3777, %v3975
      %v4080 = vadd.f32 %v3778, %v3980
      %v4081 = vadd.f32 %v3779, %v3983
      %v4082 = vadd.f32 %v3780, %v3988
      %v4083 = vadd.f32 %v3781, %v3991
      %v4084 = vadd.f32 %v3782, %v3996
      %v4085 = vadd.f32 %v3783, %v3999
      %v4086 = vadd.f32 %v3784, %v4004
      %v4087 = vadd.f32 %v3785, %v4007
      %v4088 = vadd.f32 %v3786, %v4012
      %v4089 = vadd.f32 %v3787, %v4015
      %v4090 = vadd.f32 %v3788, %v4020
      %v4091 = vadd.f32 %v3789, %v4023
      %v4092 = vadd.f32 %v3790, %v4028
      %v4093 = vadd.f32 %v3791, %v4031
      %v4094 = vadd.f32 %v3792, %v4036
      %v4095 = vadd.f32 %v3793, %v4039
      %v4096 = vadd.f32 %v3794, %v4044
      %v4097 = vadd.f32 %v3795, %v4047
      %4098 = vst [vmem:[#allocation2] sm:$0xff] %v4050
      %4099 = vst [vmem:[#allocation2 + $0x8] sm:$0xff] %v4051
      %4100 = vst [vmem:[#allocation2 + $0x10] sm:$0xff] %v4052
      %4101 = vst [vmem:[#allocation2 + $0x18] sm:$0xff] %v4053
      %4102 = vst [vmem:[#allocation2 + $0x20] sm:$0xff] %v4054
      %4103 = vst [vmem:[#allocation2 + $0x28] sm:$0xff] %v4055
      %4104 = vst [vmem:[#allocation2 + $0x30] sm:$0xff] %v4056
      %4105 = vst [vmem:[#allocation2 + $0x38] sm:$0xff] %v4057
      %4106 = vst [vmem:[#allocation2 + $0x40] sm:$0xff] %v4058
      %4107 = vst [vmem:[#allocation2 + $0x48] sm:$0xff] %v4059
      %4108 = vst [vmem:[#allocation2 + $0x50] sm:$0xff] %v4060
      %4109 = vst [vmem:[#allocation2 + $0x58] sm:$0xff] %v4061
      %4110 = vst [vmem:[#allocation2 + $0x60] sm:$0xff] %v4062
      %4111 = vst [vmem:[#allocation2 + $0x68] sm:$0xff] %v4063
      %4112 = vst [vmem:[#allocation2 + $0x70] sm:$0xff] %v4064
      %4113 = vst [vmem:[#allocation2 + $0x78] sm:$0xff] %v4065
      %4114 = vst [vmem:[#allocation2 + $0x80] sm:$0xff] %v4066
      %4115 = vst [vmem:[#allocation2 + $0x88] sm:$0xff] %v4067
      %4116 = vst [vmem:[#allocation2 + $0x90] sm:$0xff] %v4068
      %4117 = vst [vmem:[#allocation2 + $0x98] sm:$0xff] %v4069
      %4118 = vst [vmem:[#allocation2 + $0xa0] sm:$0xff] %v4070
      %4119 = vst [vmem:[#allocation2 + $0xa8] sm:$0xff] %v4071
      %4120 = vst [vmem:[#allocation2 + $0xb0] sm:$0xff] %v4072
      %4121 = vst [vmem:[#allocation2 + $0xb8] sm:$0xff] %v4073
      %4122 = vst [vmem:[#allocation2 + $0xc0] sm:$0xff] %v4074
      %4123 = vst [vmem:[#allocation2 + $0xc8] sm:$0xff] %v4075
      %4124 = vst [vmem:[#allocation2 + $0xd0] sm:$0xff] %v4076
      %4125 = vst [vmem:[#allocation2 + $0xd8] sm:$0xff] %v4077
      %4126 = vst [vmem:[#allocation2 + $0xe0] sm:$0xff] %v4078
      %4127 = vst [vmem:[#allocation2 + $0xe8] sm:$0xff] %v4079
      %4128 = vst [vmem:[#allocation2 + $0xf0] sm:$0xff] %v4080
      %4129 = vst [vmem:[#allocation2 + $0xf8] sm:$0xff] %v4081
      %4130 = vst [vmem:[#allocation2 + $0x100] sm:$0xff] %v4082
      %4131 = vst [vmem:[#allocation2 + $0x108] sm:$0xff] %v4083
      %4132 = vst [vmem:[#allocation2 + $0x110] sm:$0xff] %v4084
      %4133 = vst [vmem:[#allocation2 + $0x118] sm:$0xff] %v4085
      %4134 = vst [vmem:[#allocation2 + $0x120] sm:$0xff] %v4086
      %4135 = vst [vmem:[#allocation2 + $0x128] sm:$0xff] %v4087
      %4136 = vst [vmem:[#allocation2 + $0x130] sm:$0xff] %v4088
      %4137 = vst [vmem:[#allocation2 + $0x138] sm:$0xff] %v4089
      %4138 = vst [vmem:[#allocation2 + $0x140] sm:$0xff] %v4090
      %4139 = vst [vmem:[#allocation2 + $0x148] sm:$0xff] %v4091
      %4140 = vst [vmem:[#allocation2 + $0x150] sm:$0xff] %v4092
      %4141 = vst [vmem:[#allocation2 + $0x158] sm:$0xff] %v4093
      %4142 = vst [vmem:[#allocation2 + $0x160] sm:$0xff] %v4094
      %4143 = vst [vmem:[#allocation2 + $0x168] sm:$0xff] %v4095
      %4144 = vst [vmem:[#allocation2 + $0x170] sm:$0xff] %v4096
      %4145 = vst [vmem:[#allocation2 + $0x178] sm:$0xff] %v4097
      // Predicated region
      $region41: #{basic_conv2d.1} parent=35 // pred_check
        %p4146 = pneg %p298
      $region42: #{basic_conv2d.1} parent=35 // pred_check_branch
        %4148 = sbr.rel (%p4146) target = $region44
      $region43: #{basic_conv2d.1} parent=35 // pred_region
        %v4149 = vld [vmem:[%s285] sm:$0x1]
        %v4151 = vlaneseq
        %v4152 = vshrl.u32 %v4151, 7
        %v4153 = vsub.s32 0, %v4152
        %v4154 = vrot.slane %v4149, %v4153
        %v4156 = vmul.f32 %v4050, %v4154
        %v4157 = vmul.f32 %v4051, %v4154
        %v4158 = vmul.f32 %v4052, %v4154
        %v4159 = vmul.f32 %v4053, %v4154
        %v4160 = vmul.f32 %v4054, %v4154
        %v4161 = vmul.f32 %v4055, %v4154
        %v4162 = vmul.f32 %v4056, %v4154
        %v4163 = vmul.f32 %v4057, %v4154
        %v4164 = vmul.f32 %v4058, %v4154
        %v4165 = vmul.f32 %v4059, %v4154
        %v4166 = vmul.f32 %v4060, %v4154
        %v4167 = vmul.f32 %v4061, %v4154
        %v4168 = vmul.f32 %v4062, %v4154
        %v4169 = vmul.f32 %v4063, %v4154
        %v4170 = vmul.f32 %v4064, %v4154
        %v4171 = vmul.f32 %v4065, %v4154
        %v4172 = vmul.f32 %v4066, %v4154
        %v4173 = vmul.f32 %v4067, %v4154
        %v4174 = vmul.f32 %v4068, %v4154
        %v4175 = vmul.f32 %v4069, %v4154
        %v4176 = vmul.f32 %v4070, %v4154
        %v4177 = vmul.f32 %v4071, %v4154
        %v4178 = vmul.f32 %v4072, %v4154
        %v4179 = vmul.f32 %v4073, %v4154
        %v4180 = vmul.f32 %v4074, %v4154
        %v4181 = vmul.f32 %v4075, %v4154
        %v4182 = vmul.f32 %v4076, %v4154
        %v4183 = vmul.f32 %v4077, %v4154
        %v4184 = vmul.f32 %v4078, %v4154
        %v4185 = vmul.f32 %v4079, %v4154
        %v4186 = vmul.f32 %v4080, %v4154
        %v4187 = vmul.f32 %v4081, %v4154
        %v4188 = vmul.f32 %v4082, %v4154
        %v4189 = vmul.f32 %v4083, %v4154
        %v4190 = vmul.f32 %v4084, %v4154
        %v4191 = vmul.f32 %v4085, %v4154
        %v4192 = vmul.f32 %v4086, %v4154
        %v4193 = vmul.f32 %v4087, %v4154
        %v4194 = vmul.f32 %v4088, %v4154
        %v4195 = vmul.f32 %v4089, %v4154
        %v4196 = vmul.f32 %v4090, %v4154
        %v4197 = vmul.f32 %v4091, %v4154
        %v4198 = vmul.f32 %v4092, %v4154
        %v4199 = vmul.f32 %v4093, %v4154
        %v4200 = vmul.f32 %v4094, %v4154
        %v4201 = vmul.f32 %v4095, %v4154
        %v4202 = vmul.f32 %v4096, %v4154
        %v4203 = vmul.f32 %v4097, %v4154
        %v4204 = vld [vmem:[%s288] sm:$0x1]
        %v4206 = vlaneseq
        %v4207 = vshrl.u32 %v4206, 7
        %v4208 = vsub.s32 0, %v4207
        %v4209 = vrot.slane %v4204, %v4208
        %v4211 = vadd.f32 %v4156, %v4209
        %v4212 = vadd.f32 %v4157, %v4209
        %v4213 = vadd.f32 %v4158, %v4209
        %v4214 = vadd.f32 %v4159, %v4209
        %v4215 = vadd.f32 %v4160, %v4209
        %v4216 = vadd.f32 %v4161, %v4209
        %v4217 = vadd.f32 %v4162, %v4209
        %v4218 = vadd.f32 %v4163, %v4209
        %v4219 = vadd.f32 %v4164, %v4209
        %v4220 = vadd.f32 %v4165, %v4209
        %v4221 = vadd.f32 %v4166, %v4209
        %v4222 = vadd.f32 %v4167, %v4209
        %v4223 = vadd.f32 %v4168, %v4209
        %v4224 = vadd.f32 %v4169, %v4209
        %v4225 = vadd.f32 %v4170, %v4209
        %v4226 = vadd.f32 %v4171, %v4209
        %v4227 = vadd.f32 %v4172, %v4209
        %v4228 = vadd.f32 %v4173, %v4209
        %v4229 = vadd.f32 %v4174, %v4209
        %v4230 = vadd.f32 %v4175, %v4209
        %v4231 = vadd.f32 %v4176, %v4209
        %v4232 = vadd.f32 %v4177, %v4209
        %v4233 = vadd.f32 %v4178, %v4209
        %v4234 = vadd.f32 %v4179, %v4209
        %v4235 = vadd.f32 %v4180, %v4209
        %v4236 = vadd.f32 %v4181, %v4209
        %v4237 = vadd.f32 %v4182, %v4209
        %v4238 = vadd.f32 %v4183, %v4209
        %v4239 = vadd.f32 %v4184, %v4209
        %v4240 = vadd.f32 %v4185, %v4209
        %v4241 = vadd.f32 %v4186, %v4209
        %v4242 = vadd.f32 %v4187, %v4209
        %v4243 = vadd.f32 %v4188, %v4209
        %v4244 = vadd.f32 %v4189, %v4209
        %v4245 = vadd.f32 %v4190, %v4209
        %v4246 = vadd.f32 %v4191, %v4209
        %v4247 = vadd.f32 %v4192, %v4209
        %v4248 = vadd.f32 %v4193, %v4209
        %v4249 = vadd.f32 %v4194, %v4209
        %v4250 = vadd.f32 %v4195, %v4209
        %v4251 = vadd.f32 %v4196, %v4209
        %v4252 = vadd.f32 %v4197, %v4209
        %v4253 = vadd.f32 %v4198, %v4209
        %v4254 = vadd.f32 %v4199, %v4209
        %v4255 = vadd.f32 %v4200, %v4209
        %v4256 = vadd.f32 %v4201, %v4209
        %v4257 = vadd.f32 %v4202, %v4209
        %v4258 = vadd.f32 %v4203, %v4209
        %v4259 = vmax.f32 %v4211, 0.0
        %v4260 = vmax.f32 %v4212, 0.0
        %v4261 = vmax.f32 %v4213, 0.0
        %v4262 = vmax.f32 %v4214, 0.0
        %v4263 = vmax.f32 %v4215, 0.0
        %v4264 = vmax.f32 %v4216, 0.0
        %v4265 = vmax.f32 %v4217, 0.0
        %v4266 = vmax.f32 %v4218, 0.0
        %v4267 = vmax.f32 %v4219, 0.0
        %v4268 = vmax.f32 %v4220, 0.0
        %v4269 = vmax.f32 %v4221, 0.0
        %v4270 = vmax.f32 %v4222, 0.0
        %v4271 = vmax.f32 %v4223, 0.0
        %v4272 = vmax.f32 %v4224, 0.0
        %v4273 = vmax.f32 %v4225, 0.0
        %v4274 = vmax.f32 %v4226, 0.0
        %v4275 = vmax.f32 %v4227, 0.0
        %v4276 = vmax.f32 %v4228, 0.0
        %v4277 = vmax.f32 %v4229, 0.0
        %v4278 = vmax.f32 %v4230, 0.0
        %v4279 = vmax.f32 %v4231, 0.0
        %v4280 = vmax.f32 %v4232, 0.0
        %v4281 = vmax.f32 %v4233, 0.0
        %v4282 = vmax.f32 %v4234, 0.0
        %v4283 = vmax.f32 %v4235, 0.0
        %v4284 = vmax.f32 %v4236, 0.0
        %v4285 = vmax.f32 %v4237, 0.0
        %v4286 = vmax.f32 %v4238, 0.0
        %v4287 = vmax.f32 %v4239, 0.0
        %v4288 = vmax.f32 %v4240, 0.0
        %v4289 = vmax.f32 %v4241, 0.0
        %v4290 = vmax.f32 %v4242, 0.0
        %v4291 = vmax.f32 %v4243, 0.0
        %v4292 = vmax.f32 %v4244, 0.0
        %v4293 = vmax.f32 %v4245, 0.0
        %v4294 = vmax.f32 %v4246, 0.0
        %v4295 = vmax.f32 %v4247, 0.0
        %v4296 = vmax.f32 %v4248, 0.0
        %v4297 = vmax.f32 %v4249, 0.0
        %v4298 = vmax.f32 %v4250, 0.0
        %v4299 = vmax.f32 %v4251, 0.0
        %v4300 = vmax.f32 %v4252, 0.0
        %v4301 = vmax.f32 %v4253, 0.0
        %v4302 = vmax.f32 %v4254, 0.0
        %v4303 = vmax.f32 %v4255, 0.0
        %v4304 = vmax.f32 %v4256, 0.0
        %v4305 = vmax.f32 %v4257, 0.0
        %v4306 = vmax.f32 %v4258, 0.0
        %v4307 = vpack.c.bf16 %v4260, %v4259
        %v4308 = vpack.c.bf16 %v4262, %v4261
        %v4309 = vpack.c.bf16 %v4264, %v4263
        %v4310 = vpack.c.bf16 %v4266, %v4265
        %v4311 = vpack.c.bf16 %v4268, %v4267
        %v4312 = vpack.c.bf16 %v4270, %v4269
        %v4313 = vpack.c.bf16 %v4272, %v4271
        %v4314 = vpack.c.bf16 %v4274, %v4273
        %v4315 = vpack.c.bf16 %v4276, %v4275
        %v4316 = vpack.c.bf16 %v4278, %v4277
        %v4317 = vpack.c.bf16 %v4280, %v4279
        %v4318 = vpack.c.bf16 %v4282, %v4281
        %v4319 = vpack.c.bf16 %v4284, %v4283
        %v4320 = vpack.c.bf16 %v4286, %v4285
        %v4321 = vpack.c.bf16 %v4288, %v4287
        %v4322 = vpack.c.bf16 %v4290, %v4289
        %v4323 = vpack.c.bf16 %v4292, %v4291
        %v4324 = vpack.c.bf16 %v4294, %v4293
        %v4325 = vpack.c.bf16 %v4296, %v4295
        %v4326 = vpack.c.bf16 %v4298, %v4297
        %v4327 = vpack.c.bf16 %v4300, %v4299
        %v4328 = vpack.c.bf16 %v4302, %v4301
        %v4329 = vpack.c.bf16 %v4304, %v4303
        %v4330 = vpack.c.bf16 %v4306, %v4305
        %v4355 = vunpack.c.l.b16 %v4307
        %v4356 = vunpack.c.h.b16 %v4307
        %v4357 = vunpack.c.l.b16 %v4308
        %v4358 = vunpack.c.h.b16 %v4308
        %v4359 = vunpack.c.l.b16 %v4309
        %v4360 = vunpack.c.h.b16 %v4309
        %v4361 = vunpack.c.l.b16 %v4310
        %v4362 = vunpack.c.h.b16 %v4310
        %v4363 = vunpack.c.l.b16 %v4311
        %v4364 = vunpack.c.h.b16 %v4311
        %v4365 = vunpack.c.l.b16 %v4312
        %v4366 = vunpack.c.h.b16 %v4312
        %v4367 = vunpack.c.l.b16 %v4313
        %v4368 = vunpack.c.h.b16 %v4313
        %v4369 = vunpack.c.l.b16 %v4314
        %v4370 = vunpack.c.h.b16 %v4314
        %v4371 = vunpack.c.l.b16 %v4315
        %v4372 = vunpack.c.h.b16 %v4315
        %v4373 = vunpack.c.l.b16 %v4316
        %v4374 = vunpack.c.h.b16 %v4316
        %v4375 = vunpack.c.l.b16 %v4317
        %v4376 = vunpack.c.h.b16 %v4317
        %v4377 = vunpack.c.l.b16 %v4318
        %v4378 = vunpack.c.h.b16 %v4318
        %v4379 = vunpack.c.l.b16 %v4319
        %v4380 = vunpack.c.h.b16 %v4319
        %v4381 = vunpack.c.l.b16 %v4320
        %v4382 = vunpack.c.h.b16 %v4320
        %v4383 = vunpack.c.l.b16 %v4321
        %v4384 = vunpack.c.h.b16 %v4321
        %v4385 = vunpack.c.l.b16 %v4322
        %v4386 = vunpack.c.h.b16 %v4322
        %v4387 = vunpack.c.l.b16 %v4323
        %v4388 = vunpack.c.h.b16 %v4323
        %v4389 = vunpack.c.l.b16 %v4324
        %v4390 = vunpack.c.h.b16 %v4324
        %v4391 = vunpack.c.l.b16 %v4325
        %v4392 = vunpack.c.h.b16 %v4325
        %v4393 = vunpack.c.l.b16 %v4326
        %v4394 = vunpack.c.h.b16 %v4326
        %v4395 = vunpack.c.l.b16 %v4327
        %v4396 = vunpack.c.h.b16 %v4327
        %v4397 = vunpack.c.l.b16 %v4328
        %v4398 = vunpack.c.h.b16 %v4328
        %v4399 = vunpack.c.l.b16 %v4329
        %v4400 = vunpack.c.h.b16 %v4329
        %v4401 = vunpack.c.l.b16 %v4330
        %v4402 = vunpack.c.h.b16 %v4330
        %v4403 = vpack.c.b16 %v4355, %v4355
        %v4404 = vpack.c.b16 %v4356, %v4356
        %v4405 = vpack.c.b16 %v4357, %v4357
        %v4406 = vpack.c.b16 %v4358, %v4358
        %v4407 = vpack.c.b16 %v4359, %v4359
        %v4408 = vpack.c.b16 %v4360, %v4360
        %v4409 = vpack.c.b16 %v4361, %v4361
        %v4410 = vpack.c.b16 %v4362, %v4362
        %v4411 = vpack.c.b16 %v4363, %v4363
        %v4412 = vpack.c.b16 %v4364, %v4364
        %v4413 = vpack.c.b16 %v4365, %v4365
        %v4414 = vpack.c.b16 %v4366, %v4366
        %v4415 = vpack.c.b16 %v4367, %v4367
        %v4416 = vpack.c.b16 %v4368, %v4368
        %v4417 = vpack.c.b16 %v4369, %v4369
        %v4418 = vpack.c.b16 %v4370, %v4370
        %v4419 = vpack.c.b16 %v4371, %v4371
        %v4420 = vpack.c.b16 %v4372, %v4372
        %v4421 = vpack.c.b16 %v4373, %v4373
        %v4422 = vpack.c.b16 %v4374, %v4374
        %v4423 = vpack.c.b16 %v4375, %v4375
        %v4424 = vpack.c.b16 %v4376, %v4376
        %v4425 = vpack.c.b16 %v4377, %v4377
        %v4426 = vpack.c.b16 %v4378, %v4378
        %v4427 = vpack.c.b16 %v4379, %v4379
        %v4428 = vpack.c.b16 %v4380, %v4380
        %v4429 = vpack.c.b16 %v4381, %v4381
        %v4430 = vpack.c.b16 %v4382, %v4382
        %v4431 = vpack.c.b16 %v4383, %v4383
        %v4432 = vpack.c.b16 %v4384, %v4384
        %v4433 = vpack.c.b16 %v4385, %v4385
        %v4434 = vpack.c.b16 %v4386, %v4386
        %v4435 = vpack.c.b16 %v4387, %v4387
        %v4436 = vpack.c.b16 %v4388, %v4388
        %v4437 = vpack.c.b16 %v4389, %v4389
        %v4438 = vpack.c.b16 %v4390, %v4390
        %v4439 = vpack.c.b16 %v4391, %v4391
        %v4440 = vpack.c.b16 %v4392, %v4392
        %v4441 = vpack.c.b16 %v4393, %v4393
        %v4442 = vpack.c.b16 %v4394, %v4394
        %v4443 = vpack.c.b16 %v4395, %v4395
        %v4444 = vpack.c.b16 %v4396, %v4396
        %v4445 = vpack.c.b16 %v4397, %v4397
        %v4446 = vpack.c.b16 %v4398, %v4398
        %v4447 = vpack.c.b16 %v4399, %v4399
        %v4448 = vpack.c.b16 %v4400, %v4400
        %v4449 = vpack.c.b16 %v4401, %v4401
        %v4450 = vpack.c.b16 %v4402, %v4402
        %4499 = vst [vmem:[%s296] sm:$0xf] %v4403
        %4500 = vst [vmem:[%s296 + $0x4] sm:$0xf] %v4404
        %4501 = vst [vmem:[%s296 + $0x8] sm:$0xf] %v4405
        %4502 = vst [vmem:[%s296 + $0xc] sm:$0xf] %v4406
        %4503 = vst [vmem:[%s296 + $0x10] sm:$0xf] %v4407
        %4504 = vst [vmem:[%s296 + $0x14] sm:$0xf] %v4408
        %4505 = vst [vmem:[%s296 + $0x18] sm:$0xf] %v4409
        %4506 = vst [vmem:[%s296 + $0x1c] sm:$0xf] %v4410
        %4507 = vst [vmem:[%s296 + $0x20] sm:$0xf] %v4411
        %4508 = vst [vmem:[%s296 + $0x24] sm:$0xf] %v4412
        %4509 = vst [vmem:[%s296 + $0x28] sm:$0xf] %v4413
        %4510 = vst [vmem:[%s296 + $0x2c] sm:$0xf] %v4414
        %4511 = vst [vmem:[%s296 + $0x30] sm:$0xf] %v4415
        %4512 = vst [vmem:[%s296 + $0x34] sm:$0xf] %v4416
        %4513 = vst [vmem:[%s296 + $0x38] sm:$0xf] %v4417
        %4514 = vst [vmem:[%s296 + $0x3c] sm:$0xf] %v4418
        %4515 = vst [vmem:[%s296 + $0x40] sm:$0xf] %v4419
        %4516 = vst [vmem:[%s296 + $0x44] sm:$0xf] %v4420
        %4517 = vst [vmem:[%s296 + $0x48] sm:$0xf] %v4421
        %4518 = vst [vmem:[%s296 + $0x4c] sm:$0xf] %v4422
        %4519 = vst [vmem:[%s296 + $0x50] sm:$0xf] %v4423
        %4520 = vst [vmem:[%s296 + $0x54] sm:$0xf] %v4424
        %4521 = vst [vmem:[%s296 + $0x58] sm:$0xf] %v4425
        %4522 = vst [vmem:[%s296 + $0x5c] sm:$0xf] %v4426
        %4523 = vst [vmem:[%s296 + $0x60] sm:$0xf] %v4427
        %4524 = vst [vmem:[%s296 + $0x64] sm:$0xf] %v4428
        %4525 = vst [vmem:[%s296 + $0x68] sm:$0xf] %v4429
        %4526 = vst [vmem:[%s296 + $0x6c] sm:$0xf] %v4430
        %4527 = vst [vmem:[%s296 + $0x70] sm:$0xf] %v4431
        %4528 = vst [vmem:[%s296 + $0x74] sm:$0xf] %v4432
        %4529 = vst [vmem:[%s296 + $0x78] sm:$0xf] %v4433
        %4530 = vst [vmem:[%s296 + $0x7c] sm:$0xf] %v4434
        %4531 = vst [vmem:[%s296 + $0x80] sm:$0xf] %v4435
        %4532 = vst [vmem:[%s296 + $0x84] sm:$0xf] %v4436
        %4533 = vst [vmem:[%s296 + $0x88] sm:$0xf] %v4437
        %4534 = vst [vmem:[%s296 + $0x8c] sm:$0xf] %v4438
        %4535 = vst [vmem:[%s296 + $0x90] sm:$0xf] %v4439
        %4536 = vst [vmem:[%s296 + $0x94] sm:$0xf] %v4440
        %4537 = vst [vmem:[%s296 + $0x98] sm:$0xf] %v4441
        %4538 = vst [vmem:[%s296 + $0x9c] sm:$0xf] %v4442
        %4539 = vst [vmem:[%s296 + $0xa0] sm:$0xf] %v4443
        %4540 = vst [vmem:[%s296 + $0xa4] sm:$0xf] %v4444
        %4541 = vst [vmem:[%s296 + $0xa8] sm:$0xf] %v4445
        %4542 = vst [vmem:[%s296 + $0xac] sm:$0xf] %v4446
        %4543 = vst [vmem:[%s296 + $0xb0] sm:$0xf] %v4447
        %4544 = vst [vmem:[%s296 + $0xb4] sm:$0xf] %v4448
        %4545 = vst [vmem:[%s296 + $0xb8] sm:$0xf] %v4449
        %4546 = vst [vmem:[%s296 + $0xbc] sm:$0xf] %v4450
      $region44: #{basic_conv2d.1} parent=35 // pred_fallthru
        _
      %p4547 = scmp.lt.s32.totalorder %s20, 1
      %s4548 = scalar_select %p4547, %s20, 1
      %p4549 = scmp.lt.s32.totalorder %s21, 0
      %s4550 = scalar_select %p4549, %s21, 0
      %s4551 = smul.addr %s4548, 48
      %s4552 = sadd.s32 %s4550, %s4551
      %s4553 = smul.addr %s4552, 4
      %s4554 = scalar_lea.vmem %s4, %s4553
      // Predicated region
      $region45: #{basic_conv2d.1} parent=35 // pred_check
        %p4555 = pneg %p162
      $region46: #{basic_conv2d.1} parent=35 // pred_check_branch
        %4557 = sbr.rel (%p4555) target = $region48
      $region47: #{basic_conv2d.1} parent=35 // pred_region
        _
      $region48: #{basic_conv2d.1} parent=35 // pred_fallthru
        _
    $region36: #{basic_conv2d.1} parent=5 // pred_fallthru
      _
    %p4558 = scmp.le.s32.totalorder 2, %s10
    // Predicated region
    $region49: #{basic_conv2d.1} parent=5 // pred_check
      %p4559 = pneg %p4558
    $region50: #{basic_conv2d.1} parent=5 // pred_check_branch
      %4561 = sbr.rel (%p4559) target = $region52
    $region51: #{basic_conv2d.1} parent=5 // pred_region
      %s4562 = ssub.s32 %s10, 2
      // Predicated region
      $region53: #{basic_conv2d.1} parent=51 // pred_check
        %p4563 = pneg %p168
      $region54: #{basic_conv2d.1} parent=51 // pred_check_branch
        %4565 = sbr.rel (%p4563) target = $region56
      $region55: #{basic_conv2d.1} parent=51 // pred_region
        %p4566 = scmp.lt.s32.totalorder %s23, 1
        %s4567 = scalar_select %p4566, %s23, 1
        %p4568 = scmp.lt.s32.totalorder %s24, 0
        %s4569 = scalar_select %p4568, %s24, 0
        %s4570 = smul.addr %s4567, 48
        %s4571 = sadd.s32 %s4569, %s4570
        %s4572 = smul.addr %s4571, 4
        %s4573 = scalar_lea.vmem %s4, %s4572
      $region56: #{basic_conv2d.1} parent=51 // pred_fallthru
        _
    $region52: #{basic_conv2d.1} parent=5 // pred_fallthru
      _
  $region6: #{basic_conv2d.1} parent=0 // loop_footer
    %s14 = sadd.s32 1, %s10
  $region7: #{basic_conv2d.1} parent=0 // loop_footer_branch
    %9 = sbr.rel target = $region3
  $region8: #{basic_conv2d.1} parent=0 // loop_exit
    _

</llo_original>
